<compile_context>
chip_gen: v5e
topology: v5e:2x2
jax: 0.10.0
libtpu: 0.0.40
codegen_flags: <defaults>
</compile_context>

<pallas_src>
import functools

import numpy as np
import jax
import jax.numpy as jnp
from jax.experimental import pallas as pl
from jax.experimental.pallas import tpu as pltpu


# ----------------------------------------------------------------------------
# In-kernel helpers
# ----------------------------------------------------------------------------
def _layernorm(v, gamma, beta, eps):
    mu = jnp.mean(v, axis=-1, keepdims=True)
    c = v - mu
    var = jnp.mean(c * c, axis=-1, keepdims=True)
    return c * jax.lax.rsqrt(var + eps) * gamma + beta


def _gelu(x):
    # TODO(synk): PyTorch nn.GELU default is the exact erf formulation; the
    # tanh approximation (|err| ~ 1e-3) is used for robust Mosaic lowering.
    c = 0.7978845608028654  # sqrt(2/pi)
    return 0.5 * x * (1.0 + jnp.tanh(c * (x + 0.044715 * x * x * x)))


# ----------------------------------------------------------------------------
# Fused DEncoderBlock kernel (one batch element per grid step)
# ----------------------------------------------------------------------------
def _dencoder_block_kernel(x_ref, ln1g_ref, ln1b_ref, wqkv_ref, wout_ref,
                           bout_ref, ln2g_ref, ln2b_ref, w1_ref, b1_ref,
                           w2_ref, b2_ref, o_ref,
                           *, num_heads, dim_head, scale_factor, ln_eps):
    f32, bf16 = jnp.float32, jnp.bfloat16
    x = x_ref[...].astype(f32)                       # (T, D)
    T, D = x.shape
    wd = num_heads * dim_head

    # ---- LayerNorm 1 ----
    x1 = _layernorm(x, ln1g_ref[...], ln1b_ref[...], ln_eps)

    # ---- fused qkv projection: bf16 MXU, f32 accumulate ----
    qkv = jnp.dot(x1.astype(bf16), wqkv_ref[...],
                  preferred_element_type=f32)        # (T, 3*wd)

    # ---- per-head cdist attention fused with the output projection ----
    wout = wout_ref[...]                             # (wd, D) bf16
    ones_td = jnp.ones((T, dim_head), f32)
    attn_proj = jnp.zeros((T, D), f32)
    for h in range(num_heads):
        q = qkv[:, h * dim_head:(h + 1) * dim_head]
        k = qkv[:, wd + h * dim_head: wd + (h + 1) * dim_head]
        v = qkv[:, 2 * wd + h * dim_head: 2 * wd + (h + 1) * dim_head]
        qb, kb, vb = q.astype(bf16), k.astype(bf16), v.astype(bf16)
        qf, kf = qb.astype(f32), kb.astype(f32)

        # ||q_i - k_j||^2 = ||q_i||^2 + ||k_j||^2 - 2 q_i.k_j
        qsq = jnp.sum(qf * qf, axis=-1, keepdims=True)                 # (T, 1)
        # broadcast ||k_j||^2 along rows via a matmul (avoids a transpose)
        ksq_b = jax.lax.dot_general(ones_td, kf * kf,
                                    (((1,), (1,)), ((), ())),
                                    preferred_element_type=f32)         # (T, T)
        qk = jax.lax.dot_general(qb, kb, (((1,), (1,)), ((), ())),
                                 preferred_element_type=f32)            # (T, T)
        dist = jnp.sqrt(jnp.maximum(qsq + ksq_b - 2.0 * qk, 0.0))

        # softmax over keys
        s = dist * scale_factor
        m = jnp.max(s, axis=-1, keepdims=True)
        e = jnp.exp(s - m)
        p = e * pl.reciprocal(jnp.sum(e, axis=-1, keepdims=True), approx=True)

        head_out = jnp.dot(p.astype(bf16), vb,
                           preferred_element_type=f32)                  # (T, Dh)
        # contribution of this head to the w_out projection
        attn_proj += jnp.dot(head_out.astype(bf16),
                             wout[h * dim_head:(h + 1) * dim_head, :],
                             preferred_element_type=f32)
    attn_proj = attn_proj + bout_ref[...]

    # residual 1 (dropout = identity in eval mode)
    x = x + attn_proj

    # ---- LayerNorm 2 + MLP ----
    x2 = _layernorm(x, ln2g_ref[...], ln2b_ref[...], ln_eps)
    h1 = jnp.dot(x2.astype(bf16), w1_ref[...],
                 preferred_element_type=f32) + b1_ref[...]
    g = _gelu(h1)
    h2 = jnp.dot(g.astype(bf16), w2_ref[...],
                 preferred_element_type=f32) + b2_ref[...]

    # residual 2
    o_ref[...] = (x + h2).astype(o_ref.dtype)


# ----------------------------------------------------------------------------
# JAX glue: spectral norm (power iteration), params, jitted forward
# ----------------------------------------------------------------------------
def _spectral_norm_poweriter(w, iters=32):
    """Largest singular value via power iteration (stand-in for torch.svd max(s))."""
    v = jnp.full((w.shape[1],), 1.0 / np.sqrt(w.shape[1]), jnp.float32)

    def body(_, v):
        u = w @ v
        u = u / (jnp.linalg.norm(u) + 1e-12)
        v2 = w.T @ u
        return v2 / (jnp.linalg.norm(v2) + 1e-12)

    v = jax.lax.fori_loop(0, iters, body, v)
    return jnp.linalg.norm(w @ v)


def build_params(key, dim, num_heads, dim_head=None, mlp_ratio=4):
    if dim_head is None:
        dim_head = dim // num_heads
    wd = num_heads * dim_head
    hid = dim * mlp_ratio
    ks = jax.random.split(key, 7)

    def linear_w(k, fan_in, shape):
        bound = 1.0 / np.sqrt(fan_in)
        return jax.random.uniform(k, shape, jnp.float32, -bound, bound)

    # to_qkv (bias=False). PyTorch weight is (3*wd, dim); stored transposed
    # (dim, 3*wd) with columns permuted ONCE so the einops rearrange
    # 'b t (d k h) -> k b h t d' becomes contiguous per-head slices in-kernel.
    w_qkv = linear_w(ks[0], dim, (dim, 3 * wd))
    perm = np.empty(3 * wd, np.int32)
    for kk in range(3):
        for h in range(num_heads):
            for d in range(dim_head):
                perm[kk * wd + h * dim_head + d] = (
                    d * 3 * num_heads + kk * num_heads + h)
    w_qkv = w_qkv[:, perm]                   # column permutation: same singular values
    init_sn = _spectral_norm_poweriter(w_qkv)

    return dict(
        w_qkv=w_qkv,                          # f32; spectrally rescaled + bf16-cast per forward
        init_spect_norm=init_sn,
        ln1_g=jnp.ones((1, dim), jnp.float32),
        ln1_b=jnp.zeros((1, dim), jnp.float32),
        ln2_g=jnp.ones((1, dim), jnp.float32),
        ln2_b=jnp.zeros((1, dim), jnp.float32),
        w_out=linear_w(ks[1], wd, (wd, dim)).astype(jnp.bfloat16),
        b_out=linear_w(ks[2], wd, (1, dim)),
        w1=linear_w(ks[3], dim, (dim, hid)).astype(jnp.bfloat16),
        b1=linear_w(ks[4], dim, (1, hid)),
        w2=linear_w(ks[5], hid, (hid, dim)).astype(jnp.bfloat16),
        b2=linear_w(ks[6], hid, (1, dim)),
    )


@functools.partial(jax.jit, static_argnames=("num_heads", "dim_head"))
def dencoder_block_forward(x, params, *, num_heads, dim_head):
    B, T, D = x.shape
    wd = num_heads * dim_head
    hid = params["w1"].shape[1]

    # discriminator spectral renormalization: W <- W * init_sn / sigma_max(W)
    sigma = _spectral_norm_poweriter(params["w_qkv"])
    w_qkv = (params["w_qkv"] *
             (params["init_spect_norm"] / sigma)).astype(jnp.bfloat16)

    # advisory cost estimate for XLA scheduling
    flops = B * (2 * T * D * 3 * wd + 6 * T * T * wd
                 + 2 * T * wd * D + 4 * T * D * hid)
    transcendentals = B * (2 * num_heads * T * T + T * hid)
    bytes_accessed = (2 * x.size * 4 + w_qkv.size * 2
                      + params["w_out"].size * 2 + params["w1"].size * 2
                      + params["w2"].size * 2
                      + 4 * (params["b_out"].size + params["b1"].size
                             + params["b2"].size + 4 * D))

    kernel = functools.partial(_dencoder_block_kernel,
                               num_heads=num_heads, dim_head=dim_head,
                               scale_factor=float(D) ** -0.5, ln_eps=1e-5)

    def full_spec(a):
        return pl.BlockSpec(a.shape, lambda b: (0, 0))

    seq_spec = pl.BlockSpec((None, T, D), lambda b: (b, 0, 0))

    return pl.pallas_call(
        kernel,
        out_shape=jax.ShapeDtypeStruct((B, T, D), jnp.float32),
        grid_spec=pltpu.PrefetchScalarGridSpec(
            num_scalar_prefetch=0,
            grid=(B,),
            in_specs=[
                seq_spec,                                   # x
                full_spec(params["ln1_g"]), full_spec(params["ln1_b"]),
                full_spec(w_qkv),
                full_spec(params["w_out"]), full_spec(params["b_out"]),
                full_spec(params["ln2_g"]), full_spec(params["ln2_b"]),
                full_spec(params["w1"]), full_spec(params["b1"]),
                full_spec(params["w2"]), full_spec(params["b2"]),
            ],
            out_specs=seq_spec,
        ),
        compiler_params=pltpu.CompilerParams(
            dimension_semantics=("parallel",)),
        cost_estimate=pl.CostEstimate(flops=int(flops),
                                      transcendentals=int(transcendentals),
                                      bytes_accessed=int(bytes_accessed)),
    )(x, params["ln1_g"], params["ln1_b"], w_qkv,
      params["w_out"], params["b_out"],
      params["ln2_g"], params["ln2_b"],
      params["w1"], params["b1"], params["w2"], params["b2"])


if __name__ == "__main__":
    key = jax.random.PRNGKey(0)
    k_params, k_input = jax.random.split(key)

    batch, seq, dim, num_heads = 2, 64, 128, 4
    dim_head = dim // num_heads

    params = build_params(k_params, dim, num_heads)
    x = jax.random.normal(k_input, (batch, seq, dim), jnp.float32)

    out = dencoder_block_forward(x, params, num_heads=num_heads,
                                 dim_head=dim_head)
    out = jax.block_until_ready(out)

    assert out.shape == (batch, seq, dim), out.shape
    assert bool(jnp.all(jnp.isfinite(out)))
    print("KERNEL_OK")
</pallas_src>

<mosaic_0001>
module attributes {stable_mosaic.version = 11 : i64} {
  func.func @_dencoder_block_kernel(%arg0: i32, %arg1: memref<1x64x128xf32, #tpu.memory_space<vmem>>, %arg2: memref<1x128xf32, #tpu.memory_space<vmem>>, %arg3: memref<1x128xf32, #tpu.memory_space<vmem>>, %arg4: memref<128x384xbf16, #tpu.memory_space<vmem>>, %arg5: memref<128x128xbf16, #tpu.memory_space<vmem>>, %arg6: memref<1x128xf32, #tpu.memory_space<vmem>>, %arg7: memref<1x128xf32, #tpu.memory_space<vmem>>, %arg8: memref<1x128xf32, #tpu.memory_space<vmem>>, %arg9: memref<128x512xbf16, #tpu.memory_space<vmem>>, %arg10: memref<1x512xf32, #tpu.memory_space<vmem>>, %arg11: memref<512x128xbf16, #tpu.memory_space<vmem>>, %arg12: memref<1x128xf32, #tpu.memory_space<vmem>>, %arg13: memref<1x64x128xf32, #tpu.memory_space<vmem>>) attributes {dimension_semantics = [#tpu.dimension_semantics<parallel>], iteration_bounds = array<i64: 2>, scalar_prefetch = 0 : i64, scratch_operands = 0 : i64, tpu.core_type = #tpu.core_type<tc>, window_params = [{transform_indices = @transform_0, window_bounds = array<i64: 1, 64, 128>}, {pipeline_mode = #tpu.pipeline_mode<synchronous>, transform_indices = @transform_1, window_bounds = array<i64: 1, 128>}, {pipeline_mode = #tpu.pipeline_mode<synchronous>, transform_indices = @transform_2, window_bounds = array<i64: 1, 128>}, {pipeline_mode = #tpu.pipeline_mode<synchronous>, transform_indices = @transform_3, window_bounds = array<i64: 128, 384>}, {pipeline_mode = #tpu.pipeline_mode<synchronous>, transform_indices = @transform_4, window_bounds = array<i64: 128, 128>}, {pipeline_mode = #tpu.pipeline_mode<synchronous>, transform_indices = @transform_5, window_bounds = array<i64: 1, 128>}, {pipeline_mode = #tpu.pipeline_mode<synchronous>, transform_indices = @transform_6, window_bounds = array<i64: 1, 128>}, {pipeline_mode = #tpu.pipeline_mode<synchronous>, transform_indices = @transform_7, window_bounds = array<i64: 1, 128>}, {pipeline_mode = #tpu.pipeline_mode<synchronous>, transform_indices = @transform_8, window_bounds = array<i64: 128, 512>}, {pipeline_mode = #tpu.pipeline_mode<synchronous>, transform_indices = @transform_9, window_bounds = array<i64: 1, 512>}, {pipeline_mode = #tpu.pipeline_mode<synchronous>, transform_indices = @transform_10, window_bounds = array<i64: 512, 128>}, {pipeline_mode = #tpu.pipeline_mode<synchronous>, transform_indices = @transform_11, window_bounds = array<i64: 1, 128>}, {transform_indices = @transform_12, window_bounds = array<i64: 1, 64, 128>}]} {
    %c0 = arith.constant 0 : index
    %c0_0 = arith.constant 0 : index
    %c0_1 = arith.constant 0 : index
    %0 = vector.load %arg1[%c0, %c0_0, %c0_1] : memref<1x64x128xf32, #tpu.memory_space<vmem>>, vector<1x64x128xf32>
    %1 = vector.shape_cast %0 : vector<1x64x128xf32> to vector<64x128xf32>
    %c0_2 = arith.constant 0 : index
    %c0_3 = arith.constant 0 : index
    %2 = vector.load %arg2[%c0_2, %c0_3] : memref<1x128xf32, #tpu.memory_space<vmem>>, vector<1x128xf32>
    %c0_4 = arith.constant 0 : index
    %c0_5 = arith.constant 0 : index
    %3 = vector.load %arg3[%c0_4, %c0_5] : memref<1x128xf32, #tpu.memory_space<vmem>>, vector<1x128xf32>
    %cst = arith.constant dense<0.000000e+00> : vector<64xf32>
    %4 = vector.multi_reduction <add>, %1, %cst [1] : vector<64x128xf32> to vector<64xf32>
    %5 = vector.shape_cast %4 : vector<64xf32> to vector<64x1xf32>
    %cst_6 = arith.constant 1.280000e+02 : f32
    %6 = vector.broadcast %cst_6 : f32 to vector<64x1xf32>
    %7 = arith.divf %5, %6 : vector<64x1xf32>
    %8 = vector.broadcast %7 : vector<64x1xf32> to vector<64x128xf32>
    %9 = arith.subf %1, %8 : vector<64x128xf32>
    %10 = arith.mulf %9, %9 : vector<64x128xf32>
    %cst_7 = arith.constant dense<0.000000e+00> : vector<64xf32>
    %11 = vector.multi_reduction <add>, %10, %cst_7 [1] : vector<64x128xf32> to vector<64xf32>
    %12 = vector.shape_cast %11 : vector<64xf32> to vector<64x1xf32>
    %cst_8 = arith.constant 1.280000e+02 : f32
    %13 = vector.broadcast %cst_8 : f32 to vector<64x1xf32>
    %14 = arith.divf %12, %13 : vector<64x1xf32>
    %cst_9 = arith.constant 9.99999974E-6 : f32
    %15 = vector.broadcast %cst_9 : f32 to vector<64x1xf32>
    %16 = arith.addf %14, %15 : vector<64x1xf32>
    %17 = math.rsqrt %16 : vector<64x1xf32>
    %18 = vector.broadcast %17 : vector<64x1xf32> to vector<64x128xf32>
    %19 = arith.mulf %9, %18 : vector<64x128xf32>
    %20 = vector.broadcast %2 : vector<1x128xf32> to vector<64x128xf32>
    %21 = arith.mulf %19, %20 : vector<64x128xf32>
    %22 = vector.broadcast %3 : vector<1x128xf32> to vector<64x128xf32>
    %23 = arith.addf %21, %22 : vector<64x128xf32>
    %24 = arith.truncf %23 : vector<64x128xf32> to vector<64x128xbf16>
    %c0_10 = arith.constant 0 : index
    %c0_11 = arith.constant 0 : index
    %25 = vector.load %arg4[%c0_10, %c0_11] : memref<128x384xbf16, #tpu.memory_space<vmem>>, vector<128x384xbf16>
    %cst_12 = arith.constant dense<0.000000e+00> : vector<64x384xf32>
    %26 = tpu.matmul %24, %25, %cst_12 {dimension_numbers = #tpu.dot_dimension_numbers<[1], [0], [0], [1], [0, 0, 1, 1], [], []>} : vector<64x128xbf16>, vector<128x384xbf16>, vector<64x384xf32> -> vector<64x384xf32>
    %c0_13 = arith.constant 0 : index
    %c0_14 = arith.constant 0 : index
    %27 = vector.load %arg5[%c0_13, %c0_14] : memref<128x128xbf16, #tpu.memory_space<vmem>>, vector<128x128xbf16>
    %cst_15 = arith.constant 1.000000e+00 : f32
    %28 = vector.broadcast %cst_15 : f32 to vector<64x32xf32>
    %cst_16 = arith.constant 0.000000e+00 : f32
    %29 = vector.broadcast %cst_16 : f32 to vector<64x128xf32>
    %30 = vector.extract_strided_slice %26 {offsets = [0, 0], sizes = [64, 32], strides = [1, 1]} : vector<64x384xf32> to vector<64x32xf32>
    %31 = vector.extract_strided_slice %26 {offsets = [0, 128], sizes = [64, 32], strides = [1, 1]} : vector<64x384xf32> to vector<64x32xf32>
    %32 = vector.extract_strided_slice %26 {offsets = [0, 256], sizes = [64, 32], strides = [1, 1]} : vector<64x384xf32> to vector<64x32xf32>
    %33 = arith.truncf %30 : vector<64x32xf32> to vector<64x32xbf16>
    %34 = arith.truncf %31 : vector<64x32xf32> to vector<64x32xbf16>
    %35 = arith.truncf %32 : vector<64x32xf32> to vector<64x32xbf16>
    %36 = arith.extf %33 : vector<64x32xbf16> to vector<64x32xf32>
    %37 = arith.extf %34 : vector<64x32xbf16> to vector<64x32xf32>
    %38 = arith.mulf %36, %36 : vector<64x32xf32>
    %cst_17 = arith.constant dense<0.000000e+00> : vector<64xf32>
    %39 = vector.multi_reduction <add>, %38, %cst_17 [1] : vector<64x32xf32> to vector<64xf32>
    %40 = vector.shape_cast %39 : vector<64xf32> to vector<64x1xf32>
    %41 = arith.mulf %37, %37 : vector<64x32xf32>
    %cst_18 = arith.constant dense<0.000000e+00> : vector<64x64xf32>
    %42 = tpu.matmul %28, %41, %cst_18 {dimension_numbers = #tpu.dot_dimension_numbers<[1], [1], [0], [0], [0, 0, 1, 0], [], []>} : vector<64x32xf32>, vector<64x32xf32>, vector<64x64xf32> -> vector<64x64xf32>
    %cst_19 = arith.constant dense<0.000000e+00> : vector<64x64xf32>
    %43 = tpu.matmul %33, %34, %cst_19 {dimension_numbers = #tpu.dot_dimension_numbers<[1], [1], [0], [0], [0, 0, 1, 0], [], []>} : vector<64x32xbf16>, vector<64x32xbf16>, vector<64x64xf32> -> vector<64x64xf32>
    %44 = vector.broadcast %40 : vector<64x1xf32> to vector<64x64xf32>
    %45 = arith.addf %44, %42 : vector<64x64xf32>
    %cst_20 = arith.constant 2.000000e+00 : f32
    %46 = vector.broadcast %cst_20 : f32 to vector<64x64xf32>
    %47 = arith.mulf %46, %43 : vector<64x64xf32>
    %48 = arith.subf %45, %47 : vector<64x64xf32>
    %cst_21 = arith.constant 0.000000e+00 : f32
    %49 = vector.broadcast %cst_21 : f32 to vector<64x64xf32>
    %50 = arith.maximumf %48, %49 : vector<64x64xf32>
    %51 = math.sqrt %50 : vector<64x64xf32>
    %cst_22 = arith.constant 0.0883883461 : f32
    %52 = vector.broadcast %cst_22 : f32 to vector<64x64xf32>
    %53 = arith.mulf %51, %52 : vector<64x64xf32>
    %cst_23 = arith.constant dense<0xFF800000> : vector<64xf32>
    %54 = vector.multi_reduction <maximumf>, %53, %cst_23 [1] : vector<64x64xf32> to vector<64xf32>
    %55 = vector.shape_cast %54 : vector<64xf32> to vector<64x1xf32>
    %56 = vector.broadcast %55 : vector<64x1xf32> to vector<64x64xf32>
    %57 = arith.subf %53, %56 : vector<64x64xf32>
    %58 = math.exp %57 : vector<64x64xf32>
    %cst_24 = arith.constant dense<0.000000e+00> : vector<64xf32>
    %59 = vector.multi_reduction <add>, %58, %cst_24 [1] : vector<64x64xf32> to vector<64xf32>
    %60 = vector.shape_cast %59 : vector<64xf32> to vector<64x1xf32>
    %61 = tpu.reciprocal %60 {approx = true} : vector<64x1xf32> -> vector<64x1xf32>
    %62 = vector.broadcast %61 : vector<64x1xf32> to vector<64x64xf32>
    %63 = arith.mulf %58, %62 : vector<64x64xf32>
    %64 = arith.truncf %63 : vector<64x64xf32> to vector<64x64xbf16>
    %cst_25 = arith.constant dense<0.000000e+00> : vector<64x32xf32>
    %65 = tpu.matmul %64, %35, %cst_25 {dimension_numbers = #tpu.dot_dimension_numbers<[1], [0], [0], [1], [0, 0, 1, 1], [], []>} : vector<64x64xbf16>, vector<64x32xbf16>, vector<64x32xf32> -> vector<64x32xf32>
    %66 = arith.truncf %65 : vector<64x32xf32> to vector<64x32xbf16>
    %67 = vector.extract_strided_slice %27 {offsets = [0, 0], sizes = [32, 128], strides = [1, 1]} : vector<128x128xbf16> to vector<32x128xbf16>
    %cst_26 = arith.constant dense<0.000000e+00> : vector<64x128xf32>
    %68 = tpu.matmul %66, %67, %cst_26 {dimension_numbers = #tpu.dot_dimension_numbers<[1], [0], [0], [1], [0, 0, 1, 1], [], []>} : vector<64x32xbf16>, vector<32x128xbf16>, vector<64x128xf32> -> vector<64x128xf32>
    %69 = arith.addf %29, %68 : vector<64x128xf32>
    %70 = vector.extract_strided_slice %26 {offsets = [0, 32], sizes = [64, 32], strides = [1, 1]} : vector<64x384xf32> to vector<64x32xf32>
    %71 = vector.extract_strided_slice %26 {offsets = [0, 160], sizes = [64, 32], strides = [1, 1]} : vector<64x384xf32> to vector<64x32xf32>
    %72 = vector.extract_strided_slice %26 {offsets = [0, 288], sizes = [64, 32], strides = [1, 1]} : vector<64x384xf32> to vector<64x32xf32>
    %73 = arith.truncf %70 : vector<64x32xf32> to vector<64x32xbf16>
    %74 = arith.truncf %71 : vector<64x32xf32> to vector<64x32xbf16>
    %75 = arith.truncf %72 : vector<64x32xf32> to vector<64x32xbf16>
    %76 = arith.extf %73 : vector<64x32xbf16> to vector<64x32xf32>
    %77 = arith.extf %74 : vector<64x32xbf16> to vector<64x32xf32>
    %78 = arith.mulf %76, %76 : vector<64x32xf32>
    %cst_27 = arith.constant dense<0.000000e+00> : vector<64xf32>
    %79 = vector.multi_reduction <add>, %78, %cst_27 [1] : vector<64x32xf32> to vector<64xf32>
    %80 = vector.shape_cast %79 : vector<64xf32> to vector<64x1xf32>
    %81 = arith.mulf %77, %77 : vector<64x32xf32>
    %cst_28 = arith.constant dense<0.000000e+00> : vector<64x64xf32>
    %82 = tpu.matmul %28, %81, %cst_28 {dimension_numbers = #tpu.dot_dimension_numbers<[1], [1], [0], [0], [0, 0, 1, 0], [], []>} : vector<64x32xf32>, vector<64x32xf32>, vector<64x64xf32> -> vector<64x64xf32>
    %cst_29 = arith.constant dense<0.000000e+00> : vector<64x64xf32>
    %83 = tpu.matmul %73, %74, %cst_29 {dimension_numbers = #tpu.dot_dimension_numbers<[1], [1], [0], [0], [0, 0, 1, 0], [], []>} : vector<64x32xbf16>, vector<64x32xbf16>, vector<64x64xf32> -> vector<64x64xf32>
    %84 = vector.broadcast %80 : vector<64x1xf32> to vector<64x64xf32>
    %85 = arith.addf %84, %82 : vector<64x64xf32>
    %cst_30 = arith.constant 2.000000e+00 : f32
    %86 = vector.broadcast %cst_30 : f32 to vector<64x64xf32>
    %87 = arith.mulf %86, %83 : vector<64x64xf32>
    %88 = arith.subf %85, %87 : vector<64x64xf32>
    %cst_31 = arith.constant 0.000000e+00 : f32
    %89 = vector.broadcast %cst_31 : f32 to vector<64x64xf32>
    %90 = arith.maximumf %88, %89 : vector<64x64xf32>
    %91 = math.sqrt %90 : vector<64x64xf32>
    %cst_32 = arith.constant 0.0883883461 : f32
    %92 = vector.broadcast %cst_32 : f32 to vector<64x64xf32>
    %93 = arith.mulf %91, %92 : vector<64x64xf32>
    %cst_33 = arith.constant dense<0xFF800000> : vector<64xf32>
    %94 = vector.multi_reduction <maximumf>, %93, %cst_33 [1] : vector<64x64xf32> to vector<64xf32>
    %95 = vector.shape_cast %94 : vector<64xf32> to vector<64x1xf32>
    %96 = vector.broadcast %95 : vector<64x1xf32> to vector<64x64xf32>
    %97 = arith.subf %93, %96 : vector<64x64xf32>
    %98 = math.exp %97 : vector<64x64xf32>
    %cst_34 = arith.constant dense<0.000000e+00> : vector<64xf32>
    %99 = vector.multi_reduction <add>, %98, %cst_34 [1] : vector<64x64xf32> to vector<64xf32>
    %100 = vector.shape_cast %99 : vector<64xf32> to vector<64x1xf32>
    %101 = tpu.reciprocal %100 {approx = true} : vector<64x1xf32> -> vector<64x1xf32>
    %102 = vector.broadcast %101 : vector<64x1xf32> to vector<64x64xf32>
    %103 = arith.mulf %98, %102 : vector<64x64xf32>
    %104 = arith.truncf %103 : vector<64x64xf32> to vector<64x64xbf16>
    %cst_35 = arith.constant dense<0.000000e+00> : vector<64x32xf32>
    %105 = tpu.matmul %104, %75, %cst_35 {dimension_numbers = #tpu.dot_dimension_numbers<[1], [0], [0], [1], [0, 0, 1, 1], [], []>} : vector<64x64xbf16>, vector<64x32xbf16>, vector<64x32xf32> -> vector<64x32xf32>
    %106 = arith.truncf %105 : vector<64x32xf32> to vector<64x32xbf16>
    %107 = vector.extract_strided_slice %27 {offsets = [32, 0], sizes = [32, 128], strides = [1, 1]} : vector<128x128xbf16> to vector<32x128xbf16>
    %cst_36 = arith.constant dense<0.000000e+00> : vector<64x128xf32>
    %108 = tpu.matmul %106, %107, %cst_36 {dimension_numbers = #tpu.dot_dimension_numbers<[1], [0], [0], [1], [0, 0, 1, 1], [], []>} : vector<64x32xbf16>, vector<32x128xbf16>, vector<64x128xf32> -> vector<64x128xf32>
    %109 = arith.addf %69, %108 : vector<64x128xf32>
    %110 = vector.extract_strided_slice %26 {offsets = [0, 64], sizes = [64, 32], strides = [1, 1]} : vector<64x384xf32> to vector<64x32xf32>
    %111 = vector.extract_strided_slice %26 {offsets = [0, 192], sizes = [64, 32], strides = [1, 1]} : vector<64x384xf32> to vector<64x32xf32>
    %112 = vector.extract_strided_slice %26 {offsets = [0, 320], sizes = [64, 32], strides = [1, 1]} : vector<64x384xf32> to vector<64x32xf32>
    %113 = arith.truncf %110 : vector<64x32xf32> to vector<64x32xbf16>
    %114 = arith.truncf %111 : vector<64x32xf32> to vector<64x32xbf16>
    %115 = arith.truncf %112 : vector<64x32xf32> to vector<64x32xbf16>
    %116 = arith.extf %113 : vector<64x32xbf16> to vector<64x32xf32>
    %117 = arith.extf %114 : vector<64x32xbf16> to vector<64x32xf32>
    %118 = arith.mulf %116, %116 : vector<64x32xf32>
    %cst_37 = arith.constant dense<0.000000e+00> : vector<64xf32>
    %119 = vector.multi_reduction <add>, %118, %cst_37 [1] : vector<64x32xf32> to vector<64xf32>
    %120 = vector.shape_cast %119 : vector<64xf32> to vector<64x1xf32>
    %121 = arith.mulf %117, %117 : vector<64x32xf32>
    %cst_38 = arith.constant dense<0.000000e+00> : vector<64x64xf32>
    %122 = tpu.matmul %28, %121, %cst_38 {dimension_numbers = #tpu.dot_dimension_numbers<[1], [1], [0], [0], [0, 0, 1, 0], [], []>} : vector<64x32xf32>, vector<64x32xf32>, vector<64x64xf32> -> vector<64x64xf32>
    %cst_39 = arith.constant dense<0.000000e+00> : vector<64x64xf32>
    %123 = tpu.matmul %113, %114, %cst_39 {dimension_numbers = #tpu.dot_dimension_numbers<[1], [1], [0], [0], [0, 0, 1, 0], [], []>} : vector<64x32xbf16>, vector<64x32xbf16>, vector<64x64xf32> -> vector<64x64xf32>
    %124 = vector.broadcast %120 : vector<64x1xf32> to vector<64x64xf32>
    %125 = arith.addf %124, %122 : vector<64x64xf32>
    %cst_40 = arith.constant 2.000000e+00 : f32
    %126 = vector.broadcast %cst_40 : f32 to vector<64x64xf32>
    %127 = arith.mulf %126, %123 : vector<64x64xf32>
    %128 = arith.subf %125, %127 : vector<64x64xf32>
    %cst_41 = arith.constant 0.000000e+00 : f32
    %129 = vector.broadcast %cst_41 : f32 to vector<64x64xf32>
    %130 = arith.maximumf %128, %129 : vector<64x64xf32>
    %131 = math.sqrt %130 : vector<64x64xf32>
    %cst_42 = arith.constant 0.0883883461 : f32
    %132 = vector.broadcast %cst_42 : f32 to vector<64x64xf32>
    %133 = arith.mulf %131, %132 : vector<64x64xf32>
    %cst_43 = arith.constant dense<0xFF800000> : vector<64xf32>
    %134 = vector.multi_reduction <maximumf>, %133, %cst_43 [1] : vector<64x64xf32> to vector<64xf32>
    %135 = vector.shape_cast %134 : vector<64xf32> to vector<64x1xf32>
    %136 = vector.broadcast %135 : vector<64x1xf32> to vector<64x64xf32>
    %137 = arith.subf %133, %136 : vector<64x64xf32>
    %138 = math.exp %137 : vector<64x64xf32>
    %cst_44 = arith.constant dense<0.000000e+00> : vector<64xf32>
    %139 = vector.multi_reduction <add>, %138, %cst_44 [1] : vector<64x64xf32> to vector<64xf32>
    %140 = vector.shape_cast %139 : vector<64xf32> to vector<64x1xf32>
    %141 = tpu.reciprocal %140 {approx = true} : vector<64x1xf32> -> vector<64x1xf32>
    %142 = vector.broadcast %141 : vector<64x1xf32> to vector<64x64xf32>
    %143 = arith.mulf %138, %142 : vector<64x64xf32>
    %144 = arith.truncf %143 : vector<64x64xf32> to vector<64x64xbf16>
    %cst_45 = arith.constant dense<0.000000e+00> : vector<64x32xf32>
    %145 = tpu.matmul %144, %115, %cst_45 {dimension_numbers = #tpu.dot_dimension_numbers<[1], [0], [0], [1], [0, 0, 1, 1], [], []>} : vector<64x64xbf16>, vector<64x32xbf16>, vector<64x32xf32> -> vector<64x32xf32>
    %146 = arith.truncf %145 : vector<64x32xf32> to vector<64x32xbf16>
    %147 = vector.extract_strided_slice %27 {offsets = [64, 0], sizes = [32, 128], strides = [1, 1]} : vector<128x128xbf16> to vector<32x128xbf16>
    %cst_46 = arith.constant dense<0.000000e+00> : vector<64x128xf32>
    %148 = tpu.matmul %146, %147, %cst_46 {dimension_numbers = #tpu.dot_dimension_numbers<[1], [0], [0], [1], [0, 0, 1, 1], [], []>} : vector<64x32xbf16>, vector<32x128xbf16>, vector<64x128xf32> -> vector<64x128xf32>
    %149 = arith.addf %109, %148 : vector<64x128xf32>
    %150 = vector.extract_strided_slice %26 {offsets = [0, 96], sizes = [64, 32], strides = [1, 1]} : vector<64x384xf32> to vector<64x32xf32>
    %151 = vector.extract_strided_slice %26 {offsets = [0, 224], sizes = [64, 32], strides = [1, 1]} : vector<64x384xf32> to vector<64x32xf32>
    %152 = vector.extract_strided_slice %26 {offsets = [0, 352], sizes = [64, 32], strides = [1, 1]} : vector<64x384xf32> to vector<64x32xf32>
    %153 = arith.truncf %150 : vector<64x32xf32> to vector<64x32xbf16>
    %154 = arith.truncf %151 : vector<64x32xf32> to vector<64x32xbf16>
    %155 = arith.truncf %152 : vector<64x32xf32> to vector<64x32xbf16>
    %156 = arith.extf %153 : vector<64x32xbf16> to vector<64x32xf32>
    %157 = arith.extf %154 : vector<64x32xbf16> to vector<64x32xf32>
    %158 = arith.mulf %156, %156 : vector<64x32xf32>
    %cst_47 = arith.constant dense<0.000000e+00> : vector<64xf32>
    %159 = vector.multi_reduction <add>, %158, %cst_47 [1] : vector<64x32xf32> to vector<64xf32>
    %160 = vector.shape_cast %159 : vector<64xf32> to vector<64x1xf32>
    %161 = arith.mulf %157, %157 : vector<64x32xf32>
    %cst_48 = arith.constant dense<0.000000e+00> : vector<64x64xf32>
    %162 = tpu.matmul %28, %161, %cst_48 {dimension_numbers = #tpu.dot_dimension_numbers<[1], [1], [0], [0], [0, 0, 1, 0], [], []>} : vector<64x32xf32>, vector<64x32xf32>, vector<64x64xf32> -> vector<64x64xf32>
    %cst_49 = arith.constant dense<0.000000e+00> : vector<64x64xf32>
    %163 = tpu.matmul %153, %154, %cst_49 {dimension_numbers = #tpu.dot_dimension_numbers<[1], [1], [0], [0], [0, 0, 1, 0], [], []>} : vector<64x32xbf16>, vector<64x32xbf16>, vector<64x64xf32> -> vector<64x64xf32>
    %164 = vector.broadcast %160 : vector<64x1xf32> to vector<64x64xf32>
    %165 = arith.addf %164, %162 : vector<64x64xf32>
    %cst_50 = arith.constant 2.000000e+00 : f32
    %166 = vector.broadcast %cst_50 : f32 to vector<64x64xf32>
    %167 = arith.mulf %166, %163 : vector<64x64xf32>
    %168 = arith.subf %165, %167 : vector<64x64xf32>
    %cst_51 = arith.constant 0.000000e+00 : f32
    %169 = vector.broadcast %cst_51 : f32 to vector<64x64xf32>
    %170 = arith.maximumf %168, %169 : vector<64x64xf32>
    %171 = math.sqrt %170 : vector<64x64xf32>
    %cst_52 = arith.constant 0.0883883461 : f32
    %172 = vector.broadcast %cst_52 : f32 to vector<64x64xf32>
    %173 = arith.mulf %171, %172 : vector<64x64xf32>
    %cst_53 = arith.constant dense<0xFF800000> : vector<64xf32>
    %174 = vector.multi_reduction <maximumf>, %173, %cst_53 [1] : vector<64x64xf32> to vector<64xf32>
    %175 = vector.shape_cast %174 : vector<64xf32> to vector<64x1xf32>
    %176 = vector.broadcast %175 : vector<64x1xf32> to vector<64x64xf32>
    %177 = arith.subf %173, %176 : vector<64x64xf32>
    %178 = math.exp %177 : vector<64x64xf32>
    %cst_54 = arith.constant dense<0.000000e+00> : vector<64xf32>
    %179 = vector.multi_reduction <add>, %178, %cst_54 [1] : vector<64x64xf32> to vector<64xf32>
    %180 = vector.shape_cast %179 : vector<64xf32> to vector<64x1xf32>
    %181 = tpu.reciprocal %180 {approx = true} : vector<64x1xf32> -> vector<64x1xf32>
    %182 = vector.broadcast %181 : vector<64x1xf32> to vector<64x64xf32>
    %183 = arith.mulf %178, %182 : vector<64x64xf32>
    %184 = arith.truncf %183 : vector<64x64xf32> to vector<64x64xbf16>
    %cst_55 = arith.constant dense<0.000000e+00> : vector<64x32xf32>
    %185 = tpu.matmul %184, %155, %cst_55 {dimension_numbers = #tpu.dot_dimension_numbers<[1], [0], [0], [1], [0, 0, 1, 1], [], []>} : vector<64x64xbf16>, vector<64x32xbf16>, vector<64x32xf32> -> vector<64x32xf32>
    %186 = arith.truncf %185 : vector<64x32xf32> to vector<64x32xbf16>
    %187 = vector.extract_strided_slice %27 {offsets = [96, 0], sizes = [32, 128], strides = [1, 1]} : vector<128x128xbf16> to vector<32x128xbf16>
    %cst_56 = arith.constant dense<0.000000e+00> : vector<64x128xf32>
    %188 = tpu.matmul %186, %187, %cst_56 {dimension_numbers = #tpu.dot_dimension_numbers<[1], [0], [0], [1], [0, 0, 1, 1], [], []>} : vector<64x32xbf16>, vector<32x128xbf16>, vector<64x128xf32> -> vector<64x128xf32>
    %189 = arith.addf %149, %188 : vector<64x128xf32>
    %c0_57 = arith.constant 0 : index
    %c0_58 = arith.constant 0 : index
    %190 = vector.load %arg6[%c0_57, %c0_58] : memref<1x128xf32, #tpu.memory_space<vmem>>, vector<1x128xf32>
    %191 = vector.broadcast %190 : vector<1x128xf32> to vector<64x128xf32>
    %192 = arith.addf %189, %191 : vector<64x128xf32>
    %193 = arith.addf %1, %192 : vector<64x128xf32>
    %c0_59 = arith.constant 0 : index
    %c0_60 = arith.constant 0 : index
    %194 = vector.load %arg7[%c0_59, %c0_60] : memref<1x128xf32, #tpu.memory_space<vmem>>, vector<1x128xf32>
    %c0_61 = arith.constant 0 : index
    %c0_62 = arith.constant 0 : index
    %195 = vector.load %arg8[%c0_61, %c0_62] : memref<1x128xf32, #tpu.memory_space<vmem>>, vector<1x128xf32>
    %cst_63 = arith.constant dense<0.000000e+00> : vector<64xf32>
    %196 = vector.multi_reduction <add>, %193, %cst_63 [1] : vector<64x128xf32> to vector<64xf32>
    %197 = vector.shape_cast %196 : vector<64xf32> to vector<64x1xf32>
    %cst_64 = arith.constant 1.280000e+02 : f32
    %198 = vector.broadcast %cst_64 : f32 to vector<64x1xf32>
    %199 = arith.divf %197, %198 : vector<64x1xf32>
    %200 = vector.broadcast %199 : vector<64x1xf32> to vector<64x128xf32>
    %201 = arith.subf %193, %200 : vector<64x128xf32>
    %202 = arith.mulf %201, %201 : vector<64x128xf32>
    %cst_65 = arith.constant dense<0.000000e+00> : vector<64xf32>
    %203 = vector.multi_reduction <add>, %202, %cst_65 [1] : vector<64x128xf32> to vector<64xf32>
    %204 = vector.shape_cast %203 : vector<64xf32> to vector<64x1xf32>
    %cst_66 = arith.constant 1.280000e+02 : f32
    %205 = vector.broadcast %cst_66 : f32 to vector<64x1xf32>
    %206 = arith.divf %204, %205 : vector<64x1xf32>
    %cst_67 = arith.constant 9.99999974E-6 : f32
    %207 = vector.broadcast %cst_67 : f32 to vector<64x1xf32>
    %208 = arith.addf %206, %207 : vector<64x1xf32>
    %209 = math.rsqrt %208 : vector<64x1xf32>
    %210 = vector.broadcast %209 : vector<64x1xf32> to vector<64x128xf32>
    %211 = arith.mulf %201, %210 : vector<64x128xf32>
    %212 = vector.broadcast %194 : vector<1x128xf32> to vector<64x128xf32>
    %213 = arith.mulf %211, %212 : vector<64x128xf32>
    %214 = vector.broadcast %195 : vector<1x128xf32> to vector<64x128xf32>
    %215 = arith.addf %213, %214 : vector<64x128xf32>
    %216 = arith.truncf %215 : vector<64x128xf32> to vector<64x128xbf16>
    %c0_68 = arith.constant 0 : index
    %c0_69 = arith.constant 0 : index
    %217 = vector.load %arg9[%c0_68, %c0_69] : memref<128x512xbf16, #tpu.memory_space<vmem>>, vector<128x512xbf16>
    %cst_70 = arith.constant dense<0.000000e+00> : vector<64x512xf32>
    %218 = tpu.matmul %216, %217, %cst_70 {dimension_numbers = #tpu.dot_dimension_numbers<[1], [0], [0], [1], [0, 0, 1, 1], [], []>} : vector<64x128xbf16>, vector<128x512xbf16>, vector<64x512xf32> -> vector<64x512xf32>
    %c0_71 = arith.constant 0 : index
    %c0_72 = arith.constant 0 : index
    %219 = vector.load %arg10[%c0_71, %c0_72] : memref<1x512xf32, #tpu.memory_space<vmem>>, vector<1x512xf32>
    %220 = vector.broadcast %219 : vector<1x512xf32> to vector<64x512xf32>
    %221 = arith.addf %218, %220 : vector<64x512xf32>
    %cst_73 = arith.constant 5.000000e-01 : f32
    %222 = vector.broadcast %cst_73 : f32 to vector<64x512xf32>
    %223 = arith.mulf %222, %221 : vector<64x512xf32>
    %cst_74 = arith.constant 4.471500e-02 : f32
    %224 = vector.broadcast %cst_74 : f32 to vector<64x512xf32>
    %225 = arith.mulf %224, %221 : vector<64x512xf32>
    %226 = arith.mulf %225, %221 : vector<64x512xf32>
    %227 = arith.mulf %226, %221 : vector<64x512xf32>
    %228 = arith.addf %221, %227 : vector<64x512xf32>
    %cst_75 = arith.constant 0.797884583 : f32
    %229 = vector.broadcast %cst_75 : f32 to vector<64x512xf32>
    %230 = arith.mulf %229, %228 : vector<64x512xf32>
    %231 = math.tanh %230 : vector<64x512xf32>
    %cst_76 = arith.constant 1.000000e+00 : f32
    %232 = vector.broadcast %cst_76 : f32 to vector<64x512xf32>
    %233 = arith.addf %232, %231 : vector<64x512xf32>
    %234 = arith.mulf %223, %233 : vector<64x512xf32>
    %235 = arith.truncf %234 : vector<64x512xf32> to vector<64x512xbf16>
    %c0_77 = arith.constant 0 : index
    %c0_78 = arith.constant 0 : index
    %236 = vector.load %arg11[%c0_77, %c0_78] : memref<512x128xbf16, #tpu.memory_space<vmem>>, vector<512x128xbf16>
    %cst_79 = arith.constant dense<0.000000e+00> : vector<64x128xf32>
    %237 = tpu.matmul %235, %236, %cst_79 {dimension_numbers = #tpu.dot_dimension_numbers<[1], [0], [0], [1], [0, 0, 1, 1], [], []>} : vector<64x512xbf16>, vector<512x128xbf16>, vector<64x128xf32> -> vector<64x128xf32>
    %c0_80 = arith.constant 0 : index
    %c0_81 = arith.constant 0 : index
    %238 = vector.load %arg12[%c0_80, %c0_81] : memref<1x128xf32, #tpu.memory_space<vmem>>, vector<1x128xf32>
    %239 = vector.broadcast %238 : vector<1x128xf32> to vector<64x128xf32>
    %240 = arith.addf %237, %239 : vector<64x128xf32>
    %241 = arith.addf %193, %240 : vector<64x128xf32>
    %c0_82 = arith.constant 0 : index
    %c0_83 = arith.constant 0 : index
    %c0_84 = arith.constant 0 : index
    %242 = vector.load %arg13[%c0_82, %c0_83, %c0_84] : memref<1x64x128xf32, #tpu.memory_space<vmem>>, vector<1x64x128xf32>
    %243 = vector.shape_cast %242 : vector<1x64x128xf32> to vector<64x128xf32>
    %244 = vector.shape_cast %241 : vector<64x128xf32> to vector<1x64x128xf32>
    tpu.vector_store %arg13[%c0_82, %c0_83, %c0_84], %244 {strides = array<i32>} : memref<1x64x128xf32, #tpu.memory_space<vmem>>, vector<1x64x128xf32>,
    return
  }
  func.func @transform_0(%arg0: i32) -> (i32, i32, i32) {
    %c0_i32 = arith.constant 0 : i32
    %c0_i32_0 = arith.constant 0 : i32
    %c0_i32_1 = arith.constant 0 : i32
    return %arg0, %c0_i32, %c0_i32_0 : i32, i32, i32
  }
  func.func @transform_1(%arg0: i32) -> (i32, i32) {
    %c0_i32 = arith.constant 0 : i32
    %c0_i32_0 = arith.constant 0 : i32
    %c0_i32_1 = arith.constant 0 : i32
    return %c0_i32, %c0_i32_0 : i32, i32
  }
  func.func @transform_2(%arg0: i32) -> (i32, i32) {
    %c0_i32 = arith.constant 0 : i32
    %c0_i32_0 = arith.constant 0 : i32
    %c0_i32_1 = arith.constant 0 : i32
    return %c0_i32, %c0_i32_0 : i32, i32
  }
  func.func @transform_3(%arg0: i32) -> (i32, i32) {
    %c0_i32 = arith.constant 0 : i32
    %c0_i32_0 = arith.constant 0 : i32
    %c0_i32_1 = arith.constant 0 : i32
    return %c0_i32, %c0_i32_0 : i32, i32
  }
  func.func @transform_4(%arg0: i32) -> (i32, i32) {
    %c0_i32 = arith.constant 0 : i32
    %c0_i32_0 = arith.constant 0 : i32
    %c0_i32_1 = arith.constant 0 : i32
    return %c0_i32, %c0_i32_0 : i32, i32
  }
  func.func @transform_5(%arg0: i32) -> (i32, i32) {
    %c0_i32 = arith.constant 0 : i32
    %c0_i32_0 = arith.constant 0 : i32
    %c0_i32_1 = arith.constant 0 : i32
    return %c0_i32, %c0_i32_0 : i32, i32
  }
  func.func @transform_6(%arg0: i32) -> (i32, i32) {
    %c0_i32 = arith.constant 0 : i32
    %c0_i32_0 = arith.constant 0 : i32
    %c0_i32_1 = arith.constant 0 : i32
    return %c0_i32, %c0_i32_0 : i32, i32
  }
  func.func @transform_7(%arg0: i32) -> (i32, i32) {
    %c0_i32 = arith.constant 0 : i32
    %c0_i32_0 = arith.constant 0 : i32
    %c0_i32_1 = arith.constant 0 : i32
    return %c0_i32, %c0_i32_0 : i32, i32
  }
  func.func @transform_8(%arg0: i32) -> (i32, i32) {
    %c0_i32 = arith.constant 0 : i32
    %c0_i32_0 = arith.constant 0 : i32
    %c0_i32_1 = arith.constant 0 : i32
    return %c0_i32, %c0_i32_0 : i32, i32
  }
  func.func @transform_9(%arg0: i32) -> (i32, i32) {
    %c0_i32 = arith.constant 0 : i32
    %c0_i32_0 = arith.constant 0 : i32
    %c0_i32_1 = arith.constant 0 : i32
    return %c0_i32, %c0_i32_0 : i32, i32
  }
  func.func @transform_10(%arg0: i32) -> (i32, i32) {
    %c0_i32 = arith.constant 0 : i32
    %c0_i32_0 = arith.constant 0 : i32
    %c0_i32_1 = arith.constant 0 : i32
    return %c0_i32, %c0_i32_0 : i32, i32
  }
  func.func @transform_11(%arg0: i32) -> (i32, i32) {
    %c0_i32 = arith.constant 0 : i32
    %c0_i32_0 = arith.constant 0 : i32
    %c0_i32_1 = arith.constant 0 : i32
    return %c0_i32, %c0_i32_0 : i32, i32
  }
  func.func @transform_12(%arg0: i32) -> (i32, i32, i32) {
    %c0_i32 = arith.constant 0 : i32
    %c0_i32_0 = arith.constant 0 : i32
    %c0_i32_1 = arith.constant 0 : i32
    return %arg0, %c0_i32, %c0_i32_0 : i32, i32, i32
  }
}

</mosaic_0001>

<llo_original>
// kernel: custom-call
$region0: #{custom-call}
  %s0 = inlined_call_operand.vmem [shape: f32[384], index: 0, kind: output, shape index: {}]

// kernel: dencoder_block_forward.1
$region0: #{dencoder_block_forward.1}
  #allocation0 [shape = 'u32[]', space=smem, size = 0x4, offset = 0x4, fixed_abs, tag = 'smem constant byte address 0x4 - core index']
  #allocation1 [shape = 'u32[72,128]{1,0:T(1,128)}', space=vmem, size = 0x9000, scoped, tag = 'internal scratch']
  %s0 = inlined_call_operand.hbm [shape: f32[2,64,128], index: 0, kind: input, shape index: {}]
  %s1 = inlined_call_operand.vmem [shape: f32[1,128], index: 1, kind: input, shape index: {}]
  %s2 = inlined_call_operand.vmem [shape: f32[1,128], index: 2, kind: input, shape index: {}]
  %s3 = inlined_call_operand.vmem [shape: bf16[128,384], index: 3, kind: input, shape index: {}]
  %s4 = inlined_call_operand.vmem [shape: bf16[128,128], index: 4, kind: input, shape index: {}]
  %s5 = inlined_call_operand.vmem [shape: f32[1,128], index: 5, kind: input, shape index: {}]
  %s6 = inlined_call_operand.vmem [shape: f32[1,128], index: 6, kind: input, shape index: {}]
  %s7 = inlined_call_operand.vmem [shape: f32[1,128], index: 7, kind: input, shape index: {}]
  %s8 = inlined_call_operand.vmem [shape: bf16[128,512], index: 8, kind: input, shape index: {}]
  %s9 = inlined_call_operand.vmem [shape: f32[1,512], index: 9, kind: input, shape index: {}]
  %s10 = inlined_call_operand.vmem [shape: bf16[512,128], index: 10, kind: input, shape index: {}]
  %s11 = inlined_call_operand.vmem [shape: f32[1,128], index: 11, kind: input, shape index: {}]
  %s12 = inlined_call_operand.hbm [shape: f32[2,64,128], index: 12, kind: output, shape index: {}]
  %s13 = sld [smem:[#allocation0]]
  $region85: #{dencoder_block_forward.1} parent=0
    _
  %s15 = ssub.s32 1, %s13
  %s16 = scalar_select 0, %s15, %s13
  $region1: #{dencoder_block_forward.1} parent=0
    #allocation2 [shape = 'u8[65536]{0}', space=vmem, size = 0x10000, scoped, tag = 'input window, operand 0']
    #allocation3 [shape = 's32[2]{0}', space=sflag, size = 0x8, scoped, tag = 'scoped memory for dencoder_block_forward.1']
    #allocation4 [shape = 's32[2]{0}', space=sflag, size = 0x8, scoped, tag = 'scoped memory for dencoder_block_forward.1']
    #allocation5 [shape = 'u8[65536]{0}', space=vmem, size = 0x10000, scoped, tag = 'output window, operand 0']
    %17 = vsyncpa [#allocation3], 0
    %s18 = scalar_lea.sflag [#allocation3], 1
    %19 = vsyncpa %s18, 0
    %20 = vsyncpa [#allocation4], 0
    %s21 = scalar_lea.sflag [#allocation4], 1
    %22 = vsyncpa %s21, 0
    loop: start=0, step=1, limit=4
    $region2: #{dencoder_block_forward.1} parent=1 // loop_pre_header
      _
    $region3: #{dencoder_block_forward.1} parent=1 // loop_header
      %s24 = sphi 0, %s28
      %p25 = scmp.ge.s32.totalorder %s24, 4
      %s34 = sphi 0, %s36
      %s37 = sphi 0, %s34
      %s38 = sphi 0, %s37
      %s54 = sphi 0, %s38
      %s58 = sphi 0, %s58
      %s60 = sphi 0, %s58
      %s61 = sphi 0, %s60
      %s75 = sphi 0, %s61
      %s79 = sphi 0, %s79
      %s81 = sphi 0, %s79
      %s82 = sphi 0, %s81
      %s96 = sphi 0, %s82
      %s100 = sphi 0, %s100
      %s102 = sphi 0, %s100
      %s103 = sphi 0, %s102
      %s117 = sphi 0, %s103
      %s121 = sphi 0, %s121
      %s123 = sphi 0, %s121
      %s124 = sphi 0, %s123
      %s138 = sphi 0, %s124
      %s142 = sphi 0, %s142
      %s144 = sphi 0, %s142
      %s145 = sphi 0, %s144
      %s159 = sphi 0, %s145
      %s163 = sphi 0, %s163
      %s165 = sphi 0, %s163
      %s166 = sphi 0, %s165
      %s180 = sphi 0, %s166
      %s184 = sphi 0, %s184
      %s186 = sphi 0, %s184
      %s187 = sphi 0, %s186
      %s201 = sphi 0, %s187
      %s205 = sphi 0, %s205
      %s207 = sphi 0, %s205
      %s208 = sphi 0, %s207
      %s222 = sphi 0, %s208
      %s226 = sphi 0, %s226
      %s228 = sphi 0, %s226
      %s229 = sphi 0, %s228
      %s243 = sphi 0, %s229
      %s247 = sphi 0, %s247
      %s249 = sphi 0, %s247
      %s250 = sphi 0, %s249
      %s264 = sphi 0, %s250
      %s268 = sphi 0, %s268
      %s270 = sphi 0, %s268
      %s271 = sphi 0, %s270
      %s285 = sphi 0, %s271
      %s291 = sphi 0, %s293
      %s294 = sphi 0, %s291
      %s295 = sphi 0, %s294
      %s311 = sphi 0, %s295
    $region4: #{dencoder_block_forward.1} parent=1 // loop_header_branch
      %27 = sbr.rel (%p25) target = $region8
    $region5: #{dencoder_block_forward.1} parent=1 // loop_body
      %s29 = ssub.s32 %s24, 1
      %s30 = ssub.s32 %s24, 2
      %s31 = sadd.s32 %s24, 1
      %s32 = ssub.s32 %s24, %s31
      %p33 = scmp.eq.s32.totalorder %s32, 0
      %s35 = sadd.s32 %s34, 1
      %s36 = scalar_select %p33, %s34, %s35
      %p39 = pneg %p33
      %p40 = scmp.eq.s32.totalorder %s24, 1
      %p41 = por %p39, %p40
      %p42 = scmp.ne.s32.totalorder %s34, %s37
      %p43 = scmp.eq.s32.totalorder %s24, 0
      %p44 = por %p42, %p43
      %p45 = scmp.ne.s32.totalorder %s34, %s37
      %p46 = scmp.eq.s32.totalorder %s29, 1
      %p47 = por %p45, %p46
      %p48 = scmp.ne.s32.totalorder %s37, %s38
      %p49 = scmp.eq.s32.totalorder %s29, 0
      %p50 = por %p48, %p49
      %p51 = scmp.ne.s32.totalorder %s37, %s38
      %p52 = scmp.eq.s32.totalorder %s30, 1
      %p53 = por %p51, %p52
      %p55 = scmp.ne.s32.totalorder %s38, %s54
      %p56 = scmp.eq.s32.totalorder %s30, 0
      %p57 = por %p55, %p56
      %s59 = sadd.s32 %s58, 1
      %p62 = scmp.eq.s32.totalorder %s24, 1
      %p63 = scmp.ne.s32.totalorder %s58, %s60
      %p64 = scmp.eq.s32.totalorder %s24, 0
      %p65 = por %p63, %p64
      %p66 = scmp.ne.s32.totalorder %s58, %s60
      %p67 = scmp.eq.s32.totalorder %s29, 1
      %p68 = por %p66, %p67
      %p69 = scmp.ne.s32.totalorder %s60, %s61
      %p70 = scmp.eq.s32.totalorder %s29, 0
      %p71 = por %p69, %p70
      %p72 = scmp.ne.s32.totalorder %s60, %s61
      %p73 = scmp.eq.s32.totalorder %s30, 1
      %p74 = por %p72, %p73
      %p76 = scmp.ne.s32.totalorder %s61, %s75
      %p77 = scmp.eq.s32.totalorder %s30, 0
      %p78 = por %p76, %p77
      %s80 = sadd.s32 %s79, 1
      %p83 = scmp.eq.s32.totalorder %s24, 1
      %p84 = scmp.ne.s32.totalorder %s79, %s81
      %p85 = scmp.eq.s32.totalorder %s24, 0
      %p86 = por %p84, %p85
      %p87 = scmp.ne.s32.totalorder %s79, %s81
      %p88 = scmp.eq.s32.totalorder %s29, 1
      %p89 = por %p87, %p88
      %p90 = scmp.ne.s32.totalorder %s81, %s82
      %p91 = scmp.eq.s32.totalorder %s29, 0
      %p92 = por %p90, %p91
      %p93 = scmp.ne.s32.totalorder %s81, %s82
      %p94 = scmp.eq.s32.totalorder %s30, 1
      %p95 = por %p93, %p94
      %p97 = scmp.ne.s32.totalorder %s82, %s96
      %p98 = scmp.eq.s32.totalorder %s30, 0
      %p99 = por %p97, %p98
      %s101 = sadd.s32 %s100, 1
      %p104 = scmp.eq.s32.totalorder %s24, 1
      %p105 = scmp.ne.s32.totalorder %s100, %s102
      %p106 = scmp.eq.s32.totalorder %s24, 0
      %p107 = por %p105, %p106
      %p108 = scmp.ne.s32.totalorder %s100, %s102
      %p109 = scmp.eq.s32.totalorder %s29, 1
      %p110 = por %p108, %p109
      %p111 = scmp.ne.s32.totalorder %s102, %s103
      %p112 = scmp.eq.s32.totalorder %s29, 0
      %p113 = por %p111, %p112
      %p114 = scmp.ne.s32.totalorder %s102, %s103
      %p115 = scmp.eq.s32.totalorder %s30, 1
      %p116 = por %p114, %p115
      %p118 = scmp.ne.s32.totalorder %s103, %s117
      %p119 = scmp.eq.s32.totalorder %s30, 0
      %p120 = por %p118, %p119
      %s122 = sadd.s32 %s121, 1
      %p125 = scmp.eq.s32.totalorder %s24, 1
      %p126 = scmp.ne.s32.totalorder %s121, %s123
      %p127 = scmp.eq.s32.totalorder %s24, 0
      %p128 = por %p126, %p127
      %p129 = scmp.ne.s32.totalorder %s121, %s123
      %p130 = scmp.eq.s32.totalorder %s29, 1
      %p131 = por %p129, %p130
      %p132 = scmp.ne.s32.totalorder %s123, %s124
      %p133 = scmp.eq.s32.totalorder %s29, 0
      %p134 = por %p132, %p133
      %p135 = scmp.ne.s32.totalorder %s123, %s124
      %p136 = scmp.eq.s32.totalorder %s30, 1
      %p137 = por %p135, %p136
      %p139 = scmp.ne.s32.totalorder %s124, %s138
      %p140 = scmp.eq.s32.totalorder %s30, 0
      %p141 = por %p139, %p140
      %s143 = sadd.s32 %s142, 1
      %p146 = scmp.eq.s32.totalorder %s24, 1
      %p147 = scmp.ne.s32.totalorder %s142, %s144
      %p148 = scmp.eq.s32.totalorder %s24, 0
      %p149 = por %p147, %p148
      %p150 = scmp.ne.s32.totalorder %s142, %s144
      %p151 = scmp.eq.s32.totalorder %s29, 1
      %p152 = por %p150, %p151
      %p153 = scmp.ne.s32.totalorder %s144, %s145
      %p154 = scmp.eq.s32.totalorder %s29, 0
      %p155 = por %p153, %p154
      %p156 = scmp.ne.s32.totalorder %s144, %s145
      %p157 = scmp.eq.s32.totalorder %s30, 1
      %p158 = por %p156, %p157
      %p160 = scmp.ne.s32.totalorder %s145, %s159
      %p161 = scmp.eq.s32.totalorder %s30, 0
      %p162 = por %p160, %p161
      %s164 = sadd.s32 %s163, 1
      %p167 = scmp.eq.s32.totalorder %s24, 1
      %p168 = scmp.ne.s32.totalorder %s163, %s165
      %p169 = scmp.eq.s32.totalorder %s24, 0
      %p170 = por %p168, %p169
      %p171 = scmp.ne.s32.totalorder %s163, %s165
      %p172 = scmp.eq.s32.totalorder %s29, 1
      %p173 = por %p171, %p172
      %p174 = scmp.ne.s32.totalorder %s165, %s166
      %p175 = scmp.eq.s32.totalorder %s29, 0
      %p176 = por %p174, %p175
      %p177 = scmp.ne.s32.totalorder %s165, %s166
      %p178 = scmp.eq.s32.totalorder %s30, 1
      %p179 = por %p177, %p178
      %p181 = scmp.ne.s32.totalorder %s166, %s180
      %p182 = scmp.eq.s32.totalorder %s30, 0
      %p183 = por %p181, %p182
      %s185 = sadd.s32 %s184, 1
      %p188 = scmp.eq.s32.totalorder %s24, 1
      %p189 = scmp.ne.s32.totalorder %s184, %s186
      %p190 = scmp.eq.s32.totalorder %s24, 0
      %p191 = por %p189, %p190
      %p192 = scmp.ne.s32.totalorder %s184, %s186
      %p193 = scmp.eq.s32.totalorder %s29, 1
      %p194 = por %p192, %p193
      %p195 = scmp.ne.s32.totalorder %s186, %s187
      %p196 = scmp.eq.s32.totalorder %s29, 0
      %p197 = por %p195, %p196
      %p198 = scmp.ne.s32.totalorder %s186, %s187
      %p199 = scmp.eq.s32.totalorder %s30, 1
      %p200 = por %p198, %p199
      %p202 = scmp.ne.s32.totalorder %s187, %s201
      %p203 = scmp.eq.s32.totalorder %s30, 0
      %p204 = por %p202, %p203
      %s206 = sadd.s32 %s205, 1
      %p209 = scmp.eq.s32.totalorder %s24, 1
      %p210 = scmp.ne.s32.totalorder %s205, %s207
      %p211 = scmp.eq.s32.totalorder %s24, 0
      %p212 = por %p210, %p211
      %p213 = scmp.ne.s32.totalorder %s205, %s207
      %p214 = scmp.eq.s32.totalorder %s29, 1
      %p215 = por %p213, %p214
      %p216 = scmp.ne.s32.totalorder %s207, %s208
      %p217 = scmp.eq.s32.totalorder %s29, 0
      %p218 = por %p216, %p217
      %p219 = scmp.ne.s32.totalorder %s207, %s208
      %p220 = scmp.eq.s32.totalorder %s30, 1
      %p221 = por %p219, %p220
      %p223 = scmp.ne.s32.totalorder %s208, %s222
      %p224 = scmp.eq.s32.totalorder %s30, 0
      %p225 = por %p223, %p224
      %s227 = sadd.s32 %s226, 1
      %p230 = scmp.eq.s32.totalorder %s24, 1
      %p231 = scmp.ne.s32.totalorder %s226, %s228
      %p232 = scmp.eq.s32.totalorder %s24, 0
      %p233 = por %p231, %p232
      %p234 = scmp.ne.s32.totalorder %s226, %s228
      %p235 = scmp.eq.s32.totalorder %s29, 1
      %p236 = por %p234, %p235
      %p237 = scmp.ne.s32.totalorder %s228, %s229
      %p238 = scmp.eq.s32.totalorder %s29, 0
      %p239 = por %p237, %p238
      %p240 = scmp.ne.s32.totalorder %s228, %s229
      %p241 = scmp.eq.s32.totalorder %s30, 1
      %p242 = por %p240, %p241
      %p244 = scmp.ne.s32.totalorder %s229, %s243
      %p245 = scmp.eq.s32.totalorder %s30, 0
      %p246 = por %p244, %p245
      %s248 = sadd.s32 %s247, 1
      %p251 = scmp.eq.s32.totalorder %s24, 1
      %p252 = scmp.ne.s32.totalorder %s247, %s249
      %p253 = scmp.eq.s32.totalorder %s24, 0
      %p254 = por %p252, %p253
      %p255 = scmp.ne.s32.totalorder %s247, %s249
      %p256 = scmp.eq.s32.totalorder %s29, 1
      %p257 = por %p255, %p256
      %p258 = scmp.ne.s32.totalorder %s249, %s250
      %p259 = scmp.eq.s32.totalorder %s29, 0
      %p260 = por %p258, %p259
      %p261 = scmp.ne.s32.totalorder %s249, %s250
      %p262 = scmp.eq.s32.totalorder %s30, 1
      %p263 = por %p261, %p262
      %p265 = scmp.ne.s32.totalorder %s250, %s264
      %p266 = scmp.eq.s32.totalorder %s30, 0
      %p267 = por %p265, %p266
      %s269 = sadd.s32 %s268, 1
      %p272 = scmp.eq.s32.totalorder %s24, 1
      %p273 = scmp.ne.s32.totalorder %s268, %s270
      %p274 = scmp.eq.s32.totalorder %s24, 0
      %p275 = por %p273, %p274
      %p276 = scmp.ne.s32.totalorder %s268, %s270
      %p277 = scmp.eq.s32.totalorder %s29, 1
      %p278 = por %p276, %p277
      %p279 = scmp.ne.s32.totalorder %s270, %s271
      %p280 = scmp.eq.s32.totalorder %s29, 0
      %p281 = por %p279, %p280
      %p282 = scmp.ne.s32.totalorder %s270, %s271
      %p283 = scmp.eq.s32.totalorder %s30, 1
      %p284 = por %p282, %p283
      %p286 = scmp.ne.s32.totalorder %s271, %s285
      %p287 = scmp.eq.s32.totalorder %s30, 0
      %p288 = por %p286, %p287
      %s289 = ssub.s32 %s24, %s31
      %p290 = scmp.eq.s32.totalorder %s289, 0
      %s292 = sadd.s32 %s291, 1
      %s293 = scalar_select %p290, %s291, %s292
      %p296 = pneg %p290
      %p297 = scmp.eq.s32.totalorder %s24, 1
      %p298 = por %p296, %p297
      %p299 = scmp.ne.s32.totalorder %s291, %s294
      %p300 = scmp.eq.s32.totalorder %s24, 0
      %p301 = por %p299, %p300
      %p302 = scmp.ne.s32.totalorder %s291, %s294
      %p303 = scmp.eq.s32.totalorder %s29, 1
      %p304 = por %p302, %p303
      %p305 = scmp.ne.s32.totalorder %s294, %s295
      %p306 = scmp.eq.s32.totalorder %s29, 0
      %p307 = por %p305, %p306
      %p308 = scmp.ne.s32.totalorder %s294, %s295
      %p309 = scmp.eq.s32.totalorder %s30, 1
      %p310 = por %p308, %p309
      %p312 = scmp.ne.s32.totalorder %s295, %s311
      %p313 = scmp.eq.s32.totalorder %s30, 0
      %p314 = por %p312, %p313
      %p315 = scmp.le.s32.totalorder 1, %s24
      %p316 = scmp.lt.s32.totalorder %s24, 3
      %p317 = pnand %p315, %p316
      %p318 = pneg %p317
      // Predicated region
      $region9: #{dencoder_block_forward.1} parent=5 // pred_check
        _
      $region10: #{dencoder_block_forward.1} parent=5 // pred_check_branch
        %320 = sbr.rel (%p317) target = $region12
      $region11: #{dencoder_block_forward.1} parent=5 // pred_region
        %s321 = ssub.s32 %s24, 1
        // Predicated region
        $region13: #{dencoder_block_forward.1} parent=11 // pred_check
          %p322 = pneg %p71
        $region14: #{dencoder_block_forward.1} parent=11 // pred_check_branch
          %324 = sbr.rel (%p322) target = $region16
        $region15: #{dencoder_block_forward.1} parent=11 // pred_region
          _
        $region16: #{dencoder_block_forward.1} parent=11 // pred_fallthru
          _
        // Predicated region
        $region17: #{dencoder_block_forward.1} parent=11 // pred_check
          %p325 = pneg %p92
        $region18: #{dencoder_block_forward.1} parent=11 // pred_check_branch
          %327 = sbr.rel (%p325) target = $region20
        $region19: #{dencoder_block_forward.1} parent=11 // pred_region
          _
        $region20: #{dencoder_block_forward.1} parent=11 // pred_fallthru
          _
        // Predicated region
        $region21: #{dencoder_block_forward.1} parent=11 // pred_check
          %p328 = pneg %p113
        $region22: #{dencoder_block_forward.1} parent=11 // pred_check_branch
          %330 = sbr.rel (%p328) target = $region24
        $region23: #{dencoder_block_forward.1} parent=11 // pred_region
          _
        $region24: #{dencoder_block_forward.1} parent=11 // pred_fallthru
          _
        // Predicated region
        $region25: #{dencoder_block_forward.1} parent=11 // pred_check
          %p331 = pneg %p134
        $region26: #{dencoder_block_forward.1} parent=11 // pred_check_branch
          %333 = sbr.rel (%p331) target = $region28
        $region27: #{dencoder_block_forward.1} parent=11 // pred_region
          _
        $region28: #{dencoder_block_forward.1} parent=11 // pred_fallthru
          _
        // Predicated region
        $region29: #{dencoder_block_forward.1} parent=11 // pred_check
          %p334 = pneg %p155
        $region30: #{dencoder_block_forward.1} parent=11 // pred_check_branch
          %336 = sbr.rel (%p334) target = $region32
        $region31: #{dencoder_block_forward.1} parent=11 // pred_region
          _
        $region32: #{dencoder_block_forward.1} parent=11 // pred_fallthru
          _
        // Predicated region
        $region33: #{dencoder_block_forward.1} parent=11 // pred_check
          %p337 = pneg %p176
        $region34: #{dencoder_block_forward.1} parent=11 // pred_check_branch
          %339 = sbr.rel (%p337) target = $region36
        $region35: #{dencoder_block_forward.1} parent=11 // pred_region
          _
        $region36: #{dencoder_block_forward.1} parent=11 // pred_fallthru
          _
        // Predicated region
        $region37: #{dencoder_block_forward.1} parent=11 // pred_check
          %p340 = pneg %p197
        $region38: #{dencoder_block_forward.1} parent=11 // pred_check_branch
          %342 = sbr.rel (%p340) target = $region40
        $region39: #{dencoder_block_forward.1} parent=11 // pred_region
          _
        $region40: #{dencoder_block_forward.1} parent=11 // pred_fallthru
          _
        // Predicated region
        $region41: #{dencoder_block_forward.1} parent=11 // pred_check
          %p343 = pneg %p218
        $region42: #{dencoder_block_forward.1} parent=11 // pred_check_branch
          %345 = sbr.rel (%p343) target = $region44
        $region43: #{dencoder_block_forward.1} parent=11 // pred_region
          _
        $region44: #{dencoder_block_forward.1} parent=11 // pred_fallthru
          _
        // Predicated region
        $region45: #{dencoder_block_forward.1} parent=11 // pred_check
          %p346 = pneg %p239
        $region46: #{dencoder_block_forward.1} parent=11 // pred_check_branch
          %348 = sbr.rel (%p346) target = $region48
        $region47: #{dencoder_block_forward.1} parent=11 // pred_region
          _
        $region48: #{dencoder_block_forward.1} parent=11 // pred_fallthru
          _
        // Predicated region
        $region49: #{dencoder_block_forward.1} parent=11 // pred_check
          %p349 = pneg %p260
        $region50: #{dencoder_block_forward.1} parent=11 // pred_check_branch
          %351 = sbr.rel (%p349) target = $region52
        $region51: #{dencoder_block_forward.1} parent=11 // pred_region
          _
        $region52: #{dencoder_block_forward.1} parent=11 // pred_fallthru
          _
        // Predicated region
        $region53: #{dencoder_block_forward.1} parent=11 // pred_check
          %p352 = pneg %p281
        $region54: #{dencoder_block_forward.1} parent=11 // pred_check_branch
          %354 = sbr.rel (%p352) target = $region56
        $region55: #{dencoder_block_forward.1} parent=11 // pred_region
          _
        $region56: #{dencoder_block_forward.1} parent=11 // pred_fallthru
          _
      $region12: #{dencoder_block_forward.1} parent=5 // pred_fallthru
        _
      %p355 = scmp.lt.s32.totalorder %s24, 2
      // Predicated region
      $region57: #{dencoder_block_forward.1} parent=5 // pred_check
        %p356 = pneg %p355
      $region58: #{dencoder_block_forward.1} parent=5 // pred_check_branch
        %358 = sbr.rel (%p356) target = $region60
      $region59: #{dencoder_block_forward.1} parent=5 // pred_region
        // Predicated region
        $region61: #{dencoder_block_forward.1} parent=59 // pred_check
          %p359 = pneg %p44
        $region62: #{dencoder_block_forward.1} parent=59 // pred_check_branch
          %361 = sbr.rel (%p359) target = $region64
        $region63: #{dencoder_block_forward.1} parent=59 // pred_region
          %s362 = sand.u32 %s34, 1
          %s363 = scalar_lea.sflag [#allocation3], %s362
          %s364 = sand.u32 %s34, 1
          %s365 = smul.addr %s364, 64
          %s366 = scalar_lea.vmem [#allocation2], %s365
          %368 = vsyncadd %s363, 0
          %s369 = smul.addr %s24, 8
          %s370 = smul.addr %s369, 8
          %s371 = scalar_lea.hbm %s0, %s370
          %s372 = sshll.u32 %s371, 4
          %s373 = int_to_ptr.hbm [resolvable:$true] %s372
          %s374 = sshll.u32 %s366, 4
          %s375 = int_to_ptr.vmem [resolvable:$true] %s374
          %380 = dma.hbm_to_vmem [thread:$0]  %s373, 1024, %s375, %s363, 128, 128, 8
        $region64: #{dencoder_block_forward.1} parent=59 // pred_fallthru
          _
      $region60: #{dencoder_block_forward.1} parent=5 // pred_fallthru
        _
      %p381 = scmp.le.s32.totalorder 1, %s24
      %p382 = scmp.lt.s32.totalorder %s24, 3
      %p383 = pnand %p381, %p382
      %p384 = pneg %p383
      // Predicated region
      $region65: #{dencoder_block_forward.1} parent=5 // pred_check
        _
      $region66: #{dencoder_block_forward.1} parent=5 // pred_check_branch
        %386 = sbr.rel (%p383) target = $region68
      $region67: #{dencoder_block_forward.1} parent=5 // pred_region
        %s387 = ssub.s32 %s24, 1
        %s388 = sand.u32 %s37, 1
        %s389 = scalar_lea.sflag [#allocation3], %s388
        %s390 = sand.u32 %s37, 1
        %s391 = smul.addr %s390, 64
        %s392 = scalar_lea.vmem [#allocation2], %s391
        // Predicated region
        $region69: #{dencoder_block_forward.1} parent=67 // pred_check
          %p393 = pneg %p50
        $region70: #{dencoder_block_forward.1} parent=67 // pred_check_branch
          %395 = sbr.rel (%p393) target = $region72
        $region71: #{dencoder_block_forward.1} parent=67 // pred_region
          %397 = dma.done %s389, 1024
        $region72: #{dencoder_block_forward.1} parent=67 // pred_fallthru
          _
        %s398 = sand.u32 %s37, 1
        %s399 = scalar_lea.sflag [#allocation3], %s398
        %s400 = sand.u32 %s37, 1
        %s401 = smul.addr %s400, 64
        %s402 = scalar_lea.vmem [#allocation2], %s401
        %p403 = pneg %p50
        %p404 = pneg %p47
        %p405 = pneg %p71
        %p406 = pneg %p68
        %p407 = pneg %p92
        %p408 = pneg %p89
        %p409 = pneg %p113
        %p410 = pneg %p110
        %p411 = pneg %p134
        %p412 = pneg %p131
        %p413 = pneg %p155
        %p414 = pneg %p152
        %p415 = pneg %p176
        %p416 = pneg %p173
        %p417 = pneg %p197
        %p418 = pneg %p194
        %p419 = pneg %p218
        %p420 = pneg %p215
        %p421 = pneg %p239
        %p422 = pneg %p236
        %p423 = pneg %p260
        %p424 = pneg %p257
        %p425 = pneg %p281
        %p426 = pneg %p278
        %p427 = pneg %p307
        %p428 = pneg %p304
        %s429 = sand.u32 %s294, 1
        %s430 = scalar_lea.sflag [#allocation4], %s429
        %s431 = sand.u32 %s294, 1
        %s432 = smul.addr %s431, 64
        %s433 = scalar_lea.vmem [#allocation5], %s432
        %v435 = vld [vmem:[%s392] sm:$0xff]
        %v436 = vld [vmem:[%s392 + $0x8] sm:$0xff]
        %v437 = vld [vmem:[%s392 + $0x10] sm:$0xff]
        %v438 = vld [vmem:[%s392 + $0x18] sm:$0xff]
        %v439 = vld [vmem:[%s392 + $0x20] sm:$0xff]
        %v440 = vld [vmem:[%s392 + $0x28] sm:$0xff]
        %v441 = vld [vmem:[%s392 + $0x30] sm:$0xff]
        %v442 = vld [vmem:[%s392 + $0x38] sm:$0xff]
        %v443 = vld [vmem:[%s1] sm:$0x1]
        %v444 = vld [vmem:[%s2] sm:$0x1]
        %445 = vadd.xlane.f32.xlu0 %v435
        %v446 = vpop.xlane.xlu0 %445
        %447 = vadd.xlane.f32.xlu0 %v436
        %v448 = vpop.xlane.xlu0 %447
        %449 = vadd.xlane.f32.xlu0 %v437
        %v450 = vpop.xlane.xlu0 %449
        %451 = vadd.xlane.f32.xlu0 %v438
        %v452 = vpop.xlane.xlu0 %451
        %453 = vadd.xlane.f32.xlu0 %v439
        %v454 = vpop.xlane.xlu0 %453
        %455 = vadd.xlane.f32.xlu0 %v440
        %v456 = vpop.xlane.xlu0 %455
        %457 = vadd.xlane.f32.xlu0 %v441
        %v458 = vpop.xlane.xlu0 %457
        %459 = vadd.xlane.f32.xlu0 %v442
        %v460 = vpop.xlane.xlu0 %459
        %v461 = vrcp.pop 128.0
        %v462 = vmul.f32 128.0, %v461
        %v463 = vsub.f32 1.0, %v462
        %v464 = vmul.f32 %v461, %v463
        %v465 = vadd.f32 %v461, %v464
        %vm466 = vweird.f32 %v461
        %v467 = vsel %vm466, %v461, %v465
        %v468 = vmul.f32 %v446, %v467
        %v469 = vmul.f32 %v448, %v467
        %v470 = vmul.f32 %v450, %v467
        %v471 = vmul.f32 %v452, %v467
        %v472 = vmul.f32 %v454, %v467
        %v473 = vmul.f32 %v456, %v467
        %v474 = vmul.f32 %v458, %v467
        %v475 = vmul.f32 %v460, %v467
        %v476 = vsub.f32 %v435, %v468
        %v477 = vsub.f32 %v436, %v469
        %v478 = vsub.f32 %v437, %v470
        %v479 = vsub.f32 %v438, %v471
        %v480 = vsub.f32 %v439, %v472
        %v481 = vsub.f32 %v440, %v473
        %v482 = vsub.f32 %v441, %v474
        %v483 = vsub.f32 %v442, %v475
        %v484 = vmul.f32 %v476, %v476
        %v485 = vmul.f32 %v477, %v477
        %v486 = vmul.f32 %v478, %v478
        %v487 = vmul.f32 %v479, %v479
        %v488 = vmul.f32 %v480, %v480
        %v489 = vmul.f32 %v481, %v481
        %v490 = vmul.f32 %v482, %v482
        %v491 = vmul.f32 %v483, %v483
        %492 = vadd.xlane.f32.xlu0 %v484
        %v493 = vpop.xlane.xlu0 %492
        %494 = vadd.xlane.f32.xlu0 %v485
        %v495 = vpop.xlane.xlu0 %494
        %496 = vadd.xlane.f32.xlu0 %v486
        %v497 = vpop.xlane.xlu0 %496
        %498 = vadd.xlane.f32.xlu0 %v487
        %v499 = vpop.xlane.xlu0 %498
        %500 = vadd.xlane.f32.xlu0 %v488
        %v501 = vpop.xlane.xlu0 %500
        %502 = vadd.xlane.f32.xlu0 %v489
        %v503 = vpop.xlane.xlu0 %502
        %504 = vadd.xlane.f32.xlu0 %v490
        %v505 = vpop.xlane.xlu0 %504
        %506 = vadd.xlane.f32.xlu0 %v491
        %v507 = vpop.xlane.xlu0 %506
        %v508 = vmul.f32 %v493, %v467
        %v509 = vmul.f32 %v495, %v467
        %v510 = vmul.f32 %v497, %v467
        %v511 = vmul.f32 %v499, %v467
        %v512 = vmul.f32 %v501, %v467
        %v513 = vmul.f32 %v503, %v467
        %v514 = vmul.f32 %v505, %v467
        %v515 = vmul.f32 %v507, %v467
        %v516 = vadd.f32 %v508, 1e-05
        %v517 = vadd.f32 %v509, 1e-05
        %v518 = vadd.f32 %v510, 1e-05
        %v519 = vadd.f32 %v511, 1e-05
        %v520 = vadd.f32 %v512, 1e-05
        %v521 = vadd.f32 %v513, 1e-05
        %v522 = vadd.f32 %v514, 1e-05
        %v523 = vadd.f32 %v515, 1e-05
        %v524 = vrsqrt.pop %v516
        %v525 = vmul.f32 %v524, %v516
        %v526 = vmul.f32 %v525, %v524
        %v527 = vmul.f32 0.5, %v526
        %v528 = vsub.f32 1.5, %v527
        %v529 = vmul.f32 %v524, %v528
        %vm530 = vweird.f32 %v516
        %vm531 = vweird.f32 %v524
        %vm532 = vmor %vm530, %vm531
        %v533 = vsel %vm532, %v524, %v529
        %v534 = vrsqrt.pop %v517
        %v535 = vmul.f32 %v534, %v517
        %v536 = vmul.f32 %v535, %v534
        %v537 = vmul.f32 0.5, %v536
        %v538 = vsub.f32 1.5, %v537
        %v539 = vmul.f32 %v534, %v538
        %vm540 = vweird.f32 %v517
        %vm541 = vweird.f32 %v534
        %vm542 = vmor %vm540, %vm541
        %v543 = vsel %vm542, %v534, %v539
        %v544 = vrsqrt.pop %v518
        %v545 = vmul.f32 %v544, %v518
        %v546 = vmul.f32 %v545, %v544
        %v547 = vmul.f32 0.5, %v546
        %v548 = vsub.f32 1.5, %v547
        %v549 = vmul.f32 %v544, %v548
        %vm550 = vweird.f32 %v518
        %vm551 = vweird.f32 %v544
        %vm552 = vmor %vm550, %vm551
        %v553 = vsel %vm552, %v544, %v549
        %v554 = vrsqrt.pop %v519
        %v555 = vmul.f32 %v554, %v519
        %v556 = vmul.f32 %v555, %v554
        %v557 = vmul.f32 0.5, %v556
        %v558 = vsub.f32 1.5, %v557
        %v559 = vmul.f32 %v554, %v558
        %vm560 = vweird.f32 %v519
        %vm561 = vweird.f32 %v554
        %vm562 = vmor %vm560, %vm561
        %v563 = vsel %vm562, %v554, %v559
        %v564 = vrsqrt.pop %v520
        %v565 = vmul.f32 %v564, %v520
        %v566 = vmul.f32 %v565, %v564
        %v567 = vmul.f32 0.5, %v566
        %v568 = vsub.f32 1.5, %v567
        %v569 = vmul.f32 %v564, %v568
        %vm570 = vweird.f32 %v520
        %vm571 = vweird.f32 %v564
        %vm572 = vmor %vm570, %vm571
        %v573 = vsel %vm572, %v564, %v569
        %v574 = vrsqrt.pop %v521
        %v575 = vmul.f32 %v574, %v521
        %v576 = vmul.f32 %v575, %v574
        %v577 = vmul.f32 0.5, %v576
        %v578 = vsub.f32 1.5, %v577
        %v579 = vmul.f32 %v574, %v578
        %vm580 = vweird.f32 %v521
        %vm581 = vweird.f32 %v574
        %vm582 = vmor %vm580, %vm581
        %v583 = vsel %vm582, %v574, %v579
        %v584 = vrsqrt.pop %v522
        %v585 = vmul.f32 %v584, %v522
        %v586 = vmul.f32 %v585, %v584
        %v587 = vmul.f32 0.5, %v586
        %v588 = vsub.f32 1.5, %v587
        %v589 = vmul.f32 %v584, %v588
        %vm590 = vweird.f32 %v522
        %vm591 = vweird.f32 %v584
        %vm592 = vmor %vm590, %vm591
        %v593 = vsel %vm592, %v584, %v589
        %v594 = vrsqrt.pop %v523
        %v595 = vmul.f32 %v594, %v523
        %v596 = vmul.f32 %v595, %v594
        %v597 = vmul.f32 0.5, %v596
        %v598 = vsub.f32 1.5, %v597
        %v599 = vmul.f32 %v594, %v598
        %vm600 = vweird.f32 %v523
        %vm601 = vweird.f32 %v594
        %vm602 = vmor %vm600, %vm601
        %v603 = vsel %vm602, %v594, %v599
        %v604 = vmul.f32 %v476, %v533
        %v605 = vmul.f32 %v477, %v543
        %v606 = vmul.f32 %v478, %v553
        %v607 = vmul.f32 %v479, %v563
        %v608 = vmul.f32 %v480, %v573
        %v609 = vmul.f32 %v481, %v583
        %v610 = vmul.f32 %v482, %v593
        %v611 = vmul.f32 %v483, %v603
        %v613 = vperm.slane %v443, 0
        %v615 = vmul.f32 %v604, %v613
        %v616 = vmul.f32 %v605, %v613
        %v617 = vmul.f32 %v606, %v613
        %v618 = vmul.f32 %v607, %v613
        %v619 = vmul.f32 %v608, %v613
        %v620 = vmul.f32 %v609, %v613
        %v621 = vmul.f32 %v610, %v613
        %v622 = vmul.f32 %v611, %v613
        %v624 = vperm.slane %v444, 0
        %v626 = vadd.f32 %v615, %v624
        %v627 = vadd.f32 %v616, %v624
        %v628 = vadd.f32 %v617, %v624
        %v629 = vadd.f32 %v618, %v624
        %v630 = vadd.f32 %v619, %v624
        %v631 = vadd.f32 %v620, %v624
        %v632 = vadd.f32 %v621, %v624
        %v633 = vadd.f32 %v622, %v624
        %v634 = vpack.c.bf16 %v627, %v626
        %v635 = vpack.c.bf16 %v629, %v628
        %v636 = vpack.c.bf16 %v631, %v630
        %v637 = vpack.c.bf16 %v633, %v632
        %v638 = vld [vmem:[%s3] sm:$0xff]
        %v639 = vld [vmem:[%s3 + $0x8] sm:$0xf]
        %v640 = vld [vmem:[%s3 + $0xc] sm:$0xff]
        %v641 = vld [vmem:[%s3 + $0x14] sm:$0xf]
        %v642 = vld [vmem:[%s3 + $0x18] sm:$0xff]
        %v643 = vld [vmem:[%s3 + $0x20] sm:$0xf]
        %v644 = vld [vmem:[%s3 + $0x24] sm:$0xff]
        %v645 = vld [vmem:[%s3 + $0x2c] sm:$0xf]
        %v646 = vld [vmem:[%s3 + $0x30] sm:$0xff]
        %v647 = vld [vmem:[%s3 + $0x38] sm:$0xf]
        %v648 = vld [vmem:[%s3 + $0x3c] sm:$0xff]
        %v649 = vld [vmem:[%s3 + $0x44] sm:$0xf]
        %v650 = vld [vmem:[%s3 + $0x48] sm:$0xff]
        %v651 = vld [vmem:[%s3 + $0x50] sm:$0xf]
        %v652 = vld [vmem:[%s3 + $0x54] sm:$0xff]
        %v653 = vld [vmem:[%s3 + $0x5c] sm:$0xf]
        %v654 = vld [vmem:[%s3 + $0x60] sm:$0xff]
        %v655 = vld [vmem:[%s3 + $0x68] sm:$0xf]
        %v656 = vld [vmem:[%s3 + $0x6c] sm:$0xff]
        %v657 = vld [vmem:[%s3 + $0x74] sm:$0xf]
        %v658 = vld [vmem:[%s3 + $0x78] sm:$0xff]
        %v659 = vld [vmem:[%s3 + $0x80] sm:$0xf]
        %v660 = vld [vmem:[%s3 + $0x84] sm:$0xff]
        %v661 = vld [vmem:[%s3 + $0x8c] sm:$0xf]
        %v662 = vld [vmem:[%s3 + $0x90] sm:$0xff]
        %v663 = vld [vmem:[%s3 + $0x98] sm:$0xf]
        %v664 = vld [vmem:[%s3 + $0x9c] sm:$0xff]
        %v665 = vld [vmem:[%s3 + $0xa4] sm:$0xf]
        %v666 = vld [vmem:[%s3 + $0xa8] sm:$0xff]
        %v667 = vld [vmem:[%s3 + $0xb0] sm:$0xf]
        %v668 = vld [vmem:[%s3 + $0xb4] sm:$0xff]
        %v669 = vld [vmem:[%s3 + $0xbc] sm:$0xf]
        %v702 = vunpack.c.l.b16 %v638
        %v703 = vunpack.c.h.b16 %v638
        %v704 = vunpack.c.l.b16 %v639
        %v705 = vunpack.c.l.b16 %v640
        %v706 = vunpack.c.h.b16 %v640
        %v707 = vunpack.c.l.b16 %v641
        %v708 = vunpack.c.l.b16 %v642
        %v709 = vunpack.c.h.b16 %v642
        %v710 = vunpack.c.l.b16 %v643
        %v711 = vunpack.c.l.b16 %v644
        %v712 = vunpack.c.h.b16 %v644
        %v713 = vunpack.c.l.b16 %v645
        %v714 = vunpack.c.l.b16 %v646
        %v715 = vunpack.c.h.b16 %v646
        %v716 = vunpack.c.l.b16 %v647
        %v717 = vunpack.c.l.b16 %v648
        %v718 = vunpack.c.h.b16 %v648
        %v719 = vunpack.c.l.b16 %v649
        %v720 = vunpack.c.l.b16 %v650
        %v721 = vunpack.c.h.b16 %v650
        %v722 = vunpack.c.l.b16 %v651
        %v723 = vunpack.c.l.b16 %v652
        %v724 = vunpack.c.h.b16 %v652
        %v725 = vunpack.c.l.b16 %v653
        %v726 = vunpack.c.l.b16 %v654
        %v727 = vunpack.c.h.b16 %v654
        %v728 = vunpack.c.l.b16 %v655
        %v729 = vunpack.c.l.b16 %v656
        %v730 = vunpack.c.h.b16 %v656
        %v731 = vunpack.c.l.b16 %v657
        %v732 = vunpack.c.l.b16 %v658
        %v733 = vunpack.c.h.b16 %v658
        %v734 = vunpack.c.l.b16 %v659
        %v735 = vunpack.c.l.b16 %v660
        %v736 = vunpack.c.h.b16 %v660
        %v737 = vunpack.c.l.b16 %v661
        %v738 = vunpack.c.l.b16 %v662
        %v739 = vunpack.c.h.b16 %v662
        %v740 = vunpack.c.l.b16 %v663
        %v741 = vunpack.c.l.b16 %v664
        %v742 = vunpack.c.h.b16 %v664
        %v743 = vunpack.c.l.b16 %v665
        %v744 = vunpack.c.l.b16 %v666
        %v745 = vunpack.c.h.b16 %v666
        %v746 = vunpack.c.l.b16 %v667
        %v747 = vunpack.c.l.b16 %v668
        %v748 = vunpack.c.h.b16 %v668
        %v749 = vunpack.c.l.b16 %v669
        %v750 = vpack.c.b16 %v705, %v702
        %v751 = vpack.c.b16 %v706, %v703
        %v752 = vpack.c.b16 %v707, %v704
        %v753 = vpack.c.b16 %v711, %v708
        %v754 = vpack.c.b16 %v712, %v709
        %v755 = vpack.c.b16 %v713, %v710
        %v756 = vpack.c.b16 %v717, %v714
        %v757 = vpack.c.b16 %v718, %v715
        %v758 = vpack.c.b16 %v719, %v716
        %v759 = vpack.c.b16 %v723, %v720
        %v760 = vpack.c.b16 %v724, %v721
        %v761 = vpack.c.b16 %v725, %v722
        %v762 = vpack.c.b16 %v729, %v726
        %v763 = vpack.c.b16 %v730, %v727
        %v764 = vpack.c.b16 %v731, %v728
        %v765 = vpack.c.b16 %v735, %v732
        %v766 = vpack.c.b16 %v736, %v733
        %v767 = vpack.c.b16 %v737, %v734
        %v768 = vpack.c.b16 %v741, %v738
        %v769 = vpack.c.b16 %v742, %v739
        %v770 = vpack.c.b16 %v743, %v740
        %v771 = vpack.c.b16 %v747, %v744
        %v772 = vpack.c.b16 %v748, %v745
        %v773 = vpack.c.b16 %v749, %v746
        %798 = vmatpush.bf16.msra.mxu0 %v771
        %799 = vmatpush.bf16.msra.mxu0 %v768
        %800 = vmatpush.bf16.msra.mxu0 %v765
        %801 = vmatpush.bf16.msra.mxu0 %v762
        %802 = vmatpush.bf16.msra.mxu0 %v759
        %803 = vmatpush.bf16.msra.mxu0 %v756
        %804 = vmatpush.bf16.msra.mxu0 %v753
        %805 = vmatpush.bf16.msra.mxu0 %v750
        %806 = vmatmul.bf16.gmra.mxu0 %v634
        %v807 = vpop.f32.mrf.mxu0
        %v808 = vadd.f32 0.0, %v807
        %v809 = vpop.f32.mrf.mxu0
        %v810 = vadd.f32 0.0, %v809
        %811 = vmatmul.bf16.gmra.mxu0 %v635
        %v812 = vpop.f32.mrf.mxu0
        %v813 = vadd.f32 0.0, %v812
        %v814 = vpop.f32.mrf.mxu0
        %v815 = vadd.f32 0.0, %v814
        %816 = vmatmul.bf16.gmra.mxu0 %v636
        %v817 = vpop.f32.mrf.mxu0
        %v818 = vadd.f32 0.0, %v817
        %v819 = vpop.f32.mrf.mxu0
        %v820 = vadd.f32 0.0, %v819
        %821 = vmatmul.bf16.gmra.mxu0 %v637
        %v822 = vpop.f32.mrf.mxu0
        %v823 = vadd.f32 0.0, %v822
        %v824 = vpop.f32.mrf.mxu0
        %v825 = vadd.f32 0.0, %v824
        %826 = vdwg.mxu0
        %827 = vmatpush.bf16.msra.mxu0 %v772
        %828 = vmatpush.bf16.msra.mxu0 %v769
        %829 = vmatpush.bf16.msra.mxu0 %v766
        %830 = vmatpush.bf16.msra.mxu0 %v763
        %831 = vmatpush.bf16.msra.mxu0 %v760
        %832 = vmatpush.bf16.msra.mxu0 %v757
        %833 = vmatpush.bf16.msra.mxu0 %v754
        %834 = vmatpush.bf16.msra.mxu0 %v751
        %835 = vmatmul.bf16.gmra.mxu0 %v634
        %v836 = vpop.f32.mrf.mxu0
        %v837 = vadd.f32 0.0, %v836
        %v838 = vpop.f32.mrf.mxu0
        %v839 = vadd.f32 0.0, %v838
        %840 = vmatmul.bf16.gmra.mxu0 %v635
        %v841 = vpop.f32.mrf.mxu0
        %v842 = vadd.f32 0.0, %v841
        %v843 = vpop.f32.mrf.mxu0
        %v844 = vadd.f32 0.0, %v843
        %845 = vmatmul.bf16.gmra.mxu0 %v636
        %v846 = vpop.f32.mrf.mxu0
        %v847 = vadd.f32 0.0, %v846
        %v848 = vpop.f32.mrf.mxu0
        %v849 = vadd.f32 0.0, %v848
        %850 = vmatmul.bf16.gmra.mxu0 %v637
        %v851 = vpop.f32.mrf.mxu0
        %v852 = vadd.f32 0.0, %v851
        %v853 = vpop.f32.mrf.mxu0
        %v854 = vadd.f32 0.0, %v853
        %855 = vdwg.mxu0
        %856 = vmatpush.bf16.msra.mxu0 %v773
        %857 = vmatpush.bf16.msra.mxu0 %v770
        %858 = vmatpush.bf16.msra.mxu0 %v767
        %859 = vmatpush.bf16.msra.mxu0 %v764
        %860 = vmatpush.bf16.msra.mxu0 %v761
        %861 = vmatpush.bf16.msra.mxu0 %v758
        %862 = vmatpush.bf16.msra.mxu0 %v755
        %863 = vmatpush.bf16.msra.mxu0 %v752
        %864 = vmatmul.bf16.gmra.mxu0 %v634
        %v865 = vpop.f32.mrf.mxu0
        %v866 = vadd.f32 0.0, %v865
        %v867 = vpop.f32.mrf.mxu0
        %v868 = vadd.f32 0.0, %v867
        %869 = vmatmul.bf16.gmra.mxu0 %v635
        %v870 = vpop.f32.mrf.mxu0
        %v871 = vadd.f32 0.0, %v870
        %v872 = vpop.f32.mrf.mxu0
        %v873 = vadd.f32 0.0, %v872
        %874 = vmatmul.bf16.gmra.mxu0 %v636
        %v875 = vpop.f32.mrf.mxu0
        %v876 = vadd.f32 0.0, %v875
        %v877 = vpop.f32.mrf.mxu0
        %v878 = vadd.f32 0.0, %v877
        %879 = vmatmul.bf16.gmra.mxu0 %v637
        %v880 = vpop.f32.mrf.mxu0
        %v881 = vadd.f32 0.0, %v880
        %v882 = vpop.f32.mrf.mxu0
        %v883 = vadd.f32 0.0, %v882
        %884 = vdwg.mxu0
        %v885 = vld [vmem:[%s4] sm:$0xf]
        %v886 = vld [vmem:[%s4 + $0x4] sm:$0xf]
        %v887 = vld [vmem:[%s4 + $0x8] sm:$0xf]
        %v888 = vld [vmem:[%s4 + $0xc] sm:$0xf]
        %v889 = vld [vmem:[%s4 + $0x10] sm:$0xf]
        %v890 = vld [vmem:[%s4 + $0x14] sm:$0xf]
        %v891 = vld [vmem:[%s4 + $0x18] sm:$0xf]
        %v892 = vld [vmem:[%s4 + $0x1c] sm:$0xf]
        %v893 = vld [vmem:[%s4 + $0x20] sm:$0xf]
        %v894 = vld [vmem:[%s4 + $0x24] sm:$0xf]
        %v895 = vld [vmem:[%s4 + $0x28] sm:$0xf]
        %v896 = vld [vmem:[%s4 + $0x2c] sm:$0xf]
        %v897 = vld [vmem:[%s4 + $0x30] sm:$0xf]
        %v898 = vld [vmem:[%s4 + $0x34] sm:$0xf]
        %v899 = vld [vmem:[%s4 + $0x38] sm:$0xf]
        %v900 = vld [vmem:[%s4 + $0x3c] sm:$0xf]
        %v901 = vpack.c.bf16 %v808, %v808
        %v902 = vpack.c.bf16 %v810, %v810
        %v903 = vpack.c.bf16 %v813, %v813
        %v904 = vpack.c.bf16 %v815, %v815
        %v905 = vpack.c.bf16 %v818, %v818
        %v906 = vpack.c.bf16 %v820, %v820
        %v907 = vpack.c.bf16 %v823, %v823
        %v908 = vpack.c.bf16 %v825, %v825
        %v909 = vpack.c.bf16 %v837, %v837
        %v910 = vpack.c.bf16 %v839, %v839
        %v911 = vpack.c.bf16 %v842, %v842
        %v912 = vpack.c.bf16 %v844, %v844
        %v913 = vpack.c.bf16 %v847, %v847
        %v914 = vpack.c.bf16 %v849, %v849
        %v915 = vpack.c.bf16 %v852, %v852
        %v916 = vpack.c.bf16 %v854, %v854
        %v917 = vpack.c.bf16 %v868, %v866
        %v918 = vpack.c.bf16 %v873, %v871
        %v919 = vpack.c.bf16 %v878, %v876
        %v920 = vpack.c.bf16 %v883, %v881
        %v921 = vunpack.c.l.bf16 %v901
        %v922 = vunpack.c.l.bf16 %v902
        %v923 = vunpack.c.l.bf16 %v903
        %v924 = vunpack.c.l.bf16 %v904
        %v925 = vunpack.c.l.bf16 %v905
        %v926 = vunpack.c.l.bf16 %v906
        %v927 = vunpack.c.l.bf16 %v907
        %v928 = vunpack.c.l.bf16 %v908
        %v929 = vunpack.c.l.bf16 %v909
        %v930 = vunpack.c.l.bf16 %v910
        %v931 = vunpack.c.l.bf16 %v911
        %v932 = vunpack.c.l.bf16 %v912
        %v933 = vunpack.c.l.bf16 %v913
        %v934 = vunpack.c.l.bf16 %v914
        %v935 = vunpack.c.l.bf16 %v915
        %v936 = vunpack.c.l.bf16 %v916
        %v937 = vmul.f32 %v921, %v921
        %v938 = vmul.f32 %v922, %v922
        %v939 = vmul.f32 %v923, %v923
        %v940 = vmul.f32 %v924, %v924
        %v941 = vmul.f32 %v925, %v925
        %v942 = vmul.f32 %v926, %v926
        %v943 = vmul.f32 %v927, %v927
        %v944 = vmul.f32 %v928, %v928
        %vm945 = vcmask 261120
        %v946 = vsel %vm945, %v937, 0.0
        %947 = vadd.xlane.f32.xlu0 %v946
        %v948 = vpop.xlane.xlu0 %947
        %v949 = vsel %vm945, %v938, 0.0
        %950 = vadd.xlane.f32.xlu0 %v949
        %v951 = vpop.xlane.xlu0 %950
        %v952 = vsel %vm945, %v939, 0.0
        %953 = vadd.xlane.f32.xlu0 %v952
        %v954 = vpop.xlane.xlu0 %953
        %v955 = vsel %vm945, %v940, 0.0
        %956 = vadd.xlane.f32.xlu0 %v955
        %v957 = vpop.xlane.xlu0 %956
        %v958 = vsel %vm945, %v941, 0.0
        %959 = vadd.xlane.f32.xlu0 %v958
        %v960 = vpop.xlane.xlu0 %959
        %v961 = vsel %vm945, %v942, 0.0
        %962 = vadd.xlane.f32.xlu0 %v961
        %v963 = vpop.xlane.xlu0 %962
        %v964 = vsel %vm945, %v943, 0.0
        %965 = vadd.xlane.f32.xlu0 %v964
        %v966 = vpop.xlane.xlu0 %965
        %v967 = vsel %vm945, %v944, 0.0
        %968 = vadd.xlane.f32.xlu0 %v967
        %v969 = vpop.xlane.xlu0 %968
        %v970 = vmul.f32 %v929, %v929
        %v971 = vmul.f32 %v930, %v930
        %v972 = vmul.f32 %v931, %v931
        %v973 = vmul.f32 %v932, %v932
        %v974 = vmul.f32 %v933, %v933
        %v975 = vmul.f32 %v934, %v934
        %v976 = vmul.f32 %v935, %v935
        %v977 = vmul.f32 %v936, %v936
        %v979 = vsel %vm945, 1.0, 0
        %v982 = vsel %vm945, %v970, 0
        %v985 = vsel %vm945, %v971, 0
        %v988 = vsel %vm945, %v972, 0
        %v991 = vsel %vm945, %v973, 0
        %v994 = vsel %vm945, %v974, 0
        %v997 = vsel %vm945, %v975, 0
        %v1000 = vsel %vm945, %v976, 0
        %v1003 = vsel %vm945, %v977, 0
        %1005 = vmatpush.xpose.msra.mxu0 0.0
        %1006 = vmatpush.xpose.msra.mxu0 0.0
        %1007 = vmatpush.xpose.msra.mxu0 0.0
        %1008 = vmatpush.xpose.msra.mxu0 0.0
        %1009 = vmatpush.xpose.msra.mxu0 0.0
        %1010 = vmatpush.xpose.msra.mxu0 0.0
        %1011 = vmatpush.xpose.msra.mxu0 0.0
        %1012 = vmatpush.xpose.msra.mxu0 0.0
        %1013 = vmatpush.xpose.msra.mxu0 %v1003
        %1014 = vmatpush.xpose.msra.mxu0 %v1000
        %1015 = vmatpush.xpose.msra.mxu0 %v997
        %1016 = vmatpush.xpose.msra.mxu0 %v994
        %1017 = vmatpush.xpose.msra.mxu0 %v991
        %1018 = vmatpush.xpose.msra.mxu0 %v988
        %1019 = vmatpush.xpose.msra.mxu0 %v985
        %1020 = vmatpush.xpose.msra.mxu0 %v982
        %1021 = vmatmul.f32.gmra.mxu0 %v979
        %v1022 = vpop.f32.mrf.mxu0
        %v1023 = vadd.f32 0.0, %v1022
        %1024 = vmatmul.f32.gmra.mxu0 %v979
        %v1025 = vpop.f32.mrf.mxu0
        %v1026 = vadd.f32 0.0, %v1025
        %1027 = vmatmul.f32.gmra.mxu0 %v979
        %v1028 = vpop.f32.mrf.mxu0
        %v1029 = vadd.f32 0.0, %v1028
        %1030 = vmatmul.f32.gmra.mxu0 %v979
        %v1031 = vpop.f32.mrf.mxu0
        %v1032 = vadd.f32 0.0, %v1031
        %1033 = vmatmul.f32.gmra.mxu0 %v979
        %v1034 = vpop.f32.mrf.mxu0
        %v1035 = vadd.f32 0.0, %v1034
        %1036 = vmatmul.f32.gmra.mxu0 %v979
        %v1037 = vpop.f32.mrf.mxu0
        %v1038 = vadd.f32 0.0, %v1037
        %1039 = vmatmul.f32.gmra.mxu0 %v979
        %v1040 = vpop.f32.mrf.mxu0
        %v1041 = vadd.f32 0.0, %v1040
        %1042 = vmatmul.f32.gmra.mxu0 %v979
        %v1043 = vpop.f32.mrf.mxu0
        %v1044 = vadd.f32 0.0, %v1043
        %1045 = vdwg.mxu0
        %v1054 = vunpack.c.l.b16 %v901
        %v1055 = vunpack.c.l.b16 %v902
        %v1056 = vunpack.c.l.b16 %v903
        %v1057 = vunpack.c.l.b16 %v904
        %v1058 = vunpack.c.l.b16 %v905
        %v1059 = vunpack.c.l.b16 %v906
        %v1060 = vunpack.c.l.b16 %v907
        %v1061 = vunpack.c.l.b16 %v908
        %v1062 = vpack.c.b16 %v1055, %v1054
        %v1063 = vpack.c.b16 %v1057, %v1056
        %v1064 = vpack.c.b16 %v1059, %v1058
        %v1065 = vpack.c.b16 %v1061, %v1060
        %v1074 = vunpack.c.l.b16 %v909
        %v1075 = vunpack.c.l.b16 %v910
        %v1076 = vunpack.c.l.b16 %v911
        %v1077 = vunpack.c.l.b16 %v912
        %v1078 = vunpack.c.l.b16 %v913
        %v1079 = vunpack.c.l.b16 %v914
        %v1080 = vunpack.c.l.b16 %v915
        %v1081 = vunpack.c.l.b16 %v916
        %v1082 = vpack.c.b16 %v1075, %v1074
        %v1083 = vpack.c.b16 %v1077, %v1076
        %v1084 = vpack.c.b16 %v1079, %v1078
        %v1085 = vpack.c.b16 %v1081, %v1080
        %v1087 = vsel %vm945, %v1062, 0
        %v1090 = vsel %vm945, %v1063, 0
        %v1093 = vsel %vm945, %v1064, 0
        %v1096 = vsel %vm945, %v1065, 0
        %v1099 = vsel %vm945, %v1082, 0
        %v1102 = vsel %vm945, %v1083, 0
        %v1105 = vsel %vm945, %v1084, 0
        %v1108 = vsel %vm945, %v1085, 0
        %1110 = vmatpush.bf16.xpose.msra.mxu0 0
        %1111 = vmatpush.bf16.xpose.msra.mxu0 0
        %1112 = vmatpush.bf16.xpose.msra.mxu0 0
        %1113 = vmatpush.bf16.xpose.msra.mxu0 0
        %1114 = vmatpush.bf16.xpose.msra.mxu0 %v1108
        %1115 = vmatpush.bf16.xpose.msra.mxu0 %v1105
        %1116 = vmatpush.bf16.xpose.msra.mxu0 %v1102
        %1117 = vmatpush.bf16.xpose.msra.mxu0 %v1099
        %1118 = vmatmul.bf16.gmra.mxu0 %v1087
        %v1119 = vpop.f32.mrf.mxu0
        %v1120 = vadd.f32 0.0, %v1119
        %v1121 = vpop.f32.mrf.mxu0
        %v1122 = vadd.f32 0.0, %v1121
        %1123 = vmatmul.bf16.gmra.mxu0 %v1090
        %v1124 = vpop.f32.mrf.mxu0
        %v1125 = vadd.f32 0.0, %v1124
        %v1126 = vpop.f32.mrf.mxu0
        %v1127 = vadd.f32 0.0, %v1126
        %1128 = vmatmul.bf16.gmra.mxu0 %v1093
        %v1129 = vpop.f32.mrf.mxu0
        %v1130 = vadd.f32 0.0, %v1129
        %v1131 = vpop.f32.mrf.mxu0
        %v1132 = vadd.f32 0.0, %v1131
        %1133 = vmatmul.bf16.gmra.mxu0 %v1096
        %v1134 = vpop.f32.mrf.mxu0
        %v1135 = vadd.f32 0.0, %v1134
        %v1136 = vpop.f32.mrf.mxu0
        %v1137 = vadd.f32 0.0, %v1136
        %1138 = vdwg.mxu0
        %v1139 = vadd.f32 %v948, %v1023
        %v1140 = vadd.f32 %v951, %v1026
        %v1141 = vadd.f32 %v954, %v1029
        %v1142 = vadd.f32 %v957, %v1032
        %v1143 = vadd.f32 %v960, %v1035
        %v1144 = vadd.f32 %v963, %v1038
        %v1145 = vadd.f32 %v966, %v1041
        %v1146 = vadd.f32 %v969, %v1044
        %v1147 = vmul.f32 %v1120, 2.0
        %v1148 = vmul.f32 %v1122, 2.0
        %v1149 = vmul.f32 %v1125, 2.0
        %v1150 = vmul.f32 %v1127, 2.0
        %v1151 = vmul.f32 %v1130, 2.0
        %v1152 = vmul.f32 %v1132, 2.0
        %v1153 = vmul.f32 %v1135, 2.0
        %v1154 = vmul.f32 %v1137, 2.0
        %v1155 = vsub.f32 %v1139, %v1147
        %v1156 = vsub.f32 %v1140, %v1148
        %v1157 = vsub.f32 %v1141, %v1149
        %v1158 = vsub.f32 %v1142, %v1150
        %v1159 = vsub.f32 %v1143, %v1151
        %v1160 = vsub.f32 %v1144, %v1152
        %v1161 = vsub.f32 %v1145, %v1153
        %v1162 = vsub.f32 %v1146, %v1154
        %v1163 = vmax.f32 %v1155, 0.0
        %v1164 = vmax.f32 %v1156, 0.0
        %v1165 = vmax.f32 %v1157, 0.0
        %v1166 = vmax.f32 %v1158, 0.0
        %v1167 = vmax.f32 %v1159, 0.0
        %v1168 = vmax.f32 %v1160, 0.0
        %v1169 = vmax.f32 %v1161, 0.0
        %v1170 = vmax.f32 %v1162, 0.0
        %v1171 = vrsqrt.pop %v1163
        %v1172 = vmul.f32 %v1171, %v1163
        %v1173 = vmul.f32 %v1172, %v1171
        %v1174 = vmul.f32 0.5, %v1173
        %v1175 = vsub.f32 1.5, %v1174
        %v1176 = vmul.f32 %v1171, %v1175
        %v1177 = vmul.f32 %v1163, %v1176
        %vm1178 = vcmp.eq.f32.partialorder %v1163, inf
        %v1179 = vsel %vm1178, %v1163, %v1177
        %vm1180 = vcmp.eq.f32.partialorder %v1163, 0.0
        %v1181 = vand.u32 %v1163, 2147483648
        %v1182 = vsel %vm1180, %v1181, %v1179
        %v1183 = vrsqrt.pop %v1164
        %v1184 = vmul.f32 %v1183, %v1164
        %v1185 = vmul.f32 %v1184, %v1183
        %v1186 = vmul.f32 0.5, %v1185
        %v1187 = vsub.f32 1.5, %v1186
        %v1188 = vmul.f32 %v1183, %v1187
        %v1189 = vmul.f32 %v1164, %v1188
        %vm1190 = vcmp.eq.f32.partialorder %v1164, inf
        %v1191 = vsel %vm1190, %v1164, %v1189
        %vm1192 = vcmp.eq.f32.partialorder %v1164, 0.0
        %v1193 = vand.u32 %v1164, 2147483648
        %v1194 = vsel %vm1192, %v1193, %v1191
        %v1195 = vrsqrt.pop %v1165
        %v1196 = vmul.f32 %v1195, %v1165
        %v1197 = vmul.f32 %v1196, %v1195
        %v1198 = vmul.f32 0.5, %v1197
        %v1199 = vsub.f32 1.5, %v1198
        %v1200 = vmul.f32 %v1195, %v1199
        %v1201 = vmul.f32 %v1165, %v1200
        %vm1202 = vcmp.eq.f32.partialorder %v1165, inf
        %v1203 = vsel %vm1202, %v1165, %v1201
        %vm1204 = vcmp.eq.f32.partialorder %v1165, 0.0
        %v1205 = vand.u32 %v1165, 2147483648
        %v1206 = vsel %vm1204, %v1205, %v1203
        %v1207 = vrsqrt.pop %v1166
        %v1208 = vmul.f32 %v1207, %v1166
        %v1209 = vmul.f32 %v1208, %v1207
        %v1210 = vmul.f32 0.5, %v1209
        %v1211 = vsub.f32 1.5, %v1210
        %v1212 = vmul.f32 %v1207, %v1211
        %v1213 = vmul.f32 %v1166, %v1212
        %vm1214 = vcmp.eq.f32.partialorder %v1166, inf
        %v1215 = vsel %vm1214, %v1166, %v1213
        %vm1216 = vcmp.eq.f32.partialorder %v1166, 0.0
        %v1217 = vand.u32 %v1166, 2147483648
        %v1218 = vsel %vm1216, %v1217, %v1215
        %v1219 = vrsqrt.pop %v1167
        %v1220 = vmul.f32 %v1219, %v1167
        %v1221 = vmul.f32 %v1220, %v1219
        %v1222 = vmul.f32 0.5, %v1221
        %v1223 = vsub.f32 1.5, %v1222
        %v1224 = vmul.f32 %v1219, %v1223
        %v1225 = vmul.f32 %v1167, %v1224
        %vm1226 = vcmp.eq.f32.partialorder %v1167, inf
        %v1227 = vsel %vm1226, %v1167, %v1225
        %vm1228 = vcmp.eq.f32.partialorder %v1167, 0.0
        %v1229 = vand.u32 %v1167, 2147483648
        %v1230 = vsel %vm1228, %v1229, %v1227
        %v1231 = vrsqrt.pop %v1168
        %v1232 = vmul.f32 %v1231, %v1168
        %v1233 = vmul.f32 %v1232, %v1231
        %v1234 = vmul.f32 0.5, %v1233
        %v1235 = vsub.f32 1.5, %v1234
        %v1236 = vmul.f32 %v1231, %v1235
        %v1237 = vmul.f32 %v1168, %v1236
        %vm1238 = vcmp.eq.f32.partialorder %v1168, inf
        %v1239 = vsel %vm1238, %v1168, %v1237
        %vm1240 = vcmp.eq.f32.partialorder %v1168, 0.0
        %v1241 = vand.u32 %v1168, 2147483648
        %v1242 = vsel %vm1240, %v1241, %v1239
        %v1243 = vrsqrt.pop %v1169
        %v1244 = vmul.f32 %v1243, %v1169
        %v1245 = vmul.f32 %v1244, %v1243
        %v1246 = vmul.f32 0.5, %v1245
        %v1247 = vsub.f32 1.5, %v1246
        %v1248 = vmul.f32 %v1243, %v1247
        %v1249 = vmul.f32 %v1169, %v1248
        %vm1250 = vcmp.eq.f32.partialorder %v1169, inf
        %v1251 = vsel %vm1250, %v1169, %v1249
        %vm1252 = vcmp.eq.f32.partialorder %v1169, 0.0
        %v1253 = vand.u32 %v1169, 2147483648
        %v1254 = vsel %vm1252, %v1253, %v1251
        %v1255 = vrsqrt.pop %v1170
        %v1256 = vmul.f32 %v1255, %v1170
        %v1257 = vmul.f32 %v1256, %v1255
        %v1258 = vmul.f32 0.5, %v1257
        %v1259 = vsub.f32 1.5, %v1258
        %v1260 = vmul.f32 %v1255, %v1259
        %v1261 = vmul.f32 %v1170, %v1260
        %vm1262 = vcmp.eq.f32.partialorder %v1170, inf
        %v1263 = vsel %vm1262, %v1170, %v1261
        %vm1264 = vcmp.eq.f32.partialorder %v1170, 0.0
        %v1265 = vand.u32 %v1170, 2147483648
        %v1266 = vsel %vm1264, %v1265, %v1263
        %v1267 = vmul.f32 %v1182, 0.088388346
        %v1268 = vmul.f32 %v1194, 0.088388346
        %v1269 = vmul.f32 %v1206, 0.088388346
        %v1270 = vmul.f32 %v1218, 0.088388346
        %v1271 = vmul.f32 %v1230, 0.088388346
        %v1272 = vmul.f32 %v1242, 0.088388346
        %v1273 = vmul.f32 %v1254, 0.088388346
        %v1274 = vmul.f32 %v1266, 0.088388346
        %vm1275 = vcmask 523264
        %v1276 = vsel %vm1275, %v1267, -inf
        %1277 = vmax.xlane.f32.xlu0 %v1276
        %v1278 = vpop.xlane.xlu0 %1277
        %v1279 = vsel %vm1275, %v1268, -inf
        %1280 = vmax.xlane.f32.xlu0 %v1279
        %v1281 = vpop.xlane.xlu0 %1280
        %v1282 = vsel %vm1275, %v1269, -inf
        %1283 = vmax.xlane.f32.xlu0 %v1282
        %v1284 = vpop.xlane.xlu0 %1283
        %v1285 = vsel %vm1275, %v1270, -inf
        %1286 = vmax.xlane.f32.xlu0 %v1285
        %v1287 = vpop.xlane.xlu0 %1286
        %v1288 = vsel %vm1275, %v1271, -inf
        %1289 = vmax.xlane.f32.xlu0 %v1288
        %v1290 = vpop.xlane.xlu0 %1289
        %v1291 = vsel %vm1275, %v1272, -inf
        %1292 = vmax.xlane.f32.xlu0 %v1291
        %v1293 = vpop.xlane.xlu0 %1292
        %v1294 = vsel %vm1275, %v1273, -inf
        %1295 = vmax.xlane.f32.xlu0 %v1294
        %v1296 = vpop.xlane.xlu0 %1295
        %v1297 = vsel %vm1275, %v1274, -inf
        %1298 = vmax.xlane.f32.xlu0 %v1297
        %v1299 = vpop.xlane.xlu0 %1298
        %v1300 = vsub.f32 %v1267, %v1278
        %v1301 = vsub.f32 %v1268, %v1281
        %v1302 = vsub.f32 %v1269, %v1284
        %v1303 = vsub.f32 %v1270, %v1287
        %v1304 = vsub.f32 %v1271, %v1290
        %v1305 = vsub.f32 %v1272, %v1293
        %v1306 = vsub.f32 %v1273, %v1296
        %v1307 = vsub.f32 %v1274, %v1299
        %v1308 = vmul.f32 %v1300, 1.442695
        %v1309 = vpow.pop %v1308
        %v1310 = vmul.f32 %v1301, 1.442695
        %v1311 = vpow.pop %v1310
        %v1312 = vmul.f32 %v1302, 1.442695
        %v1313 = vpow.pop %v1312
        %v1314 = vmul.f32 %v1303, 1.442695
        %v1315 = vpow.pop %v1314
        %v1316 = vmul.f32 %v1304, 1.442695
        %v1317 = vpow.pop %v1316
        %v1318 = vmul.f32 %v1305, 1.442695
        %v1319 = vpow.pop %v1318
        %v1320 = vmul.f32 %v1306, 1.442695
        %v1321 = vpow.pop %v1320
        %v1322 = vmul.f32 %v1307, 1.442695
        %v1323 = vpow.pop %v1322
        %v1324 = vsel %vm1275, %v1309, 0.0
        %1325 = vadd.xlane.f32.xlu0 %v1324
        %v1326 = vpop.xlane.xlu0 %1325
        %v1327 = vsel %vm1275, %v1311, 0.0
        %1328 = vadd.xlane.f32.xlu0 %v1327
        %v1329 = vpop.xlane.xlu0 %1328
        %v1330 = vsel %vm1275, %v1313, 0.0
        %1331 = vadd.xlane.f32.xlu0 %v1330
        %v1332 = vpop.xlane.xlu0 %1331
        %v1333 = vsel %vm1275, %v1315, 0.0
        %1334 = vadd.xlane.f32.xlu0 %v1333
        %v1335 = vpop.xlane.xlu0 %1334
        %v1336 = vsel %vm1275, %v1317, 0.0
        %1337 = vadd.xlane.f32.xlu0 %v1336
        %v1338 = vpop.xlane.xlu0 %1337
        %v1339 = vsel %vm1275, %v1319, 0.0
        %1340 = vadd.xlane.f32.xlu0 %v1339
        %v1341 = vpop.xlane.xlu0 %1340
        %v1342 = vsel %vm1275, %v1321, 0.0
        %1343 = vadd.xlane.f32.xlu0 %v1342
        %v1344 = vpop.xlane.xlu0 %1343
        %v1345 = vsel %vm1275, %v1323, 0.0
        %1346 = vadd.xlane.f32.xlu0 %v1345
        %v1347 = vpop.xlane.xlu0 %1346
        %v1348 = vrcp.pop %v1326
        %v1349 = vrcp.pop %v1329
        %v1350 = vrcp.pop %v1332
        %v1351 = vrcp.pop %v1335
        %v1352 = vrcp.pop %v1338
        %v1353 = vrcp.pop %v1341
        %v1354 = vrcp.pop %v1344
        %v1355 = vrcp.pop %v1347
        %v1356 = vmul.f32 %v1309, %v1348
        %v1357 = vmul.f32 %v1311, %v1349
        %v1358 = vmul.f32 %v1313, %v1350
        %v1359 = vmul.f32 %v1315, %v1351
        %v1360 = vmul.f32 %v1317, %v1352
        %v1361 = vmul.f32 %v1319, %v1353
        %v1362 = vmul.f32 %v1321, %v1354
        %v1363 = vmul.f32 %v1323, %v1355
        %v1364 = vpack.c.bf16 %v1357, %v1356
        %v1365 = vpack.c.bf16 %v1359, %v1358
        %v1366 = vpack.c.bf16 %v1361, %v1360
        %v1367 = vpack.c.bf16 %v1363, %v1362
        %v1369 = vsel %vm1275, %v1364, 0
        %v1372 = vsel %vm1275, %v1365, 0
        %v1375 = vsel %vm1275, %v1366, 0
        %v1378 = vsel %vm1275, %v1367, 0
        %1380 = vmatpush.bf16.msra.mxu0 0
        %1381 = vmatpush.bf16.msra.mxu0 0
        %1382 = vmatpush.bf16.msra.mxu0 0
        %1383 = vmatpush.bf16.msra.mxu0 0
        %1384 = vmatpush.bf16.msra.mxu0 %v920
        %1385 = vmatpush.bf16.msra.mxu0 %v919
        %1386 = vmatpush.bf16.msra.mxu0 %v918
        %1387 = vmatpush.bf16.msra.mxu0 %v917
        %1388 = vmatmul.bf16.gmra.mxu0 %v1369
        %v1389 = vpop.f32.mrf.mxu0
        %v1390 = vadd.f32 0.0, %v1389
        %v1391 = vpop.f32.mrf.mxu0
        %v1392 = vadd.f32 0.0, %v1391
        %1393 = vmatmul.bf16.gmra.mxu0 %v1372
        %v1394 = vpop.f32.mrf.mxu0
        %v1395 = vadd.f32 0.0, %v1394
        %v1396 = vpop.f32.mrf.mxu0
        %v1397 = vadd.f32 0.0, %v1396
        %1398 = vmatmul.bf16.gmra.mxu0 %v1375
        %v1399 = vpop.f32.mrf.mxu0
        %v1400 = vadd.f32 0.0, %v1399
        %v1401 = vpop.f32.mrf.mxu0
        %v1402 = vadd.f32 0.0, %v1401
        %1403 = vmatmul.bf16.gmra.mxu0 %v1378
        %v1404 = vpop.f32.mrf.mxu0
        %v1405 = vadd.f32 0.0, %v1404
        %v1406 = vpop.f32.mrf.mxu0
        %v1407 = vadd.f32 0.0, %v1406
        %1408 = vdwg.mxu0
        %v1409 = vpack.c.bf16 %v1392, %v1390
        %v1410 = vpack.c.bf16 %v1397, %v1395
        %v1411 = vpack.c.bf16 %v1402, %v1400
        %v1412 = vpack.c.bf16 %v1407, %v1405
        %1421 = vrot.lane.b32.xlu0 %v937, 96
        %v1422 = vpop.permute.xlu0 %1421
        %1423 = vrot.lane.b32.xlu0 %v938, 96
        %v1424 = vpop.permute.xlu0 %1423
        %1425 = vrot.lane.b32.xlu0 %v939, 96
        %v1426 = vpop.permute.xlu0 %1425
        %1427 = vrot.lane.b32.xlu0 %v940, 96
        %v1428 = vpop.permute.xlu0 %1427
        %1429 = vrot.lane.b32.xlu0 %v941, 96
        %v1430 = vpop.permute.xlu0 %1429
        %1431 = vrot.lane.b32.xlu0 %v942, 96
        %v1432 = vpop.permute.xlu0 %1431
        %1433 = vrot.lane.b32.xlu0 %v943, 96
        %v1434 = vpop.permute.xlu0 %1433
        %1435 = vrot.lane.b32.xlu0 %v944, 96
        %v1436 = vpop.permute.xlu0 %1435
        %v1445 = vsel %vm945, %v1422, 0.0
        %1446 = vadd.xlane.f32.xlu0 %v1445
        %v1447 = vpop.xlane.xlu0 %1446
        %v1448 = vsel %vm945, %v1424, 0.0
        %1449 = vadd.xlane.f32.xlu0 %v1448
        %v1450 = vpop.xlane.xlu0 %1449
        %v1451 = vsel %vm945, %v1426, 0.0
        %1452 = vadd.xlane.f32.xlu0 %v1451
        %v1453 = vpop.xlane.xlu0 %1452
        %v1454 = vsel %vm945, %v1428, 0.0
        %1455 = vadd.xlane.f32.xlu0 %v1454
        %v1456 = vpop.xlane.xlu0 %1455
        %v1457 = vsel %vm945, %v1430, 0.0
        %1458 = vadd.xlane.f32.xlu0 %v1457
        %v1459 = vpop.xlane.xlu0 %1458
        %v1460 = vsel %vm945, %v1432, 0.0
        %1461 = vadd.xlane.f32.xlu0 %v1460
        %v1462 = vpop.xlane.xlu0 %1461
        %v1463 = vsel %vm945, %v1434, 0.0
        %1464 = vadd.xlane.f32.xlu0 %v1463
        %v1465 = vpop.xlane.xlu0 %1464
        %v1466 = vsel %vm945, %v1436, 0.0
        %1467 = vadd.xlane.f32.xlu0 %v1466
        %v1468 = vpop.xlane.xlu0 %1467
        %1469 = vrot.lane.b32.xlu0 %v970, 96
        %v1470 = vpop.permute.xlu0 %1469
        %1471 = vrot.lane.b32.xlu0 %v971, 96
        %v1472 = vpop.permute.xlu0 %1471
        %1473 = vrot.lane.b32.xlu0 %v972, 96
        %v1474 = vpop.permute.xlu0 %1473
        %1475 = vrot.lane.b32.xlu0 %v973, 96
        %v1476 = vpop.permute.xlu0 %1475
        %1477 = vrot.lane.b32.xlu0 %v974, 96
        %v1478 = vpop.permute.xlu0 %1477
        %1479 = vrot.lane.b32.xlu0 %v975, 96
        %v1480 = vpop.permute.xlu0 %1479
        %1481 = vrot.lane.b32.xlu0 %v976, 96
        %v1482 = vpop.permute.xlu0 %1481
        %1483 = vrot.lane.b32.xlu0 %v977, 96
        %v1484 = vpop.permute.xlu0 %1483
        %v1485 = vsel %vm945, %v1470, 0
        %v1487 = vsel %vm945, %v1472, 0
        %v1489 = vsel %vm945, %v1474, 0
        %v1491 = vsel %vm945, %v1476, 0
        %v1493 = vsel %vm945, %v1478, 0
        %v1495 = vsel %vm945, %v1480, 0
        %v1497 = vsel %vm945, %v1482, 0
        %v1499 = vsel %vm945, %v1484, 0
        %1501 = vmatpush.xpose.msra.mxu0 0.0
        %1502 = vmatpush.xpose.msra.mxu0 0.0
        %1503 = vmatpush.xpose.msra.mxu0 0.0
        %1504 = vmatpush.xpose.msra.mxu0 0.0
        %1505 = vmatpush.xpose.msra.mxu0 0.0
        %1506 = vmatpush.xpose.msra.mxu0 0.0
        %1507 = vmatpush.xpose.msra.mxu0 0.0
        %1508 = vmatpush.xpose.msra.mxu0 0.0
        %1509 = vmatpush.xpose.msra.mxu0 %v1499
        %1510 = vmatpush.xpose.msra.mxu0 %v1497
        %1511 = vmatpush.xpose.msra.mxu0 %v1495
        %1512 = vmatpush.xpose.msra.mxu0 %v1493
        %1513 = vmatpush.xpose.msra.mxu0 %v1491
        %1514 = vmatpush.xpose.msra.mxu0 %v1489
        %1515 = vmatpush.xpose.msra.mxu0 %v1487
        %1516 = vmatpush.xpose.msra.mxu0 %v1485
        %1517 = vmatmul.f32.gmra.mxu0 %v979
        %v1518 = vpop.f32.mrf.mxu0
        %v1519 = vadd.f32 0.0, %v1518
        %1520 = vmatmul.f32.gmra.mxu0 %v979
        %v1521 = vpop.f32.mrf.mxu0
        %v1522 = vadd.f32 0.0, %v1521
        %1523 = vmatmul.f32.gmra.mxu0 %v979
        %v1524 = vpop.f32.mrf.mxu0
        %v1525 = vadd.f32 0.0, %v1524
        %1526 = vmatmul.f32.gmra.mxu0 %v979
        %v1527 = vpop.f32.mrf.mxu0
        %v1528 = vadd.f32 0.0, %v1527
        %1529 = vmatmul.f32.gmra.mxu0 %v979
        %v1530 = vpop.f32.mrf.mxu0
        %v1531 = vadd.f32 0.0, %v1530
        %1532 = vmatmul.f32.gmra.mxu0 %v979
        %v1533 = vpop.f32.mrf.mxu0
        %v1534 = vadd.f32 0.0, %v1533
        %1535 = vmatmul.f32.gmra.mxu0 %v979
        %v1536 = vpop.f32.mrf.mxu0
        %v1537 = vadd.f32 0.0, %v1536
        %1538 = vmatmul.f32.gmra.mxu0 %v979
        %v1539 = vpop.f32.mrf.mxu0
        %v1540 = vadd.f32 0.0, %v1539
        %1541 = vdwg.mxu0
        %1542 = vrot.lane.b32.xlu0 %v1062, 96
        %v1543 = vpop.permute.xlu0 %1542
        %1544 = vrot.lane.b32.xlu0 %v1063, 96
        %v1545 = vpop.permute.xlu0 %1544
        %1546 = vrot.lane.b32.xlu0 %v1064, 96
        %v1547 = vpop.permute.xlu0 %1546
        %1548 = vrot.lane.b32.xlu0 %v1065, 96
        %v1549 = vpop.permute.xlu0 %1548
        %1550 = vrot.lane.b32.xlu0 %v1082, 96
        %v1551 = vpop.permute.xlu0 %1550
        %1552 = vrot.lane.b32.xlu0 %v1083, 96
        %v1553 = vpop.permute.xlu0 %1552
        %1554 = vrot.lane.b32.xlu0 %v1084, 96
        %v1555 = vpop.permute.xlu0 %1554
        %1556 = vrot.lane.b32.xlu0 %v1085, 96
        %v1557 = vpop.permute.xlu0 %1556
        %v1559 = vsel %vm945, %v1543, 0
        %v1562 = vsel %vm945, %v1545, 0
        %v1565 = vsel %vm945, %v1547, 0
        %v1568 = vsel %vm945, %v1549, 0
        %v1571 = vsel %vm945, %v1551, 0
        %v1574 = vsel %vm945, %v1553, 0
        %v1577 = vsel %vm945, %v1555, 0
        %v1580 = vsel %vm945, %v1557, 0
        %1582 = vmatpush.bf16.xpose.msra.mxu0 0
        %1583 = vmatpush.bf16.xpose.msra.mxu0 0
        %1584 = vmatpush.bf16.xpose.msra.mxu0 0
        %1585 = vmatpush.bf16.xpose.msra.mxu0 0
        %1586 = vmatpush.bf16.xpose.msra.mxu0 %v1580
        %1587 = vmatpush.bf16.xpose.msra.mxu0 %v1577
        %1588 = vmatpush.bf16.xpose.msra.mxu0 %v1574
        %1589 = vmatpush.bf16.xpose.msra.mxu0 %v1571
        %1590 = vmatmul.bf16.gmra.mxu0 %v1559
        %v1591 = vpop.f32.mrf.mxu0
        %v1592 = vadd.f32 0.0, %v1591
        %v1593 = vpop.f32.mrf.mxu0
        %v1594 = vadd.f32 0.0, %v1593
        %1595 = vmatmul.bf16.gmra.mxu0 %v1562
        %v1596 = vpop.f32.mrf.mxu0
        %v1597 = vadd.f32 0.0, %v1596
        %v1598 = vpop.f32.mrf.mxu0
        %v1599 = vadd.f32 0.0, %v1598
        %1600 = vmatmul.bf16.gmra.mxu0 %v1565
        %v1601 = vpop.f32.mrf.mxu0
        %v1602 = vadd.f32 0.0, %v1601
        %v1603 = vpop.f32.mrf.mxu0
        %v1604 = vadd.f32 0.0, %v1603
        %1605 = vmatmul.bf16.gmra.mxu0 %v1568
        %v1606 = vpop.f32.mrf.mxu0
        %v1607 = vadd.f32 0.0, %v1606
        %v1608 = vpop.f32.mrf.mxu0
        %v1609 = vadd.f32 0.0, %v1608
        %1610 = vdwg.mxu0
        %v1611 = vadd.f32 %v1447, %v1519
        %v1612 = vadd.f32 %v1450, %v1522
        %v1613 = vadd.f32 %v1453, %v1525
        %v1614 = vadd.f32 %v1456, %v1528
        %v1615 = vadd.f32 %v1459, %v1531
        %v1616 = vadd.f32 %v1462, %v1534
        %v1617 = vadd.f32 %v1465, %v1537
        %v1618 = vadd.f32 %v1468, %v1540
        %v1619 = vmul.f32 %v1592, 2.0
        %v1620 = vmul.f32 %v1594, 2.0
        %v1621 = vmul.f32 %v1597, 2.0
        %v1622 = vmul.f32 %v1599, 2.0
        %v1623 = vmul.f32 %v1602, 2.0
        %v1624 = vmul.f32 %v1604, 2.0
        %v1625 = vmul.f32 %v1607, 2.0
        %v1626 = vmul.f32 %v1609, 2.0
        %v1627 = vsub.f32 %v1611, %v1619
        %v1628 = vsub.f32 %v1612, %v1620
        %v1629 = vsub.f32 %v1613, %v1621
        %v1630 = vsub.f32 %v1614, %v1622
        %v1631 = vsub.f32 %v1615, %v1623
        %v1632 = vsub.f32 %v1616, %v1624
        %v1633 = vsub.f32 %v1617, %v1625
        %v1634 = vsub.f32 %v1618, %v1626
        %v1635 = vmax.f32 %v1627, 0.0
        %v1636 = vmax.f32 %v1628, 0.0
        %v1637 = vmax.f32 %v1629, 0.0
        %v1638 = vmax.f32 %v1630, 0.0
        %v1639 = vmax.f32 %v1631, 0.0
        %v1640 = vmax.f32 %v1632, 0.0
        %v1641 = vmax.f32 %v1633, 0.0
        %v1642 = vmax.f32 %v1634, 0.0
        %v1643 = vrsqrt.pop %v1635
        %v1644 = vmul.f32 %v1643, %v1635
        %v1645 = vmul.f32 %v1644, %v1643
        %v1646 = vmul.f32 0.5, %v1645
        %v1647 = vsub.f32 1.5, %v1646
        %v1648 = vmul.f32 %v1643, %v1647
        %v1649 = vmul.f32 %v1635, %v1648
        %vm1650 = vcmp.eq.f32.partialorder %v1635, inf
        %v1651 = vsel %vm1650, %v1635, %v1649
        %vm1652 = vcmp.eq.f32.partialorder %v1635, 0.0
        %v1653 = vand.u32 %v1635, 2147483648
        %v1654 = vsel %vm1652, %v1653, %v1651
        %v1655 = vrsqrt.pop %v1636
        %v1656 = vmul.f32 %v1655, %v1636
        %v1657 = vmul.f32 %v1656, %v1655
        %v1658 = vmul.f32 0.5, %v1657
        %v1659 = vsub.f32 1.5, %v1658
        %v1660 = vmul.f32 %v1655, %v1659
        %v1661 = vmul.f32 %v1636, %v1660
        %vm1662 = vcmp.eq.f32.partialorder %v1636, inf
        %v1663 = vsel %vm1662, %v1636, %v1661
        %vm1664 = vcmp.eq.f32.partialorder %v1636, 0.0
        %v1665 = vand.u32 %v1636, 2147483648
        %v1666 = vsel %vm1664, %v1665, %v1663
        %v1667 = vrsqrt.pop %v1637
        %v1668 = vmul.f32 %v1667, %v1637
        %v1669 = vmul.f32 %v1668, %v1667
        %v1670 = vmul.f32 0.5, %v1669
        %v1671 = vsub.f32 1.5, %v1670
        %v1672 = vmul.f32 %v1667, %v1671
        %v1673 = vmul.f32 %v1637, %v1672
        %vm1674 = vcmp.eq.f32.partialorder %v1637, inf
        %v1675 = vsel %vm1674, %v1637, %v1673
        %vm1676 = vcmp.eq.f32.partialorder %v1637, 0.0
        %v1677 = vand.u32 %v1637, 2147483648
        %v1678 = vsel %vm1676, %v1677, %v1675
        %v1679 = vrsqrt.pop %v1638
        %v1680 = vmul.f32 %v1679, %v1638
        %v1681 = vmul.f32 %v1680, %v1679
        %v1682 = vmul.f32 0.5, %v1681
        %v1683 = vsub.f32 1.5, %v1682
        %v1684 = vmul.f32 %v1679, %v1683
        %v1685 = vmul.f32 %v1638, %v1684
        %vm1686 = vcmp.eq.f32.partialorder %v1638, inf
        %v1687 = vsel %vm1686, %v1638, %v1685
        %vm1688 = vcmp.eq.f32.partialorder %v1638, 0.0
        %v1689 = vand.u32 %v1638, 2147483648
        %v1690 = vsel %vm1688, %v1689, %v1687
        %v1691 = vrsqrt.pop %v1639
        %v1692 = vmul.f32 %v1691, %v1639
        %v1693 = vmul.f32 %v1692, %v1691
        %v1694 = vmul.f32 0.5, %v1693
        %v1695 = vsub.f32 1.5, %v1694
        %v1696 = vmul.f32 %v1691, %v1695
        %v1697 = vmul.f32 %v1639, %v1696
        %vm1698 = vcmp.eq.f32.partialorder %v1639, inf
        %v1699 = vsel %vm1698, %v1639, %v1697
        %vm1700 = vcmp.eq.f32.partialorder %v1639, 0.0
        %v1701 = vand.u32 %v1639, 2147483648
        %v1702 = vsel %vm1700, %v1701, %v1699
        %v1703 = vrsqrt.pop %v1640
        %v1704 = vmul.f32 %v1703, %v1640
        %v1705 = vmul.f32 %v1704, %v1703
        %v1706 = vmul.f32 0.5, %v1705
        %v1707 = vsub.f32 1.5, %v1706
        %v1708 = vmul.f32 %v1703, %v1707
        %v1709 = vmul.f32 %v1640, %v1708
        %vm1710 = vcmp.eq.f32.partialorder %v1640, inf
        %v1711 = vsel %vm1710, %v1640, %v1709
        %vm1712 = vcmp.eq.f32.partialorder %v1640, 0.0
        %v1713 = vand.u32 %v1640, 2147483648
        %v1714 = vsel %vm1712, %v1713, %v1711
        %v1715 = vrsqrt.pop %v1641
        %v1716 = vmul.f32 %v1715, %v1641
        %v1717 = vmul.f32 %v1716, %v1715
        %v1718 = vmul.f32 0.5, %v1717
        %v1719 = vsub.f32 1.5, %v1718
        %v1720 = vmul.f32 %v1715, %v1719
        %v1721 = vmul.f32 %v1641, %v1720
        %vm1722 = vcmp.eq.f32.partialorder %v1641, inf
        %v1723 = vsel %vm1722, %v1641, %v1721
        %vm1724 = vcmp.eq.f32.partialorder %v1641, 0.0
        %v1725 = vand.u32 %v1641, 2147483648
        %v1726 = vsel %vm1724, %v1725, %v1723
        %v1727 = vrsqrt.pop %v1642
        %v1728 = vmul.f32 %v1727, %v1642
        %v1729 = vmul.f32 %v1728, %v1727
        %v1730 = vmul.f32 0.5, %v1729
        %v1731 = vsub.f32 1.5, %v1730
        %v1732 = vmul.f32 %v1727, %v1731
        %v1733 = vmul.f32 %v1642, %v1732
        %vm1734 = vcmp.eq.f32.partialorder %v1642, inf
        %v1735 = vsel %vm1734, %v1642, %v1733
        %vm1736 = vcmp.eq.f32.partialorder %v1642, 0.0
        %v1737 = vand.u32 %v1642, 2147483648
        %v1738 = vsel %vm1736, %v1737, %v1735
        %v1739 = vmul.f32 %v1654, 0.088388346
        %v1740 = vmul.f32 %v1666, 0.088388346
        %v1741 = vmul.f32 %v1678, 0.088388346
        %v1742 = vmul.f32 %v1690, 0.088388346
        %v1743 = vmul.f32 %v1702, 0.088388346
        %v1744 = vmul.f32 %v1714, 0.088388346
        %v1745 = vmul.f32 %v1726, 0.088388346
        %v1746 = vmul.f32 %v1738, 0.088388346
        %v1747 = vsel %vm1275, %v1739, -inf
        %1748 = vmax.xlane.f32.xlu0 %v1747
        %v1749 = vpop.xlane.xlu0 %1748
        %v1750 = vsel %vm1275, %v1740, -inf
        %1751 = vmax.xlane.f32.xlu0 %v1750
        %v1752 = vpop.xlane.xlu0 %1751
        %v1753 = vsel %vm1275, %v1741, -inf
        %1754 = vmax.xlane.f32.xlu0 %v1753
        %v1755 = vpop.xlane.xlu0 %1754
        %v1756 = vsel %vm1275, %v1742, -inf
        %1757 = vmax.xlane.f32.xlu0 %v1756
        %v1758 = vpop.xlane.xlu0 %1757
        %v1759 = vsel %vm1275, %v1743, -inf
        %1760 = vmax.xlane.f32.xlu0 %v1759
        %v1761 = vpop.xlane.xlu0 %1760
        %v1762 = vsel %vm1275, %v1744, -inf
        %1763 = vmax.xlane.f32.xlu0 %v1762
        %v1764 = vpop.xlane.xlu0 %1763
        %v1765 = vsel %vm1275, %v1745, -inf
        %1766 = vmax.xlane.f32.xlu0 %v1765
        %v1767 = vpop.xlane.xlu0 %1766
        %v1768 = vsel %vm1275, %v1746, -inf
        %1769 = vmax.xlane.f32.xlu0 %v1768
        %v1770 = vpop.xlane.xlu0 %1769
        %v1771 = vsub.f32 %v1739, %v1749
        %v1772 = vsub.f32 %v1740, %v1752
        %v1773 = vsub.f32 %v1741, %v1755
        %v1774 = vsub.f32 %v1742, %v1758
        %v1775 = vsub.f32 %v1743, %v1761
        %v1776 = vsub.f32 %v1744, %v1764
        %v1777 = vsub.f32 %v1745, %v1767
        %v1778 = vsub.f32 %v1746, %v1770
        %v1779 = vmul.f32 %v1771, 1.442695
        %v1780 = vpow.pop %v1779
        %v1781 = vmul.f32 %v1772, 1.442695
        %v1782 = vpow.pop %v1781
        %v1783 = vmul.f32 %v1773, 1.442695
        %v1784 = vpow.pop %v1783
        %v1785 = vmul.f32 %v1774, 1.442695
        %v1786 = vpow.pop %v1785
        %v1787 = vmul.f32 %v1775, 1.442695
        %v1788 = vpow.pop %v1787
        %v1789 = vmul.f32 %v1776, 1.442695
        %v1790 = vpow.pop %v1789
        %v1791 = vmul.f32 %v1777, 1.442695
        %v1792 = vpow.pop %v1791
        %v1793 = vmul.f32 %v1778, 1.442695
        %v1794 = vpow.pop %v1793
        %v1795 = vsel %vm1275, %v1780, 0.0
        %1796 = vadd.xlane.f32.xlu0 %v1795
        %v1797 = vpop.xlane.xlu0 %1796
        %v1798 = vsel %vm1275, %v1782, 0.0
        %1799 = vadd.xlane.f32.xlu0 %v1798
        %v1800 = vpop.xlane.xlu0 %1799
        %v1801 = vsel %vm1275, %v1784, 0.0
        %1802 = vadd.xlane.f32.xlu0 %v1801
        %v1803 = vpop.xlane.xlu0 %1802
        %v1804 = vsel %vm1275, %v1786, 0.0
        %1805 = vadd.xlane.f32.xlu0 %v1804
        %v1806 = vpop.xlane.xlu0 %1805
        %v1807 = vsel %vm1275, %v1788, 0.0
        %1808 = vadd.xlane.f32.xlu0 %v1807
        %v1809 = vpop.xlane.xlu0 %1808
        %v1810 = vsel %vm1275, %v1790, 0.0
        %1811 = vadd.xlane.f32.xlu0 %v1810
        %v1812 = vpop.xlane.xlu0 %1811
        %v1813 = vsel %vm1275, %v1792, 0.0
        %1814 = vadd.xlane.f32.xlu0 %v1813
        %v1815 = vpop.xlane.xlu0 %1814
        %v1816 = vsel %vm1275, %v1794, 0.0
        %1817 = vadd.xlane.f32.xlu0 %v1816
        %v1818 = vpop.xlane.xlu0 %1817
        %v1819 = vrcp.pop %v1797
        %v1820 = vrcp.pop %v1800
        %v1821 = vrcp.pop %v1803
        %v1822 = vrcp.pop %v1806
        %v1823 = vrcp.pop %v1809
        %v1824 = vrcp.pop %v1812
        %v1825 = vrcp.pop %v1815
        %v1826 = vrcp.pop %v1818
        %v1827 = vmul.f32 %v1780, %v1819
        %v1828 = vmul.f32 %v1782, %v1820
        %v1829 = vmul.f32 %v1784, %v1821
        %v1830 = vmul.f32 %v1786, %v1822
        %v1831 = vmul.f32 %v1788, %v1823
        %v1832 = vmul.f32 %v1790, %v1824
        %v1833 = vmul.f32 %v1792, %v1825
        %v1834 = vmul.f32 %v1794, %v1826
        %v1835 = vpack.c.bf16 %v1828, %v1827
        %v1836 = vpack.c.bf16 %v1830, %v1829
        %v1837 = vpack.c.bf16 %v1832, %v1831
        %v1838 = vpack.c.bf16 %v1834, %v1833
        %1843 = vrot.lane.b32.xlu0 %v917, 96
        %v1844 = vpop.permute.xlu0 %1843
        %1845 = vrot.lane.b32.xlu0 %v918, 96
        %v1846 = vpop.permute.xlu0 %1845
        %1847 = vrot.lane.b32.xlu0 %v919, 96
        %v1848 = vpop.permute.xlu0 %1847
        %1849 = vrot.lane.b32.xlu0 %v920, 96
        %v1850 = vpop.permute.xlu0 %1849
        %v1856 = vsel %vm1275, %v1835, 0
        %v1859 = vsel %vm1275, %v1836, 0
        %v1862 = vsel %vm1275, %v1837, 0
        %v1865 = vsel %vm1275, %v1838, 0
        %1867 = vmatpush.bf16.msra.mxu0 0
        %1868 = vmatpush.bf16.msra.mxu0 0
        %1869 = vmatpush.bf16.msra.mxu0 0
        %1870 = vmatpush.bf16.msra.mxu0 0
        %1871 = vmatpush.bf16.msra.mxu0 %v1850
        %1872 = vmatpush.bf16.msra.mxu0 %v1848
        %1873 = vmatpush.bf16.msra.mxu0 %v1846
        %1874 = vmatpush.bf16.msra.mxu0 %v1844
        %1875 = vmatmul.bf16.gmra.mxu0 %v1856
        %v1876 = vpop.f32.mrf.mxu0
        %v1877 = vadd.f32 0.0, %v1876
        %v1878 = vpop.f32.mrf.mxu0
        %v1879 = vadd.f32 0.0, %v1878
        %1880 = vmatmul.bf16.gmra.mxu0 %v1859
        %v1881 = vpop.f32.mrf.mxu0
        %v1882 = vadd.f32 0.0, %v1881
        %v1883 = vpop.f32.mrf.mxu0
        %v1884 = vadd.f32 0.0, %v1883
        %1885 = vmatmul.bf16.gmra.mxu0 %v1862
        %v1886 = vpop.f32.mrf.mxu0
        %v1887 = vadd.f32 0.0, %v1886
        %v1888 = vpop.f32.mrf.mxu0
        %v1889 = vadd.f32 0.0, %v1888
        %1890 = vmatmul.bf16.gmra.mxu0 %v1865
        %v1891 = vpop.f32.mrf.mxu0
        %v1892 = vadd.f32 0.0, %v1891
        %v1893 = vpop.f32.mrf.mxu0
        %v1894 = vadd.f32 0.0, %v1893
        %1895 = vdwg.mxu0
        %v1896 = vpack.c.bf16 %v1879, %v1877
        %v1897 = vpack.c.bf16 %v1884, %v1882
        %v1898 = vpack.c.bf16 %v1889, %v1887
        %v1899 = vpack.c.bf16 %v1894, %v1892
        %v1904 = vunpack.c.l.b16 %v889
        %v1905 = vunpack.c.l.b16 %v890
        %v1906 = vunpack.c.l.b16 %v891
        %v1907 = vunpack.c.l.b16 %v892
        %v1908 = vpack.c.b16 %v1905, %v1904
        %v1909 = vpack.c.b16 %v1907, %v1906
        %v1913 = vsel %vm945, %v1896, 0
        %v1916 = vsel %vm945, %v1897, 0
        %v1919 = vsel %vm945, %v1898, 0
        %v1922 = vsel %vm945, %v1899, 0
        %1924 = vmatpush.bf16.msra.mxu0 0
        %1925 = vmatpush.bf16.msra.mxu0 0
        %1926 = vmatpush.bf16.msra.mxu0 0
        %1927 = vmatpush.bf16.msra.mxu0 0
        %1928 = vmatpush.bf16.msra.mxu0 0
        %1929 = vmatpush.bf16.msra.mxu0 0
        %1930 = vmatpush.bf16.msra.mxu0 %v1909
        %1931 = vmatpush.bf16.msra.mxu0 %v1908
        %1932 = vmatmul.bf16.gmra.mxu0 %v1913
        %v1933 = vpop.f32.mrf.mxu0
        %v1934 = vadd.f32 0.0, %v1933
        %v1935 = vpop.f32.mrf.mxu0
        %v1936 = vadd.f32 0.0, %v1935
        %1937 = vmatmul.bf16.gmra.mxu0 %v1916
        %v1938 = vpop.f32.mrf.mxu0
        %v1939 = vadd.f32 0.0, %v1938
        %v1940 = vpop.f32.mrf.mxu0
        %v1941 = vadd.f32 0.0, %v1940
        %1942 = vmatmul.bf16.gmra.mxu0 %v1919
        %v1943 = vpop.f32.mrf.mxu0
        %v1944 = vadd.f32 0.0, %v1943
        %v1945 = vpop.f32.mrf.mxu0
        %v1946 = vadd.f32 0.0, %v1945
        %1947 = vmatmul.bf16.gmra.mxu0 %v1922
        %v1948 = vpop.f32.mrf.mxu0
        %v1949 = vadd.f32 0.0, %v1948
        %v1950 = vpop.f32.mrf.mxu0
        %v1951 = vadd.f32 0.0, %v1950
        %1952 = vdwg.mxu0
        %v1957 = vunpack.c.l.b16 %v885
        %v1958 = vunpack.c.l.b16 %v886
        %v1959 = vunpack.c.l.b16 %v887
        %v1960 = vunpack.c.l.b16 %v888
        %v1961 = vpack.c.b16 %v1958, %v1957
        %v1962 = vpack.c.b16 %v1960, %v1959
        %v1966 = vsel %vm945, %v1409, 0
        %v1969 = vsel %vm945, %v1410, 0
        %v1972 = vsel %vm945, %v1411, 0
        %v1975 = vsel %vm945, %v1412, 0
        %1977 = vmatpush.bf16.msra.mxu0 0
        %1978 = vmatpush.bf16.msra.mxu0 0
        %1979 = vmatpush.bf16.msra.mxu0 0
        %1980 = vmatpush.bf16.msra.mxu0 0
        %1981 = vmatpush.bf16.msra.mxu0 0
        %1982 = vmatpush.bf16.msra.mxu0 0
        %1983 = vmatpush.bf16.msra.mxu0 %v1962
        %1984 = vmatpush.bf16.msra.mxu0 %v1961
        %1985 = vmatmul.bf16.gmra.mxu0 %v1966
        %v1986 = vpop.f32.mrf.mxu0
        %v1987 = vadd.f32 %v1934, %v1986
        %v1988 = vpop.f32.mrf.mxu0
        %v1989 = vadd.f32 %v1936, %v1988
        %1990 = vmatmul.bf16.gmra.mxu0 %v1969
        %v1991 = vpop.f32.mrf.mxu0
        %v1992 = vadd.f32 %v1939, %v1991
        %v1993 = vpop.f32.mrf.mxu0
        %v1994 = vadd.f32 %v1941, %v1993
        %1995 = vmatmul.bf16.gmra.mxu0 %v1972
        %v1996 = vpop.f32.mrf.mxu0
        %v1997 = vadd.f32 %v1944, %v1996
        %v1998 = vpop.f32.mrf.mxu0
        %v1999 = vadd.f32 %v1946, %v1998
        %2000 = vmatmul.bf16.gmra.mxu0 %v1975
        %v2001 = vpop.f32.mrf.mxu0
        %v2002 = vadd.f32 %v1949, %v2001
        %v2003 = vpop.f32.mrf.mxu0
        %v2004 = vadd.f32 %v1951, %v2003
        %2005 = vdwg.mxu0
        %2006 = vrot.lane.b32.xlu0 %v937, 64
        %v2007 = vpop.permute.xlu0 %2006
        %2008 = vrot.lane.b32.xlu0 %v938, 64
        %v2009 = vpop.permute.xlu0 %2008
        %2010 = vrot.lane.b32.xlu0 %v939, 64
        %v2011 = vpop.permute.xlu0 %2010
        %2012 = vrot.lane.b32.xlu0 %v940, 64
        %v2013 = vpop.permute.xlu0 %2012
        %2014 = vrot.lane.b32.xlu0 %v941, 64
        %v2015 = vpop.permute.xlu0 %2014
        %2016 = vrot.lane.b32.xlu0 %v942, 64
        %v2017 = vpop.permute.xlu0 %2016
        %2018 = vrot.lane.b32.xlu0 %v943, 64
        %v2019 = vpop.permute.xlu0 %2018
        %2020 = vrot.lane.b32.xlu0 %v944, 64
        %v2021 = vpop.permute.xlu0 %2020
        %v2030 = vsel %vm945, %v2007, 0.0
        %2031 = vadd.xlane.f32.xlu0 %v2030
        %v2032 = vpop.xlane.xlu0 %2031
        %v2033 = vsel %vm945, %v2009, 0.0
        %2034 = vadd.xlane.f32.xlu0 %v2033
        %v2035 = vpop.xlane.xlu0 %2034
        %v2036 = vsel %vm945, %v2011, 0.0
        %2037 = vadd.xlane.f32.xlu0 %v2036
        %v2038 = vpop.xlane.xlu0 %2037
        %v2039 = vsel %vm945, %v2013, 0.0
        %2040 = vadd.xlane.f32.xlu0 %v2039
        %v2041 = vpop.xlane.xlu0 %2040
        %v2042 = vsel %vm945, %v2015, 0.0
        %2043 = vadd.xlane.f32.xlu0 %v2042
        %v2044 = vpop.xlane.xlu0 %2043
        %v2045 = vsel %vm945, %v2017, 0.0
        %2046 = vadd.xlane.f32.xlu0 %v2045
        %v2047 = vpop.xlane.xlu0 %2046
        %v2048 = vsel %vm945, %v2019, 0.0
        %2049 = vadd.xlane.f32.xlu0 %v2048
        %v2050 = vpop.xlane.xlu0 %2049
        %v2051 = vsel %vm945, %v2021, 0.0
        %2052 = vadd.xlane.f32.xlu0 %v2051
        %v2053 = vpop.xlane.xlu0 %2052
        %2054 = vrot.lane.b32.xlu0 %v970, 64
        %v2055 = vpop.permute.xlu0 %2054
        %2056 = vrot.lane.b32.xlu0 %v971, 64
        %v2057 = vpop.permute.xlu0 %2056
        %2058 = vrot.lane.b32.xlu0 %v972, 64
        %v2059 = vpop.permute.xlu0 %2058
        %2060 = vrot.lane.b32.xlu0 %v973, 64
        %v2061 = vpop.permute.xlu0 %2060
        %2062 = vrot.lane.b32.xlu0 %v974, 64
        %v2063 = vpop.permute.xlu0 %2062
        %2064 = vrot.lane.b32.xlu0 %v975, 64
        %v2065 = vpop.permute.xlu0 %2064
        %2066 = vrot.lane.b32.xlu0 %v976, 64
        %v2067 = vpop.permute.xlu0 %2066
        %2068 = vrot.lane.b32.xlu0 %v977, 64
        %v2069 = vpop.permute.xlu0 %2068
        %v2070 = vsel %vm945, %v2055, 0
        %v2072 = vsel %vm945, %v2057, 0
        %v2074 = vsel %vm945, %v2059, 0
        %v2076 = vsel %vm945, %v2061, 0
        %v2078 = vsel %vm945, %v2063, 0
        %v2080 = vsel %vm945, %v2065, 0
        %v2082 = vsel %vm945, %v2067, 0
        %v2084 = vsel %vm945, %v2069, 0
        %2086 = vmatpush.xpose.msra.mxu0 0.0
        %2087 = vmatpush.xpose.msra.mxu0 0.0
        %2088 = vmatpush.xpose.msra.mxu0 0.0
        %2089 = vmatpush.xpose.msra.mxu0 0.0
        %2090 = vmatpush.xpose.msra.mxu0 0.0
        %2091 = vmatpush.xpose.msra.mxu0 0.0
        %2092 = vmatpush.xpose.msra.mxu0 0.0
        %2093 = vmatpush.xpose.msra.mxu0 0.0
        %2094 = vmatpush.xpose.msra.mxu0 %v2084
        %2095 = vmatpush.xpose.msra.mxu0 %v2082
        %2096 = vmatpush.xpose.msra.mxu0 %v2080
        %2097 = vmatpush.xpose.msra.mxu0 %v2078
        %2098 = vmatpush.xpose.msra.mxu0 %v2076
        %2099 = vmatpush.xpose.msra.mxu0 %v2074
        %2100 = vmatpush.xpose.msra.mxu0 %v2072
        %2101 = vmatpush.xpose.msra.mxu0 %v2070
        %2102 = vmatmul.f32.gmra.mxu0 %v979
        %v2103 = vpop.f32.mrf.mxu0
        %v2104 = vadd.f32 0.0, %v2103
        %2105 = vmatmul.f32.gmra.mxu0 %v979
        %v2106 = vpop.f32.mrf.mxu0
        %v2107 = vadd.f32 0.0, %v2106
        %2108 = vmatmul.f32.gmra.mxu0 %v979
        %v2109 = vpop.f32.mrf.mxu0
        %v2110 = vadd.f32 0.0, %v2109
        %2111 = vmatmul.f32.gmra.mxu0 %v979
        %v2112 = vpop.f32.mrf.mxu0
        %v2113 = vadd.f32 0.0, %v2112
        %2114 = vmatmul.f32.gmra.mxu0 %v979
        %v2115 = vpop.f32.mrf.mxu0
        %v2116 = vadd.f32 0.0, %v2115
        %2117 = vmatmul.f32.gmra.mxu0 %v979
        %v2118 = vpop.f32.mrf.mxu0
        %v2119 = vadd.f32 0.0, %v2118
        %2120 = vmatmul.f32.gmra.mxu0 %v979
        %v2121 = vpop.f32.mrf.mxu0
        %v2122 = vadd.f32 0.0, %v2121
        %2123 = vmatmul.f32.gmra.mxu0 %v979
        %v2124 = vpop.f32.mrf.mxu0
        %v2125 = vadd.f32 0.0, %v2124
        %2126 = vdwg.mxu0
        %2127 = vrot.lane.b32.xlu0 %v1062, 64
        %v2128 = vpop.permute.xlu0 %2127
        %2129 = vrot.lane.b32.xlu0 %v1063, 64
        %v2130 = vpop.permute.xlu0 %2129
        %2131 = vrot.lane.b32.xlu0 %v1064, 64
        %v2132 = vpop.permute.xlu0 %2131
        %2133 = vrot.lane.b32.xlu0 %v1065, 64
        %v2134 = vpop.permute.xlu0 %2133
        %2135 = vrot.lane.b32.xlu0 %v1082, 64
        %v2136 = vpop.permute.xlu0 %2135
        %2137 = vrot.lane.b32.xlu0 %v1083, 64
        %v2138 = vpop.permute.xlu0 %2137
        %2139 = vrot.lane.b32.xlu0 %v1084, 64
        %v2140 = vpop.permute.xlu0 %2139
        %2141 = vrot.lane.b32.xlu0 %v1085, 64
        %v2142 = vpop.permute.xlu0 %2141
        %v2144 = vsel %vm945, %v2128, 0
        %v2147 = vsel %vm945, %v2130, 0
        %v2150 = vsel %vm945, %v2132, 0
        %v2153 = vsel %vm945, %v2134, 0
        %v2156 = vsel %vm945, %v2136, 0
        %v2159 = vsel %vm945, %v2138, 0
        %v2162 = vsel %vm945, %v2140, 0
        %v2165 = vsel %vm945, %v2142, 0
        %2167 = vmatpush.bf16.xpose.msra.mxu0 0
        %2168 = vmatpush.bf16.xpose.msra.mxu0 0
        %2169 = vmatpush.bf16.xpose.msra.mxu0 0
        %2170 = vmatpush.bf16.xpose.msra.mxu0 0
        %2171 = vmatpush.bf16.xpose.msra.mxu0 %v2165
        %2172 = vmatpush.bf16.xpose.msra.mxu0 %v2162
        %2173 = vmatpush.bf16.xpose.msra.mxu0 %v2159
        %2174 = vmatpush.bf16.xpose.msra.mxu0 %v2156
        %2175 = vmatmul.bf16.gmra.mxu0 %v2144
        %v2176 = vpop.f32.mrf.mxu0
        %v2177 = vadd.f32 0.0, %v2176
        %v2178 = vpop.f32.mrf.mxu0
        %v2179 = vadd.f32 0.0, %v2178
        %2180 = vmatmul.bf16.gmra.mxu0 %v2147
        %v2181 = vpop.f32.mrf.mxu0
        %v2182 = vadd.f32 0.0, %v2181
        %v2183 = vpop.f32.mrf.mxu0
        %v2184 = vadd.f32 0.0, %v2183
        %2185 = vmatmul.bf16.gmra.mxu0 %v2150
        %v2186 = vpop.f32.mrf.mxu0
        %v2187 = vadd.f32 0.0, %v2186
        %v2188 = vpop.f32.mrf.mxu0
        %v2189 = vadd.f32 0.0, %v2188
        %2190 = vmatmul.bf16.gmra.mxu0 %v2153
        %v2191 = vpop.f32.mrf.mxu0
        %v2192 = vadd.f32 0.0, %v2191
        %v2193 = vpop.f32.mrf.mxu0
        %v2194 = vadd.f32 0.0, %v2193
        %2195 = vdwg.mxu0
        %v2196 = vadd.f32 %v2032, %v2104
        %v2197 = vadd.f32 %v2035, %v2107
        %v2198 = vadd.f32 %v2038, %v2110
        %v2199 = vadd.f32 %v2041, %v2113
        %v2200 = vadd.f32 %v2044, %v2116
        %v2201 = vadd.f32 %v2047, %v2119
        %v2202 = vadd.f32 %v2050, %v2122
        %v2203 = vadd.f32 %v2053, %v2125
        %v2204 = vmul.f32 %v2177, 2.0
        %v2205 = vmul.f32 %v2179, 2.0
        %v2206 = vmul.f32 %v2182, 2.0
        %v2207 = vmul.f32 %v2184, 2.0
        %v2208 = vmul.f32 %v2187, 2.0
        %v2209 = vmul.f32 %v2189, 2.0
        %v2210 = vmul.f32 %v2192, 2.0
        %v2211 = vmul.f32 %v2194, 2.0
        %v2212 = vsub.f32 %v2196, %v2204
        %v2213 = vsub.f32 %v2197, %v2205
        %v2214 = vsub.f32 %v2198, %v2206
        %v2215 = vsub.f32 %v2199, %v2207
        %v2216 = vsub.f32 %v2200, %v2208
        %v2217 = vsub.f32 %v2201, %v2209
        %v2218 = vsub.f32 %v2202, %v2210
        %v2219 = vsub.f32 %v2203, %v2211
        %v2220 = vmax.f32 %v2212, 0.0
        %v2221 = vmax.f32 %v2213, 0.0
        %v2222 = vmax.f32 %v2214, 0.0
        %v2223 = vmax.f32 %v2215, 0.0
        %v2224 = vmax.f32 %v2216, 0.0
        %v2225 = vmax.f32 %v2217, 0.0
        %v2226 = vmax.f32 %v2218, 0.0
        %v2227 = vmax.f32 %v2219, 0.0
        %v2228 = vrsqrt.pop %v2220
        %v2229 = vmul.f32 %v2228, %v2220
        %v2230 = vmul.f32 %v2229, %v2228
        %v2231 = vmul.f32 0.5, %v2230
        %v2232 = vsub.f32 1.5, %v2231
        %v2233 = vmul.f32 %v2228, %v2232
        %v2234 = vmul.f32 %v2220, %v2233
        %vm2235 = vcmp.eq.f32.partialorder %v2220, inf
        %v2236 = vsel %vm2235, %v2220, %v2234
        %vm2237 = vcmp.eq.f32.partialorder %v2220, 0.0
        %v2238 = vand.u32 %v2220, 2147483648
        %v2239 = vsel %vm2237, %v2238, %v2236
        %v2240 = vrsqrt.pop %v2221
        %v2241 = vmul.f32 %v2240, %v2221
        %v2242 = vmul.f32 %v2241, %v2240
        %v2243 = vmul.f32 0.5, %v2242
        %v2244 = vsub.f32 1.5, %v2243
        %v2245 = vmul.f32 %v2240, %v2244
        %v2246 = vmul.f32 %v2221, %v2245
        %vm2247 = vcmp.eq.f32.partialorder %v2221, inf
        %v2248 = vsel %vm2247, %v2221, %v2246
        %vm2249 = vcmp.eq.f32.partialorder %v2221, 0.0
        %v2250 = vand.u32 %v2221, 2147483648
        %v2251 = vsel %vm2249, %v2250, %v2248
        %v2252 = vrsqrt.pop %v2222
        %v2253 = vmul.f32 %v2252, %v2222
        %v2254 = vmul.f32 %v2253, %v2252
        %v2255 = vmul.f32 0.5, %v2254
        %v2256 = vsub.f32 1.5, %v2255
        %v2257 = vmul.f32 %v2252, %v2256
        %v2258 = vmul.f32 %v2222, %v2257
        %vm2259 = vcmp.eq.f32.partialorder %v2222, inf
        %v2260 = vsel %vm2259, %v2222, %v2258
        %vm2261 = vcmp.eq.f32.partialorder %v2222, 0.0
        %v2262 = vand.u32 %v2222, 2147483648
        %v2263 = vsel %vm2261, %v2262, %v2260
        %v2264 = vrsqrt.pop %v2223
        %v2265 = vmul.f32 %v2264, %v2223
        %v2266 = vmul.f32 %v2265, %v2264
        %v2267 = vmul.f32 0.5, %v2266
        %v2268 = vsub.f32 1.5, %v2267
        %v2269 = vmul.f32 %v2264, %v2268
        %v2270 = vmul.f32 %v2223, %v2269
        %vm2271 = vcmp.eq.f32.partialorder %v2223, inf
        %v2272 = vsel %vm2271, %v2223, %v2270
        %vm2273 = vcmp.eq.f32.partialorder %v2223, 0.0
        %v2274 = vand.u32 %v2223, 2147483648
        %v2275 = vsel %vm2273, %v2274, %v2272
        %v2276 = vrsqrt.pop %v2224
        %v2277 = vmul.f32 %v2276, %v2224
        %v2278 = vmul.f32 %v2277, %v2276
        %v2279 = vmul.f32 0.5, %v2278
        %v2280 = vsub.f32 1.5, %v2279
        %v2281 = vmul.f32 %v2276, %v2280
        %v2282 = vmul.f32 %v2224, %v2281
        %vm2283 = vcmp.eq.f32.partialorder %v2224, inf
        %v2284 = vsel %vm2283, %v2224, %v2282
        %vm2285 = vcmp.eq.f32.partialorder %v2224, 0.0
        %v2286 = vand.u32 %v2224, 2147483648
        %v2287 = vsel %vm2285, %v2286, %v2284
        %v2288 = vrsqrt.pop %v2225
        %v2289 = vmul.f32 %v2288, %v2225
        %v2290 = vmul.f32 %v2289, %v2288
        %v2291 = vmul.f32 0.5, %v2290
        %v2292 = vsub.f32 1.5, %v2291
        %v2293 = vmul.f32 %v2288, %v2292
        %v2294 = vmul.f32 %v2225, %v2293
        %vm2295 = vcmp.eq.f32.partialorder %v2225, inf
        %v2296 = vsel %vm2295, %v2225, %v2294
        %vm2297 = vcmp.eq.f32.partialorder %v2225, 0.0
        %v2298 = vand.u32 %v2225, 2147483648
        %v2299 = vsel %vm2297, %v2298, %v2296
        %v2300 = vrsqrt.pop %v2226
        %v2301 = vmul.f32 %v2300, %v2226
        %v2302 = vmul.f32 %v2301, %v2300
        %v2303 = vmul.f32 0.5, %v2302
        %v2304 = vsub.f32 1.5, %v2303
        %v2305 = vmul.f32 %v2300, %v2304
        %v2306 = vmul.f32 %v2226, %v2305
        %vm2307 = vcmp.eq.f32.partialorder %v2226, inf
        %v2308 = vsel %vm2307, %v2226, %v2306
        %vm2309 = vcmp.eq.f32.partialorder %v2226, 0.0
        %v2310 = vand.u32 %v2226, 2147483648
        %v2311 = vsel %vm2309, %v2310, %v2308
        %v2312 = vrsqrt.pop %v2227
        %v2313 = vmul.f32 %v2312, %v2227
        %v2314 = vmul.f32 %v2313, %v2312
        %v2315 = vmul.f32 0.5, %v2314
        %v2316 = vsub.f32 1.5, %v2315
        %v2317 = vmul.f32 %v2312, %v2316
        %v2318 = vmul.f32 %v2227, %v2317
        %vm2319 = vcmp.eq.f32.partialorder %v2227, inf
        %v2320 = vsel %vm2319, %v2227, %v2318
        %vm2321 = vcmp.eq.f32.partialorder %v2227, 0.0
        %v2322 = vand.u32 %v2227, 2147483648
        %v2323 = vsel %vm2321, %v2322, %v2320
        %v2324 = vmul.f32 %v2239, 0.088388346
        %v2325 = vmul.f32 %v2251, 0.088388346
        %v2326 = vmul.f32 %v2263, 0.088388346
        %v2327 = vmul.f32 %v2275, 0.088388346
        %v2328 = vmul.f32 %v2287, 0.088388346
        %v2329 = vmul.f32 %v2299, 0.088388346
        %v2330 = vmul.f32 %v2311, 0.088388346
        %v2331 = vmul.f32 %v2323, 0.088388346
        %v2332 = vsel %vm1275, %v2324, -inf
        %2333 = vmax.xlane.f32.xlu0 %v2332
        %v2334 = vpop.xlane.xlu0 %2333
        %v2335 = vsel %vm1275, %v2325, -inf
        %2336 = vmax.xlane.f32.xlu0 %v2335
        %v2337 = vpop.xlane.xlu0 %2336
        %v2338 = vsel %vm1275, %v2326, -inf
        %2339 = vmax.xlane.f32.xlu0 %v2338
        %v2340 = vpop.xlane.xlu0 %2339
        %v2341 = vsel %vm1275, %v2327, -inf
        %2342 = vmax.xlane.f32.xlu0 %v2341
        %v2343 = vpop.xlane.xlu0 %2342
        %v2344 = vsel %vm1275, %v2328, -inf
        %2345 = vmax.xlane.f32.xlu0 %v2344
        %v2346 = vpop.xlane.xlu0 %2345
        %v2347 = vsel %vm1275, %v2329, -inf
        %2348 = vmax.xlane.f32.xlu0 %v2347
        %v2349 = vpop.xlane.xlu0 %2348
        %v2350 = vsel %vm1275, %v2330, -inf
        %2351 = vmax.xlane.f32.xlu0 %v2350
        %v2352 = vpop.xlane.xlu0 %2351
        %v2353 = vsel %vm1275, %v2331, -inf
        %2354 = vmax.xlane.f32.xlu0 %v2353
        %v2355 = vpop.xlane.xlu0 %2354
        %v2356 = vsub.f32 %v2324, %v2334
        %v2357 = vsub.f32 %v2325, %v2337
        %v2358 = vsub.f32 %v2326, %v2340
        %v2359 = vsub.f32 %v2327, %v2343
        %v2360 = vsub.f32 %v2328, %v2346
        %v2361 = vsub.f32 %v2329, %v2349
        %v2362 = vsub.f32 %v2330, %v2352
        %v2363 = vsub.f32 %v2331, %v2355
        %v2364 = vmul.f32 %v2356, 1.442695
        %v2365 = vpow.pop %v2364
        %v2366 = vmul.f32 %v2357, 1.442695
        %v2367 = vpow.pop %v2366
        %v2368 = vmul.f32 %v2358, 1.442695
        %v2369 = vpow.pop %v2368
        %v2370 = vmul.f32 %v2359, 1.442695
        %v2371 = vpow.pop %v2370
        %v2372 = vmul.f32 %v2360, 1.442695
        %v2373 = vpow.pop %v2372
        %v2374 = vmul.f32 %v2361, 1.442695
        %v2375 = vpow.pop %v2374
        %v2376 = vmul.f32 %v2362, 1.442695
        %v2377 = vpow.pop %v2376
        %v2378 = vmul.f32 %v2363, 1.442695
        %v2379 = vpow.pop %v2378
        %v2380 = vsel %vm1275, %v2365, 0.0
        %2381 = vadd.xlane.f32.xlu0 %v2380
        %v2382 = vpop.xlane.xlu0 %2381
        %v2383 = vsel %vm1275, %v2367, 0.0
        %2384 = vadd.xlane.f32.xlu0 %v2383
        %v2385 = vpop.xlane.xlu0 %2384
        %v2386 = vsel %vm1275, %v2369, 0.0
        %2387 = vadd.xlane.f32.xlu0 %v2386
        %v2388 = vpop.xlane.xlu0 %2387
        %v2389 = vsel %vm1275, %v2371, 0.0
        %2390 = vadd.xlane.f32.xlu0 %v2389
        %v2391 = vpop.xlane.xlu0 %2390
        %v2392 = vsel %vm1275, %v2373, 0.0
        %2393 = vadd.xlane.f32.xlu0 %v2392
        %v2394 = vpop.xlane.xlu0 %2393
        %v2395 = vsel %vm1275, %v2375, 0.0
        %2396 = vadd.xlane.f32.xlu0 %v2395
        %v2397 = vpop.xlane.xlu0 %2396
        %v2398 = vsel %vm1275, %v2377, 0.0
        %2399 = vadd.xlane.f32.xlu0 %v2398
        %v2400 = vpop.xlane.xlu0 %2399
        %v2401 = vsel %vm1275, %v2379, 0.0
        %2402 = vadd.xlane.f32.xlu0 %v2401
        %v2403 = vpop.xlane.xlu0 %2402
        %v2404 = vrcp.pop %v2382
        %v2405 = vrcp.pop %v2385
        %v2406 = vrcp.pop %v2388
        %v2407 = vrcp.pop %v2391
        %v2408 = vrcp.pop %v2394
        %v2409 = vrcp.pop %v2397
        %v2410 = vrcp.pop %v2400
        %v2411 = vrcp.pop %v2403
        %v2412 = vmul.f32 %v2365, %v2404
        %v2413 = vmul.f32 %v2367, %v2405
        %v2414 = vmul.f32 %v2369, %v2406
        %v2415 = vmul.f32 %v2371, %v2407
        %v2416 = vmul.f32 %v2373, %v2408
        %v2417 = vmul.f32 %v2375, %v2409
        %v2418 = vmul.f32 %v2377, %v2410
        %v2419 = vmul.f32 %v2379, %v2411
        %v2420 = vpack.c.bf16 %v2413, %v2412
        %v2421 = vpack.c.bf16 %v2415, %v2414
        %v2422 = vpack.c.bf16 %v2417, %v2416
        %v2423 = vpack.c.bf16 %v2419, %v2418
        %2424 = vrot.lane.b32.xlu0 %v917, 64
        %v2425 = vpop.permute.xlu0 %2424
        %2426 = vrot.lane.b32.xlu0 %v918, 64
        %v2427 = vpop.permute.xlu0 %2426
        %2428 = vrot.lane.b32.xlu0 %v919, 64
        %v2429 = vpop.permute.xlu0 %2428
        %2430 = vrot.lane.b32.xlu0 %v920, 64
        %v2431 = vpop.permute.xlu0 %2430
        %v2437 = vsel %vm1275, %v2420, 0
        %v2440 = vsel %vm1275, %v2421, 0
        %v2443 = vsel %vm1275, %v2422, 0
        %v2446 = vsel %vm1275, %v2423, 0
        %2448 = vmatpush.bf16.msra.mxu0 0
        %2449 = vmatpush.bf16.msra.mxu0 0
        %2450 = vmatpush.bf16.msra.mxu0 0
        %2451 = vmatpush.bf16.msra.mxu0 0
        %2452 = vmatpush.bf16.msra.mxu0 %v2431
        %2453 = vmatpush.bf16.msra.mxu0 %v2429
        %2454 = vmatpush.bf16.msra.mxu0 %v2427
        %2455 = vmatpush.bf16.msra.mxu0 %v2425
        %2456 = vmatmul.bf16.gmra.mxu0 %v2437
        %v2457 = vpop.f32.mrf.mxu0
        %v2458 = vadd.f32 0.0, %v2457
        %v2459 = vpop.f32.mrf.mxu0
        %v2460 = vadd.f32 0.0, %v2459
        %2461 = vmatmul.bf16.gmra.mxu0 %v2440
        %v2462 = vpop.f32.mrf.mxu0
        %v2463 = vadd.f32 0.0, %v2462
        %v2464 = vpop.f32.mrf.mxu0
        %v2465 = vadd.f32 0.0, %v2464
        %2466 = vmatmul.bf16.gmra.mxu0 %v2443
        %v2467 = vpop.f32.mrf.mxu0
        %v2468 = vadd.f32 0.0, %v2467
        %v2469 = vpop.f32.mrf.mxu0
        %v2470 = vadd.f32 0.0, %v2469
        %2471 = vmatmul.bf16.gmra.mxu0 %v2446
        %v2472 = vpop.f32.mrf.mxu0
        %v2473 = vadd.f32 0.0, %v2472
        %v2474 = vpop.f32.mrf.mxu0
        %v2475 = vadd.f32 0.0, %v2474
        %2476 = vdwg.mxu0
        %v2477 = vpack.c.bf16 %v2460, %v2458
        %v2478 = vpack.c.bf16 %v2465, %v2463
        %v2479 = vpack.c.bf16 %v2470, %v2468
        %v2480 = vpack.c.bf16 %v2475, %v2473
        %v2485 = vunpack.c.l.b16 %v893
        %v2486 = vunpack.c.l.b16 %v894
        %v2487 = vunpack.c.l.b16 %v895
        %v2488 = vunpack.c.l.b16 %v896
        %v2489 = vpack.c.b16 %v2486, %v2485
        %v2490 = vpack.c.b16 %v2488, %v2487
        %v2494 = vsel %vm945, %v2477, 0
        %v2497 = vsel %vm945, %v2478, 0
        %v2500 = vsel %vm945, %v2479, 0
        %v2503 = vsel %vm945, %v2480, 0
        %2505 = vmatpush.bf16.msra.mxu0 0
        %2506 = vmatpush.bf16.msra.mxu0 0
        %2507 = vmatpush.bf16.msra.mxu0 0
        %2508 = vmatpush.bf16.msra.mxu0 0
        %2509 = vmatpush.bf16.msra.mxu0 0
        %2510 = vmatpush.bf16.msra.mxu0 0
        %2511 = vmatpush.bf16.msra.mxu0 %v2490
        %2512 = vmatpush.bf16.msra.mxu0 %v2489
        %2513 = vmatmul.bf16.gmra.mxu0 %v2494
        %v2514 = vpop.f32.mrf.mxu0
        %v2515 = vadd.f32 0.0, %v2514
        %v2516 = vpop.f32.mrf.mxu0
        %v2517 = vadd.f32 0.0, %v2516
        %2518 = vmatmul.bf16.gmra.mxu0 %v2497
        %v2519 = vpop.f32.mrf.mxu0
        %v2520 = vadd.f32 0.0, %v2519
        %v2521 = vpop.f32.mrf.mxu0
        %v2522 = vadd.f32 0.0, %v2521
        %2523 = vmatmul.bf16.gmra.mxu0 %v2500
        %v2524 = vpop.f32.mrf.mxu0
        %v2525 = vadd.f32 0.0, %v2524
        %v2526 = vpop.f32.mrf.mxu0
        %v2527 = vadd.f32 0.0, %v2526
        %2528 = vmatmul.bf16.gmra.mxu0 %v2503
        %v2529 = vpop.f32.mrf.mxu0
        %v2530 = vadd.f32 0.0, %v2529
        %v2531 = vpop.f32.mrf.mxu0
        %v2532 = vadd.f32 0.0, %v2531
        %2533 = vdwg.mxu0
        %v2534 = vadd.f32 %v1987, %v2515
        %v2535 = vadd.f32 %v1989, %v2517
        %v2536 = vadd.f32 %v1992, %v2520
        %v2537 = vadd.f32 %v1994, %v2522
        %v2538 = vadd.f32 %v1997, %v2525
        %v2539 = vadd.f32 %v1999, %v2527
        %v2540 = vadd.f32 %v2002, %v2530
        %v2541 = vadd.f32 %v2004, %v2532
        %2542 = vrot.lane.b32.xlu0 %v937, 32
        %v2543 = vpop.permute.xlu0 %2542
        %2544 = vrot.lane.b32.xlu0 %v938, 32
        %v2545 = vpop.permute.xlu0 %2544
        %2546 = vrot.lane.b32.xlu0 %v939, 32
        %v2547 = vpop.permute.xlu0 %2546
        %2548 = vrot.lane.b32.xlu0 %v940, 32
        %v2549 = vpop.permute.xlu0 %2548
        %2550 = vrot.lane.b32.xlu0 %v941, 32
        %v2551 = vpop.permute.xlu0 %2550
        %2552 = vrot.lane.b32.xlu0 %v942, 32
        %v2553 = vpop.permute.xlu0 %2552
        %2554 = vrot.lane.b32.xlu0 %v943, 32
        %v2555 = vpop.permute.xlu0 %2554
        %2556 = vrot.lane.b32.xlu0 %v944, 32
        %v2557 = vpop.permute.xlu0 %2556
        %v2566 = vsel %vm945, %v2543, 0.0
        %2567 = vadd.xlane.f32.xlu0 %v2566
        %v2568 = vpop.xlane.xlu0 %2567
        %v2569 = vsel %vm945, %v2545, 0.0
        %2570 = vadd.xlane.f32.xlu0 %v2569
        %v2571 = vpop.xlane.xlu0 %2570
        %v2572 = vsel %vm945, %v2547, 0.0
        %2573 = vadd.xlane.f32.xlu0 %v2572
        %v2574 = vpop.xlane.xlu0 %2573
        %v2575 = vsel %vm945, %v2549, 0.0
        %2576 = vadd.xlane.f32.xlu0 %v2575
        %v2577 = vpop.xlane.xlu0 %2576
        %v2578 = vsel %vm945, %v2551, 0.0
        %2579 = vadd.xlane.f32.xlu0 %v2578
        %v2580 = vpop.xlane.xlu0 %2579
        %v2581 = vsel %vm945, %v2553, 0.0
        %2582 = vadd.xlane.f32.xlu0 %v2581
        %v2583 = vpop.xlane.xlu0 %2582
        %v2584 = vsel %vm945, %v2555, 0.0
        %2585 = vadd.xlane.f32.xlu0 %v2584
        %v2586 = vpop.xlane.xlu0 %2585
        %v2587 = vsel %vm945, %v2557, 0.0
        %2588 = vadd.xlane.f32.xlu0 %v2587
        %v2589 = vpop.xlane.xlu0 %2588
        %2590 = vrot.lane.b32.xlu0 %v970, 32
        %v2591 = vpop.permute.xlu0 %2590
        %2592 = vrot.lane.b32.xlu0 %v971, 32
        %v2593 = vpop.permute.xlu0 %2592
        %2594 = vrot.lane.b32.xlu0 %v972, 32
        %v2595 = vpop.permute.xlu0 %2594
        %2596 = vrot.lane.b32.xlu0 %v973, 32
        %v2597 = vpop.permute.xlu0 %2596
        %2598 = vrot.lane.b32.xlu0 %v974, 32
        %v2599 = vpop.permute.xlu0 %2598
        %2600 = vrot.lane.b32.xlu0 %v975, 32
        %v2601 = vpop.permute.xlu0 %2600
        %2602 = vrot.lane.b32.xlu0 %v976, 32
        %v2603 = vpop.permute.xlu0 %2602
        %2604 = vrot.lane.b32.xlu0 %v977, 32
        %v2605 = vpop.permute.xlu0 %2604
        %v2606 = vsel %vm945, %v2591, 0
        %v2608 = vsel %vm945, %v2593, 0
        %v2610 = vsel %vm945, %v2595, 0
        %v2612 = vsel %vm945, %v2597, 0
        %v2614 = vsel %vm945, %v2599, 0
        %v2616 = vsel %vm945, %v2601, 0
        %v2618 = vsel %vm945, %v2603, 0
        %v2620 = vsel %vm945, %v2605, 0
        %2622 = vmatpush.xpose.msra.mxu0 0.0
        %2623 = vmatpush.xpose.msra.mxu0 0.0
        %2624 = vmatpush.xpose.msra.mxu0 0.0
        %2625 = vmatpush.xpose.msra.mxu0 0.0
        %2626 = vmatpush.xpose.msra.mxu0 0.0
        %2627 = vmatpush.xpose.msra.mxu0 0.0
        %2628 = vmatpush.xpose.msra.mxu0 0.0
        %2629 = vmatpush.xpose.msra.mxu0 0.0
        %2630 = vmatpush.xpose.msra.mxu0 %v2620
        %2631 = vmatpush.xpose.msra.mxu0 %v2618
        %2632 = vmatpush.xpose.msra.mxu0 %v2616
        %2633 = vmatpush.xpose.msra.mxu0 %v2614
        %2634 = vmatpush.xpose.msra.mxu0 %v2612
        %2635 = vmatpush.xpose.msra.mxu0 %v2610
        %2636 = vmatpush.xpose.msra.mxu0 %v2608
        %2637 = vmatpush.xpose.msra.mxu0 %v2606
        %2638 = vmatmul.f32.gmra.mxu0 %v979
        %v2639 = vpop.f32.mrf.mxu0
        %v2640 = vadd.f32 0.0, %v2639
        %2641 = vmatmul.f32.gmra.mxu0 %v979
        %v2642 = vpop.f32.mrf.mxu0
        %v2643 = vadd.f32 0.0, %v2642
        %2644 = vmatmul.f32.gmra.mxu0 %v979
        %v2645 = vpop.f32.mrf.mxu0
        %v2646 = vadd.f32 0.0, %v2645
        %2647 = vmatmul.f32.gmra.mxu0 %v979
        %v2648 = vpop.f32.mrf.mxu0
        %v2649 = vadd.f32 0.0, %v2648
        %2650 = vmatmul.f32.gmra.mxu0 %v979
        %v2651 = vpop.f32.mrf.mxu0
        %v2652 = vadd.f32 0.0, %v2651
        %2653 = vmatmul.f32.gmra.mxu0 %v979
        %v2654 = vpop.f32.mrf.mxu0
        %v2655 = vadd.f32 0.0, %v2654
        %2656 = vmatmul.f32.gmra.mxu0 %v979
        %v2657 = vpop.f32.mrf.mxu0
        %v2658 = vadd.f32 0.0, %v2657
        %2659 = vmatmul.f32.gmra.mxu0 %v979
        %v2660 = vpop.f32.mrf.mxu0
        %v2661 = vadd.f32 0.0, %v2660
        %2662 = vdwg.mxu0
        %2663 = vrot.lane.b32.xlu0 %v1062, 32
        %v2664 = vpop.permute.xlu0 %2663
        %2665 = vrot.lane.b32.xlu0 %v1063, 32
        %v2666 = vpop.permute.xlu0 %2665
        %2667 = vrot.lane.b32.xlu0 %v1064, 32
        %v2668 = vpop.permute.xlu0 %2667
        %2669 = vrot.lane.b32.xlu0 %v1065, 32
        %v2670 = vpop.permute.xlu0 %2669
        %2671 = vrot.lane.b32.xlu0 %v1082, 32
        %v2672 = vpop.permute.xlu0 %2671
        %2673 = vrot.lane.b32.xlu0 %v1083, 32
        %v2674 = vpop.permute.xlu0 %2673
        %2675 = vrot.lane.b32.xlu0 %v1084, 32
        %v2676 = vpop.permute.xlu0 %2675
        %2677 = vrot.lane.b32.xlu0 %v1085, 32
        %v2678 = vpop.permute.xlu0 %2677
        %v2680 = vsel %vm945, %v2664, 0
        %v2683 = vsel %vm945, %v2666, 0
        %v2686 = vsel %vm945, %v2668, 0
        %v2689 = vsel %vm945, %v2670, 0
        %v2692 = vsel %vm945, %v2672, 0
        %v2695 = vsel %vm945, %v2674, 0
        %v2698 = vsel %vm945, %v2676, 0
        %v2701 = vsel %vm945, %v2678, 0
        %2703 = vmatpush.bf16.xpose.msra.mxu0 0
        %2704 = vmatpush.bf16.xpose.msra.mxu0 0
        %2705 = vmatpush.bf16.xpose.msra.mxu0 0
        %2706 = vmatpush.bf16.xpose.msra.mxu0 0
        %2707 = vmatpush.bf16.xpose.msra.mxu0 %v2701
        %2708 = vmatpush.bf16.xpose.msra.mxu0 %v2698
        %2709 = vmatpush.bf16.xpose.msra.mxu0 %v2695
        %2710 = vmatpush.bf16.xpose.msra.mxu0 %v2692
        %2711 = vmatmul.bf16.gmra.mxu0 %v2680
        %v2712 = vpop.f32.mrf.mxu0
        %v2713 = vadd.f32 0.0, %v2712
        %v2714 = vpop.f32.mrf.mxu0
        %v2715 = vadd.f32 0.0, %v2714
        %2716 = vmatmul.bf16.gmra.mxu0 %v2683
        %v2717 = vpop.f32.mrf.mxu0
        %v2718 = vadd.f32 0.0, %v2717
        %v2719 = vpop.f32.mrf.mxu0
        %v2720 = vadd.f32 0.0, %v2719
        %2721 = vmatmul.bf16.gmra.mxu0 %v2686
        %v2722 = vpop.f32.mrf.mxu0
        %v2723 = vadd.f32 0.0, %v2722
        %v2724 = vpop.f32.mrf.mxu0
        %v2725 = vadd.f32 0.0, %v2724
        %2726 = vmatmul.bf16.gmra.mxu0 %v2689
        %v2727 = vpop.f32.mrf.mxu0
        %v2728 = vadd.f32 0.0, %v2727
        %v2729 = vpop.f32.mrf.mxu0
        %v2730 = vadd.f32 0.0, %v2729
        %2731 = vdwg.mxu0
        %v2732 = vadd.f32 %v2568, %v2640
        %v2733 = vadd.f32 %v2571, %v2643
        %v2734 = vadd.f32 %v2574, %v2646
        %v2735 = vadd.f32 %v2577, %v2649
        %v2736 = vadd.f32 %v2580, %v2652
        %v2737 = vadd.f32 %v2583, %v2655
        %v2738 = vadd.f32 %v2586, %v2658
        %v2739 = vadd.f32 %v2589, %v2661
        %v2740 = vmul.f32 %v2713, 2.0
        %v2741 = vmul.f32 %v2715, 2.0
        %v2742 = vmul.f32 %v2718, 2.0
        %v2743 = vmul.f32 %v2720, 2.0
        %v2744 = vmul.f32 %v2723, 2.0
        %v2745 = vmul.f32 %v2725, 2.0
        %v2746 = vmul.f32 %v2728, 2.0
        %v2747 = vmul.f32 %v2730, 2.0
        %v2748 = vsub.f32 %v2732, %v2740
        %v2749 = vsub.f32 %v2733, %v2741
        %v2750 = vsub.f32 %v2734, %v2742
        %v2751 = vsub.f32 %v2735, %v2743
        %v2752 = vsub.f32 %v2736, %v2744
        %v2753 = vsub.f32 %v2737, %v2745
        %v2754 = vsub.f32 %v2738, %v2746
        %v2755 = vsub.f32 %v2739, %v2747
        %v2756 = vmax.f32 %v2748, 0.0
        %v2757 = vmax.f32 %v2749, 0.0
        %v2758 = vmax.f32 %v2750, 0.0
        %v2759 = vmax.f32 %v2751, 0.0
        %v2760 = vmax.f32 %v2752, 0.0
        %v2761 = vmax.f32 %v2753, 0.0
        %v2762 = vmax.f32 %v2754, 0.0
        %v2763 = vmax.f32 %v2755, 0.0
        %v2764 = vrsqrt.pop %v2756
        %v2765 = vmul.f32 %v2764, %v2756
        %v2766 = vmul.f32 %v2765, %v2764
        %v2767 = vmul.f32 0.5, %v2766
        %v2768 = vsub.f32 1.5, %v2767
        %v2769 = vmul.f32 %v2764, %v2768
        %v2770 = vmul.f32 %v2756, %v2769
        %vm2771 = vcmp.eq.f32.partialorder %v2756, inf
        %v2772 = vsel %vm2771, %v2756, %v2770
        %vm2773 = vcmp.eq.f32.partialorder %v2756, 0.0
        %v2774 = vand.u32 %v2756, 2147483648
        %v2775 = vsel %vm2773, %v2774, %v2772
        %v2776 = vrsqrt.pop %v2757
        %v2777 = vmul.f32 %v2776, %v2757
        %v2778 = vmul.f32 %v2777, %v2776
        %v2779 = vmul.f32 0.5, %v2778
        %v2780 = vsub.f32 1.5, %v2779
        %v2781 = vmul.f32 %v2776, %v2780
        %v2782 = vmul.f32 %v2757, %v2781
        %vm2783 = vcmp.eq.f32.partialorder %v2757, inf
        %v2784 = vsel %vm2783, %v2757, %v2782
        %vm2785 = vcmp.eq.f32.partialorder %v2757, 0.0
        %v2786 = vand.u32 %v2757, 2147483648
        %v2787 = vsel %vm2785, %v2786, %v2784
        %v2788 = vrsqrt.pop %v2758
        %v2789 = vmul.f32 %v2788, %v2758
        %v2790 = vmul.f32 %v2789, %v2788
        %v2791 = vmul.f32 0.5, %v2790
        %v2792 = vsub.f32 1.5, %v2791
        %v2793 = vmul.f32 %v2788, %v2792
        %v2794 = vmul.f32 %v2758, %v2793
        %vm2795 = vcmp.eq.f32.partialorder %v2758, inf
        %v2796 = vsel %vm2795, %v2758, %v2794
        %vm2797 = vcmp.eq.f32.partialorder %v2758, 0.0
        %v2798 = vand.u32 %v2758, 2147483648
        %v2799 = vsel %vm2797, %v2798, %v2796
        %v2800 = vrsqrt.pop %v2759
        %v2801 = vmul.f32 %v2800, %v2759
        %v2802 = vmul.f32 %v2801, %v2800
        %v2803 = vmul.f32 0.5, %v2802
        %v2804 = vsub.f32 1.5, %v2803
        %v2805 = vmul.f32 %v2800, %v2804
        %v2806 = vmul.f32 %v2759, %v2805
        %vm2807 = vcmp.eq.f32.partialorder %v2759, inf
        %v2808 = vsel %vm2807, %v2759, %v2806
        %vm2809 = vcmp.eq.f32.partialorder %v2759, 0.0
        %v2810 = vand.u32 %v2759, 2147483648
        %v2811 = vsel %vm2809, %v2810, %v2808
        %v2812 = vrsqrt.pop %v2760
        %v2813 = vmul.f32 %v2812, %v2760
        %v2814 = vmul.f32 %v2813, %v2812
        %v2815 = vmul.f32 0.5, %v2814
        %v2816 = vsub.f32 1.5, %v2815
        %v2817 = vmul.f32 %v2812, %v2816
        %v2818 = vmul.f32 %v2760, %v2817
        %vm2819 = vcmp.eq.f32.partialorder %v2760, inf
        %v2820 = vsel %vm2819, %v2760, %v2818
        %vm2821 = vcmp.eq.f32.partialorder %v2760, 0.0
        %v2822 = vand.u32 %v2760, 2147483648
        %v2823 = vsel %vm2821, %v2822, %v2820
        %v2824 = vrsqrt.pop %v2761
        %v2825 = vmul.f32 %v2824, %v2761
        %v2826 = vmul.f32 %v2825, %v2824
        %v2827 = vmul.f32 0.5, %v2826
        %v2828 = vsub.f32 1.5, %v2827
        %v2829 = vmul.f32 %v2824, %v2828
        %v2830 = vmul.f32 %v2761, %v2829
        %vm2831 = vcmp.eq.f32.partialorder %v2761, inf
        %v2832 = vsel %vm2831, %v2761, %v2830
        %vm2833 = vcmp.eq.f32.partialorder %v2761, 0.0
        %v2834 = vand.u32 %v2761, 2147483648
        %v2835 = vsel %vm2833, %v2834, %v2832
        %v2836 = vrsqrt.pop %v2762
        %v2837 = vmul.f32 %v2836, %v2762
        %v2838 = vmul.f32 %v2837, %v2836
        %v2839 = vmul.f32 0.5, %v2838
        %v2840 = vsub.f32 1.5, %v2839
        %v2841 = vmul.f32 %v2836, %v2840
        %v2842 = vmul.f32 %v2762, %v2841
        %vm2843 = vcmp.eq.f32.partialorder %v2762, inf
        %v2844 = vsel %vm2843, %v2762, %v2842
        %vm2845 = vcmp.eq.f32.partialorder %v2762, 0.0
        %v2846 = vand.u32 %v2762, 2147483648
        %v2847 = vsel %vm2845, %v2846, %v2844
        %v2848 = vrsqrt.pop %v2763
        %v2849 = vmul.f32 %v2848, %v2763
        %v2850 = vmul.f32 %v2849, %v2848
        %v2851 = vmul.f32 0.5, %v2850
        %v2852 = vsub.f32 1.5, %v2851
        %v2853 = vmul.f32 %v2848, %v2852
        %v2854 = vmul.f32 %v2763, %v2853
        %vm2855 = vcmp.eq.f32.partialorder %v2763, inf
        %v2856 = vsel %vm2855, %v2763, %v2854
        %vm2857 = vcmp.eq.f32.partialorder %v2763, 0.0
        %v2858 = vand.u32 %v2763, 2147483648
        %v2859 = vsel %vm2857, %v2858, %v2856
        %v2860 = vmul.f32 %v2775, 0.088388346
        %v2861 = vmul.f32 %v2787, 0.088388346
        %v2862 = vmul.f32 %v2799, 0.088388346
        %v2863 = vmul.f32 %v2811, 0.088388346
        %v2864 = vmul.f32 %v2823, 0.088388346
        %v2865 = vmul.f32 %v2835, 0.088388346
        %v2866 = vmul.f32 %v2847, 0.088388346
        %v2867 = vmul.f32 %v2859, 0.088388346
        %v2868 = vsel %vm1275, %v2860, -inf
        %2869 = vmax.xlane.f32.xlu0 %v2868
        %v2870 = vpop.xlane.xlu0 %2869
        %v2871 = vsel %vm1275, %v2861, -inf
        %2872 = vmax.xlane.f32.xlu0 %v2871
        %v2873 = vpop.xlane.xlu0 %2872
        %v2874 = vsel %vm1275, %v2862, -inf
        %2875 = vmax.xlane.f32.xlu0 %v2874
        %v2876 = vpop.xlane.xlu0 %2875
        %v2877 = vsel %vm1275, %v2863, -inf
        %2878 = vmax.xlane.f32.xlu0 %v2877
        %v2879 = vpop.xlane.xlu0 %2878
        %v2880 = vsel %vm1275, %v2864, -inf
        %2881 = vmax.xlane.f32.xlu0 %v2880
        %v2882 = vpop.xlane.xlu0 %2881
        %v2883 = vsel %vm1275, %v2865, -inf
        %2884 = vmax.xlane.f32.xlu0 %v2883
        %v2885 = vpop.xlane.xlu0 %2884
        %v2886 = vsel %vm1275, %v2866, -inf
        %2887 = vmax.xlane.f32.xlu0 %v2886
        %v2888 = vpop.xlane.xlu0 %2887
        %v2889 = vsel %vm1275, %v2867, -inf
        %2890 = vmax.xlane.f32.xlu0 %v2889
        %v2891 = vpop.xlane.xlu0 %2890
        %v2892 = vsub.f32 %v2860, %v2870
        %v2893 = vsub.f32 %v2861, %v2873
        %v2894 = vsub.f32 %v2862, %v2876
        %v2895 = vsub.f32 %v2863, %v2879
        %v2896 = vsub.f32 %v2864, %v2882
        %v2897 = vsub.f32 %v2865, %v2885
        %v2898 = vsub.f32 %v2866, %v2888
        %v2899 = vsub.f32 %v2867, %v2891
        %v2900 = vmul.f32 %v2892, 1.442695
        %v2901 = vpow.pop %v2900
        %v2902 = vmul.f32 %v2893, 1.442695
        %v2903 = vpow.pop %v2902
        %v2904 = vmul.f32 %v2894, 1.442695
        %v2905 = vpow.pop %v2904
        %v2906 = vmul.f32 %v2895, 1.442695
        %v2907 = vpow.pop %v2906
        %v2908 = vmul.f32 %v2896, 1.442695
        %v2909 = vpow.pop %v2908
        %v2910 = vmul.f32 %v2897, 1.442695
        %v2911 = vpow.pop %v2910
        %v2912 = vmul.f32 %v2898, 1.442695
        %v2913 = vpow.pop %v2912
        %v2914 = vmul.f32 %v2899, 1.442695
        %v2915 = vpow.pop %v2914
        %v2916 = vsel %vm1275, %v2901, 0.0
        %2917 = vadd.xlane.f32.xlu0 %v2916
        %v2918 = vpop.xlane.xlu0 %2917
        %v2919 = vsel %vm1275, %v2903, 0.0
        %2920 = vadd.xlane.f32.xlu0 %v2919
        %v2921 = vpop.xlane.xlu0 %2920
        %v2922 = vsel %vm1275, %v2905, 0.0
        %2923 = vadd.xlane.f32.xlu0 %v2922
        %v2924 = vpop.xlane.xlu0 %2923
        %v2925 = vsel %vm1275, %v2907, 0.0
        %2926 = vadd.xlane.f32.xlu0 %v2925
        %v2927 = vpop.xlane.xlu0 %2926
        %v2928 = vsel %vm1275, %v2909, 0.0
        %2929 = vadd.xlane.f32.xlu0 %v2928
        %v2930 = vpop.xlane.xlu0 %2929
        %v2931 = vsel %vm1275, %v2911, 0.0
        %2932 = vadd.xlane.f32.xlu0 %v2931
        %v2933 = vpop.xlane.xlu0 %2932
        %v2934 = vsel %vm1275, %v2913, 0.0
        %2935 = vadd.xlane.f32.xlu0 %v2934
        %v2936 = vpop.xlane.xlu0 %2935
        %v2937 = vsel %vm1275, %v2915, 0.0
        %2938 = vadd.xlane.f32.xlu0 %v2937
        %v2939 = vpop.xlane.xlu0 %2938
        %v2940 = vrcp.pop %v2918
        %v2941 = vrcp.pop %v2921
        %v2942 = vrcp.pop %v2924
        %v2943 = vrcp.pop %v2927
        %v2944 = vrcp.pop %v2930
        %v2945 = vrcp.pop %v2933
        %v2946 = vrcp.pop %v2936
        %v2947 = vrcp.pop %v2939
        %v2948 = vmul.f32 %v2901, %v2940
        %v2949 = vmul.f32 %v2903, %v2941
        %v2950 = vmul.f32 %v2905, %v2942
        %v2951 = vmul.f32 %v2907, %v2943
        %v2952 = vmul.f32 %v2909, %v2944
        %v2953 = vmul.f32 %v2911, %v2945
        %v2954 = vmul.f32 %v2913, %v2946
        %v2955 = vmul.f32 %v2915, %v2947
        %v2956 = vpack.c.bf16 %v2949, %v2948
        %v2957 = vpack.c.bf16 %v2951, %v2950
        %v2958 = vpack.c.bf16 %v2953, %v2952
        %v2959 = vpack.c.bf16 %v2955, %v2954
        %2960 = vrot.lane.b32.xlu0 %v917, 32
        %v2961 = vpop.permute.xlu0 %2960
        %2962 = vrot.lane.b32.xlu0 %v918, 32
        %v2963 = vpop.permute.xlu0 %2962
        %2964 = vrot.lane.b32.xlu0 %v919, 32
        %v2965 = vpop.permute.xlu0 %2964
        %2966 = vrot.lane.b32.xlu0 %v920, 32
        %v2967 = vpop.permute.xlu0 %2966
        %v2973 = vsel %vm1275, %v2956, 0
        %v2976 = vsel %vm1275, %v2957, 0
        %v2979 = vsel %vm1275, %v2958, 0
        %v2982 = vsel %vm1275, %v2959, 0
        %2984 = vmatpush.bf16.msra.mxu0 0
        %2985 = vmatpush.bf16.msra.mxu0 0
        %2986 = vmatpush.bf16.msra.mxu0 0
        %2987 = vmatpush.bf16.msra.mxu0 0
        %2988 = vmatpush.bf16.msra.mxu0 %v2967
        %2989 = vmatpush.bf16.msra.mxu0 %v2965
        %2990 = vmatpush.bf16.msra.mxu0 %v2963
        %2991 = vmatpush.bf16.msra.mxu0 %v2961
        %2992 = vmatmul.bf16.gmra.mxu0 %v2973
        %v2993 = vpop.f32.mrf.mxu0
        %v2994 = vadd.f32 0.0, %v2993
        %v2995 = vpop.f32.mrf.mxu0
        %v2996 = vadd.f32 0.0, %v2995
        %2997 = vmatmul.bf16.gmra.mxu0 %v2976
        %v2998 = vpop.f32.mrf.mxu0
        %v2999 = vadd.f32 0.0, %v2998
        %v3000 = vpop.f32.mrf.mxu0
        %v3001 = vadd.f32 0.0, %v3000
        %3002 = vmatmul.bf16.gmra.mxu0 %v2979
        %v3003 = vpop.f32.mrf.mxu0
        %v3004 = vadd.f32 0.0, %v3003
        %v3005 = vpop.f32.mrf.mxu0
        %v3006 = vadd.f32 0.0, %v3005
        %3007 = vmatmul.bf16.gmra.mxu0 %v2982
        %v3008 = vpop.f32.mrf.mxu0
        %v3009 = vadd.f32 0.0, %v3008
        %v3010 = vpop.f32.mrf.mxu0
        %v3011 = vadd.f32 0.0, %v3010
        %3012 = vdwg.mxu0
        %v3013 = vpack.c.bf16 %v2996, %v2994
        %v3014 = vpack.c.bf16 %v3001, %v2999
        %v3015 = vpack.c.bf16 %v3006, %v3004
        %v3016 = vpack.c.bf16 %v3011, %v3009
        %v3021 = vunpack.c.l.b16 %v897
        %v3022 = vunpack.c.l.b16 %v898
        %v3023 = vunpack.c.l.b16 %v899
        %v3024 = vunpack.c.l.b16 %v900
        %v3025 = vpack.c.b16 %v3022, %v3021
        %v3026 = vpack.c.b16 %v3024, %v3023
        %v3030 = vsel %vm945, %v3013, 0
        %v3033 = vsel %vm945, %v3014, 0
        %v3036 = vsel %vm945, %v3015, 0
        %v3039 = vsel %vm945, %v3016, 0
        %3041 = vmatpush.bf16.msra.mxu0 0
        %3042 = vmatpush.bf16.msra.mxu0 0
        %3043 = vmatpush.bf16.msra.mxu0 0
        %3044 = vmatpush.bf16.msra.mxu0 0
        %3045 = vmatpush.bf16.msra.mxu0 0
        %3046 = vmatpush.bf16.msra.mxu0 0
        %3047 = vmatpush.bf16.msra.mxu0 %v3026
        %3048 = vmatpush.bf16.msra.mxu0 %v3025
        %3049 = vmatmul.bf16.gmra.mxu0 %v3030
        %v3050 = vpop.f32.mrf.mxu0
        %v3051 = vadd.f32 0.0, %v3050
        %v3052 = vpop.f32.mrf.mxu0
        %v3053 = vadd.f32 0.0, %v3052
        %3054 = vmatmul.bf16.gmra.mxu0 %v3033
        %v3055 = vpop.f32.mrf.mxu0
        %v3056 = vadd.f32 0.0, %v3055
        %v3057 = vpop.f32.mrf.mxu0
        %v3058 = vadd.f32 0.0, %v3057
        %3059 = vmatmul.bf16.gmra.mxu0 %v3036
        %v3060 = vpop.f32.mrf.mxu0
        %v3061 = vadd.f32 0.0, %v3060
        %v3062 = vpop.f32.mrf.mxu0
        %v3063 = vadd.f32 0.0, %v3062
        %3064 = vmatmul.bf16.gmra.mxu0 %v3039
        %v3065 = vpop.f32.mrf.mxu0
        %v3066 = vadd.f32 0.0, %v3065
        %v3067 = vpop.f32.mrf.mxu0
        %v3068 = vadd.f32 0.0, %v3067
        %3069 = vdwg.mxu0
        %v3070 = vadd.f32 %v2534, %v3051
        %v3071 = vadd.f32 %v2535, %v3053
        %v3072 = vadd.f32 %v2536, %v3056
        %v3073 = vadd.f32 %v2537, %v3058
        %v3074 = vadd.f32 %v2538, %v3061
        %v3075 = vadd.f32 %v2539, %v3063
        %v3076 = vadd.f32 %v2540, %v3066
        %v3077 = vadd.f32 %v2541, %v3068
        %v3078 = vld [vmem:[%s5] sm:$0x1]
        %v3080 = vperm.slane %v3078, 0
        %v3082 = vadd.f32 %v3070, %v3080
        %v3083 = vadd.f32 %v3071, %v3080
        %v3084 = vadd.f32 %v3072, %v3080
        %v3085 = vadd.f32 %v3073, %v3080
        %v3086 = vadd.f32 %v3074, %v3080
        %v3087 = vadd.f32 %v3075, %v3080
        %v3088 = vadd.f32 %v3076, %v3080
        %v3089 = vadd.f32 %v3077, %v3080
        %v3090 = vadd.f32 %v435, %v3082
        %v3091 = vadd.f32 %v436, %v3083
        %v3092 = vadd.f32 %v437, %v3084
        %v3093 = vadd.f32 %v438, %v3085
        %v3094 = vadd.f32 %v439, %v3086
        %v3095 = vadd.f32 %v440, %v3087
        %v3096 = vadd.f32 %v441, %v3088
        %v3097 = vadd.f32 %v442, %v3089
        %v3098 = vld [vmem:[%s6] sm:$0x1]
        %v3099 = vld [vmem:[%s7] sm:$0x1]
        %3100 = vadd.xlane.f32.xlu0 %v3090
        %v3101 = vpop.xlane.xlu0 %3100
        %3102 = vadd.xlane.f32.xlu0 %v3091
        %v3103 = vpop.xlane.xlu0 %3102
        %3104 = vadd.xlane.f32.xlu0 %v3092
        %v3105 = vpop.xlane.xlu0 %3104
        %3106 = vadd.xlane.f32.xlu0 %v3093
        %v3107 = vpop.xlane.xlu0 %3106
        %3108 = vadd.xlane.f32.xlu0 %v3094
        %v3109 = vpop.xlane.xlu0 %3108
        %3110 = vadd.xlane.f32.xlu0 %v3095
        %v3111 = vpop.xlane.xlu0 %3110
        %3112 = vadd.xlane.f32.xlu0 %v3096
        %v3113 = vpop.xlane.xlu0 %3112
        %3114 = vadd.xlane.f32.xlu0 %v3097
        %v3115 = vpop.xlane.xlu0 %3114
        %v3116 = vmul.f32 %v3101, %v467
        %v3117 = vmul.f32 %v3103, %v467
        %v3118 = vmul.f32 %v3105, %v467
        %v3119 = vmul.f32 %v3107, %v467
        %v3120 = vmul.f32 %v3109, %v467
        %v3121 = vmul.f32 %v3111, %v467
        %v3122 = vmul.f32 %v3113, %v467
        %v3123 = vmul.f32 %v3115, %v467
        %v3124 = vsub.f32 %v3090, %v3116
        %v3125 = vsub.f32 %v3091, %v3117
        %v3126 = vsub.f32 %v3092, %v3118
        %v3127 = vsub.f32 %v3093, %v3119
        %v3128 = vsub.f32 %v3094, %v3120
        %v3129 = vsub.f32 %v3095, %v3121
        %v3130 = vsub.f32 %v3096, %v3122
        %v3131 = vsub.f32 %v3097, %v3123
        %v3132 = vmul.f32 %v3124, %v3124
        %v3133 = vmul.f32 %v3125, %v3125
        %v3134 = vmul.f32 %v3126, %v3126
        %v3135 = vmul.f32 %v3127, %v3127
        %v3136 = vmul.f32 %v3128, %v3128
        %v3137 = vmul.f32 %v3129, %v3129
        %v3138 = vmul.f32 %v3130, %v3130
        %v3139 = vmul.f32 %v3131, %v3131
        %3140 = vadd.xlane.f32.xlu0 %v3132
        %v3141 = vpop.xlane.xlu0 %3140
        %3142 = vadd.xlane.f32.xlu0 %v3133
        %v3143 = vpop.xlane.xlu0 %3142
        %3144 = vadd.xlane.f32.xlu0 %v3134
        %v3145 = vpop.xlane.xlu0 %3144
        %3146 = vadd.xlane.f32.xlu0 %v3135
        %v3147 = vpop.xlane.xlu0 %3146
        %3148 = vadd.xlane.f32.xlu0 %v3136
        %v3149 = vpop.xlane.xlu0 %3148
        %3150 = vadd.xlane.f32.xlu0 %v3137
        %v3151 = vpop.xlane.xlu0 %3150
        %3152 = vadd.xlane.f32.xlu0 %v3138
        %v3153 = vpop.xlane.xlu0 %3152
        %3154 = vadd.xlane.f32.xlu0 %v3139
        %v3155 = vpop.xlane.xlu0 %3154
        %v3156 = vmul.f32 %v3141, %v467
        %v3157 = vmul.f32 %v3143, %v467
        %v3158 = vmul.f32 %v3145, %v467
        %v3159 = vmul.f32 %v3147, %v467
        %v3160 = vmul.f32 %v3149, %v467
        %v3161 = vmul.f32 %v3151, %v467
        %v3162 = vmul.f32 %v3153, %v467
        %v3163 = vmul.f32 %v3155, %v467
        %v3164 = vadd.f32 %v3156, 1e-05
        %v3165 = vadd.f32 %v3157, 1e-05
        %v3166 = vadd.f32 %v3158, 1e-05
        %v3167 = vadd.f32 %v3159, 1e-05
        %v3168 = vadd.f32 %v3160, 1e-05
        %v3169 = vadd.f32 %v3161, 1e-05
        %v3170 = vadd.f32 %v3162, 1e-05
        %v3171 = vadd.f32 %v3163, 1e-05
        %v3172 = vrsqrt.pop %v3164
        %v3173 = vmul.f32 %v3172, %v3164
        %v3174 = vmul.f32 %v3173, %v3172
        %v3175 = vmul.f32 0.5, %v3174
        %v3176 = vsub.f32 1.5, %v3175
        %v3177 = vmul.f32 %v3172, %v3176
        %vm3178 = vweird.f32 %v3164
        %vm3179 = vweird.f32 %v3172
        %vm3180 = vmor %vm3178, %vm3179
        %v3181 = vsel %vm3180, %v3172, %v3177
        %v3182 = vrsqrt.pop %v3165
        %v3183 = vmul.f32 %v3182, %v3165
        %v3184 = vmul.f32 %v3183, %v3182
        %v3185 = vmul.f32 0.5, %v3184
        %v3186 = vsub.f32 1.5, %v3185
        %v3187 = vmul.f32 %v3182, %v3186
        %vm3188 = vweird.f32 %v3165
        %vm3189 = vweird.f32 %v3182
        %vm3190 = vmor %vm3188, %vm3189
        %v3191 = vsel %vm3190, %v3182, %v3187
        %v3192 = vrsqrt.pop %v3166
        %v3193 = vmul.f32 %v3192, %v3166
        %v3194 = vmul.f32 %v3193, %v3192
        %v3195 = vmul.f32 0.5, %v3194
        %v3196 = vsub.f32 1.5, %v3195
        %v3197 = vmul.f32 %v3192, %v3196
        %vm3198 = vweird.f32 %v3166
        %vm3199 = vweird.f32 %v3192
        %vm3200 = vmor %vm3198, %vm3199
        %v3201 = vsel %vm3200, %v3192, %v3197
        %v3202 = vrsqrt.pop %v3167
        %v3203 = vmul.f32 %v3202, %v3167
        %v3204 = vmul.f32 %v3203, %v3202
        %v3205 = vmul.f32 0.5, %v3204
        %v3206 = vsub.f32 1.5, %v3205
        %v3207 = vmul.f32 %v3202, %v3206
        %vm3208 = vweird.f32 %v3167
        %vm3209 = vweird.f32 %v3202
        %vm3210 = vmor %vm3208, %vm3209
        %v3211 = vsel %vm3210, %v3202, %v3207
        %v3212 = vrsqrt.pop %v3168
        %v3213 = vmul.f32 %v3212, %v3168
        %v3214 = vmul.f32 %v3213, %v3212
        %v3215 = vmul.f32 0.5, %v3214
        %v3216 = vsub.f32 1.5, %v3215
        %v3217 = vmul.f32 %v3212, %v3216
        %vm3218 = vweird.f32 %v3168
        %vm3219 = vweird.f32 %v3212
        %vm3220 = vmor %vm3218, %vm3219
        %v3221 = vsel %vm3220, %v3212, %v3217
        %v3222 = vrsqrt.pop %v3169
        %v3223 = vmul.f32 %v3222, %v3169
        %v3224 = vmul.f32 %v3223, %v3222
        %v3225 = vmul.f32 0.5, %v3224
        %v3226 = vsub.f32 1.5, %v3225
        %v3227 = vmul.f32 %v3222, %v3226
        %vm3228 = vweird.f32 %v3169
        %vm3229 = vweird.f32 %v3222
        %vm3230 = vmor %vm3228, %vm3229
        %v3231 = vsel %vm3230, %v3222, %v3227
        %v3232 = vrsqrt.pop %v3170
        %v3233 = vmul.f32 %v3232, %v3170
        %v3234 = vmul.f32 %v3233, %v3232
        %v3235 = vmul.f32 0.5, %v3234
        %v3236 = vsub.f32 1.5, %v3235
        %v3237 = vmul.f32 %v3232, %v3236
        %vm3238 = vweird.f32 %v3170
        %vm3239 = vweird.f32 %v3232
        %vm3240 = vmor %vm3238, %vm3239
        %v3241 = vsel %vm3240, %v3232, %v3237
        %v3242 = vrsqrt.pop %v3171
        %v3243 = vmul.f32 %v3242, %v3171
        %v3244 = vmul.f32 %v3243, %v3242
        %v3245 = vmul.f32 0.5, %v3244
        %v3246 = vsub.f32 1.5, %v3245
        %v3247 = vmul.f32 %v3242, %v3246
        %vm3248 = vweird.f32 %v3171
        %vm3249 = vweird.f32 %v3242
        %vm3250 = vmor %vm3248, %vm3249
        %v3251 = vsel %vm3250, %v3242, %v3247
        %v3252 = vmul.f32 %v3124, %v3181
        %v3253 = vmul.f32 %v3125, %v3191
        %v3254 = vmul.f32 %v3126, %v3201
        %v3255 = vmul.f32 %v3127, %v3211
        %v3256 = vmul.f32 %v3128, %v3221
        %v3257 = vmul.f32 %v3129, %v3231
        %v3258 = vmul.f32 %v3130, %v3241
        %v3259 = vmul.f32 %v3131, %v3251
        %v3261 = vperm.slane %v3098, 0
        %v3263 = vmul.f32 %v3252, %v3261
        %v3264 = vmul.f32 %v3253, %v3261
        %v3265 = vmul.f32 %v3254, %v3261
        %v3266 = vmul.f32 %v3255, %v3261
        %v3267 = vmul.f32 %v3256, %v3261
        %v3268 = vmul.f32 %v3257, %v3261
        %v3269 = vmul.f32 %v3258, %v3261
        %v3270 = vmul.f32 %v3259, %v3261
        %v3272 = vperm.slane %v3099, 0
        %v3274 = vadd.f32 %v3263, %v3272
        %v3275 = vadd.f32 %v3264, %v3272
        %v3276 = vadd.f32 %v3265, %v3272
        %v3277 = vadd.f32 %v3266, %v3272
        %v3278 = vadd.f32 %v3267, %v3272
        %v3279 = vadd.f32 %v3268, %v3272
        %v3280 = vadd.f32 %v3269, %v3272
        %v3281 = vadd.f32 %v3270, %v3272
        %v3282 = vpack.c.bf16 %v3275, %v3274
        %v3283 = vpack.c.bf16 %v3277, %v3276
        %v3284 = vpack.c.bf16 %v3279, %v3278
        %v3285 = vpack.c.bf16 %v3281, %v3280
        %v3286 = vld [vmem:[%s8] sm:$0xff]
        %v3287 = vld [vmem:[%s8 + $0x8] sm:$0xff]
        %v3288 = vld [vmem:[%s8 + $0x10] sm:$0xff]
        %v3289 = vld [vmem:[%s8 + $0x18] sm:$0xff]
        %v3290 = vld [vmem:[%s8 + $0x20] sm:$0xff]
        %v3291 = vld [vmem:[%s8 + $0x28] sm:$0xff]
        %v3292 = vld [vmem:[%s8 + $0x30] sm:$0xff]
        %v3293 = vld [vmem:[%s8 + $0x38] sm:$0xff]
        %v3294 = vld [vmem:[%s8 + $0x40] sm:$0xff]
        %v3295 = vld [vmem:[%s8 + $0x48] sm:$0xff]
        %v3296 = vld [vmem:[%s8 + $0x50] sm:$0xff]
        %v3297 = vld [vmem:[%s8 + $0x58] sm:$0xff]
        %v3298 = vld [vmem:[%s8 + $0x60] sm:$0xff]
        %v3299 = vld [vmem:[%s8 + $0x68] sm:$0xff]
        %v3300 = vld [vmem:[%s8 + $0x70] sm:$0xff]
        %v3301 = vld [vmem:[%s8 + $0x78] sm:$0xff]
        %v3302 = vld [vmem:[%s8 + $0x80] sm:$0xff]
        %v3303 = vld [vmem:[%s8 + $0x88] sm:$0xff]
        %v3304 = vld [vmem:[%s8 + $0x90] sm:$0xff]
        %v3305 = vld [vmem:[%s8 + $0x98] sm:$0xff]
        %v3306 = vld [vmem:[%s8 + $0xa0] sm:$0xff]
        %v3307 = vld [vmem:[%s8 + $0xa8] sm:$0xff]
        %v3308 = vld [vmem:[%s8 + $0xb0] sm:$0xff]
        %v3309 = vld [vmem:[%s8 + $0xb8] sm:$0xff]
        %v3310 = vld [vmem:[%s8 + $0xc0] sm:$0xff]
        %v3311 = vld [vmem:[%s8 + $0xc8] sm:$0xff]
        %v3312 = vld [vmem:[%s8 + $0xd0] sm:$0xff]
        %v3313 = vld [vmem:[%s8 + $0xd8] sm:$0xff]
        %v3314 = vld [vmem:[%s8 + $0xe0] sm:$0xff]
        %v3315 = vld [vmem:[%s8 + $0xe8] sm:$0xff]
        %v3316 = vld [vmem:[%s8 + $0xf0] sm:$0xff]
        %v3317 = vld [vmem:[%s8 + $0xf8] sm:$0xff]
        %v3318 = vld [vmem:[%s9] sm:$0xf]
        %v3320 = vperm.slane %v3318, 0
        %v3321 = vperm.slane %v3318, 1
        %v3322 = vperm.slane %v3318, 2
        %v3323 = vperm.slane %v3318, 3
        %v3360 = vunpack.c.l.b16 %v3286
        %v3361 = vunpack.c.h.b16 %v3286
        %v3362 = vunpack.c.l.b16 %v3287
        %v3363 = vunpack.c.h.b16 %v3287
        %v3364 = vunpack.c.l.b16 %v3288
        %v3365 = vunpack.c.h.b16 %v3288
        %v3366 = vunpack.c.l.b16 %v3289
        %v3367 = vunpack.c.h.b16 %v3289
        %v3368 = vunpack.c.l.b16 %v3290
        %v3369 = vunpack.c.h.b16 %v3290
        %v3370 = vunpack.c.l.b16 %v3291
        %v3371 = vunpack.c.h.b16 %v3291
        %v3372 = vunpack.c.l.b16 %v3292
        %v3373 = vunpack.c.h.b16 %v3292
        %v3374 = vunpack.c.l.b16 %v3293
        %v3375 = vunpack.c.h.b16 %v3293
        %v3376 = vunpack.c.l.b16 %v3294
        %v3377 = vunpack.c.h.b16 %v3294
        %v3378 = vunpack.c.l.b16 %v3295
        %v3379 = vunpack.c.h.b16 %v3295
        %v3380 = vunpack.c.l.b16 %v3296
        %v3381 = vunpack.c.h.b16 %v3296
        %v3382 = vunpack.c.l.b16 %v3297
        %v3383 = vunpack.c.h.b16 %v3297
        %v3384 = vunpack.c.l.b16 %v3298
        %v3385 = vunpack.c.h.b16 %v3298
        %v3386 = vunpack.c.l.b16 %v3299
        %v3387 = vunpack.c.h.b16 %v3299
        %v3388 = vunpack.c.l.b16 %v3300
        %v3389 = vunpack.c.h.b16 %v3300
        %v3390 = vunpack.c.l.b16 %v3301
        %v3391 = vunpack.c.h.b16 %v3301
        %v3392 = vunpack.c.l.b16 %v3302
        %v3393 = vunpack.c.h.b16 %v3302
        %v3394 = vunpack.c.l.b16 %v3303
        %v3395 = vunpack.c.h.b16 %v3303
        %v3396 = vunpack.c.l.b16 %v3304
        %v3397 = vunpack.c.h.b16 %v3304
        %v3398 = vunpack.c.l.b16 %v3305
        %v3399 = vunpack.c.h.b16 %v3305
        %v3400 = vunpack.c.l.b16 %v3306
        %v3401 = vunpack.c.h.b16 %v3306
        %v3402 = vunpack.c.l.b16 %v3307
        %v3403 = vunpack.c.h.b16 %v3307
        %v3404 = vunpack.c.l.b16 %v3308
        %v3405 = vunpack.c.h.b16 %v3308
        %v3406 = vunpack.c.l.b16 %v3309
        %v3407 = vunpack.c.h.b16 %v3309
        %v3408 = vunpack.c.l.b16 %v3310
        %v3409 = vunpack.c.h.b16 %v3310
        %v3410 = vunpack.c.l.b16 %v3311
        %v3411 = vunpack.c.h.b16 %v3311
        %v3412 = vunpack.c.l.b16 %v3312
        %v3413 = vunpack.c.h.b16 %v3312
        %v3414 = vunpack.c.l.b16 %v3313
        %v3415 = vunpack.c.h.b16 %v3313
        %v3416 = vunpack.c.l.b16 %v3314
        %v3417 = vunpack.c.h.b16 %v3314
        %v3418 = vunpack.c.l.b16 %v3315
        %v3419 = vunpack.c.h.b16 %v3315
        %v3420 = vunpack.c.l.b16 %v3316
        %v3421 = vunpack.c.h.b16 %v3316
        %v3422 = vunpack.c.l.b16 %v3317
        %v3423 = vunpack.c.h.b16 %v3317
        %v3424 = vpack.c.b16 %v3364, %v3360
        %v3425 = vpack.c.b16 %v3365, %v3361
        %v3426 = vpack.c.b16 %v3366, %v3362
        %v3427 = vpack.c.b16 %v3367, %v3363
        %v3428 = vpack.c.b16 %v3372, %v3368
        %v3429 = vpack.c.b16 %v3373, %v3369
        %v3430 = vpack.c.b16 %v3374, %v3370
        %v3431 = vpack.c.b16 %v3375, %v3371
        %v3432 = vpack.c.b16 %v3380, %v3376
        %v3433 = vpack.c.b16 %v3381, %v3377
        %v3434 = vpack.c.b16 %v3382, %v3378
        %v3435 = vpack.c.b16 %v3383, %v3379
        %v3436 = vpack.c.b16 %v3388, %v3384
        %v3437 = vpack.c.b16 %v3389, %v3385
        %v3438 = vpack.c.b16 %v3390, %v3386
        %v3439 = vpack.c.b16 %v3391, %v3387
        %v3440 = vpack.c.b16 %v3396, %v3392
        %v3441 = vpack.c.b16 %v3397, %v3393
        %v3442 = vpack.c.b16 %v3398, %v3394
        %v3443 = vpack.c.b16 %v3399, %v3395
        %v3444 = vpack.c.b16 %v3404, %v3400
        %v3445 = vpack.c.b16 %v3405, %v3401
        %v3446 = vpack.c.b16 %v3406, %v3402
        %v3447 = vpack.c.b16 %v3407, %v3403
        %v3448 = vpack.c.b16 %v3412, %v3408
        %v3449 = vpack.c.b16 %v3413, %v3409
        %v3450 = vpack.c.b16 %v3414, %v3410
        %v3451 = vpack.c.b16 %v3415, %v3411
        %v3452 = vpack.c.b16 %v3420, %v3416
        %v3453 = vpack.c.b16 %v3421, %v3417
        %v3454 = vpack.c.b16 %v3422, %v3418
        %v3455 = vpack.c.b16 %v3423, %v3419
        %3488 = vmatpush.bf16.msra.mxu0 %v3452
        %3489 = vmatpush.bf16.msra.mxu0 %v3448
        %3490 = vmatpush.bf16.msra.mxu0 %v3444
        %3491 = vmatpush.bf16.msra.mxu0 %v3440
        %3492 = vmatpush.bf16.msra.mxu0 %v3436
        %3493 = vmatpush.bf16.msra.mxu0 %v3432
        %3494 = vmatpush.bf16.msra.mxu0 %v3428
        %3495 = vmatpush.bf16.msra.mxu0 %v3424
        %3496 = vmatmul.bf16.gmra.mxu0 %v3282
        %v3497 = vpop.f32.mrf.mxu0
        %v3498 = vadd.f32 %v3320, %v3497
        %v3499 = vpop.f32.mrf.mxu0
        %v3500 = vadd.f32 %v3320, %v3499
        %3501 = vmatmul.bf16.gmra.mxu0 %v3283
        %v3502 = vpop.f32.mrf.mxu0
        %v3503 = vadd.f32 %v3320, %v3502
        %v3504 = vpop.f32.mrf.mxu0
        %v3505 = vadd.f32 %v3320, %v3504
        %3506 = vmatmul.bf16.gmra.mxu0 %v3284
        %v3507 = vpop.f32.mrf.mxu0
        %v3508 = vadd.f32 %v3320, %v3507
        %v3509 = vpop.f32.mrf.mxu0
        %v3510 = vadd.f32 %v3320, %v3509
        %3511 = vmatmul.bf16.gmra.mxu0 %v3285
        %v3512 = vpop.f32.mrf.mxu0
        %v3513 = vadd.f32 %v3320, %v3512
        %v3514 = vpop.f32.mrf.mxu0
        %v3515 = vadd.f32 %v3320, %v3514
        %3516 = vdwg.mxu0
        %3517 = vmatpush.bf16.msra.mxu0 %v3453
        %3518 = vmatpush.bf16.msra.mxu0 %v3449
        %3519 = vmatpush.bf16.msra.mxu0 %v3445
        %3520 = vmatpush.bf16.msra.mxu0 %v3441
        %3521 = vmatpush.bf16.msra.mxu0 %v3437
        %3522 = vmatpush.bf16.msra.mxu0 %v3433
        %3523 = vmatpush.bf16.msra.mxu0 %v3429
        %3524 = vmatpush.bf16.msra.mxu0 %v3425
        %3525 = vmatmul.bf16.gmra.mxu0 %v3282
        %v3526 = vpop.f32.mrf.mxu0
        %v3527 = vadd.f32 %v3321, %v3526
        %v3528 = vpop.f32.mrf.mxu0
        %v3529 = vadd.f32 %v3321, %v3528
        %3530 = vmatmul.bf16.gmra.mxu0 %v3283
        %v3531 = vpop.f32.mrf.mxu0
        %v3532 = vadd.f32 %v3321, %v3531
        %v3533 = vpop.f32.mrf.mxu0
        %v3534 = vadd.f32 %v3321, %v3533
        %3535 = vmatmul.bf16.gmra.mxu0 %v3284
        %v3536 = vpop.f32.mrf.mxu0
        %v3537 = vadd.f32 %v3321, %v3536
        %v3538 = vpop.f32.mrf.mxu0
        %v3539 = vadd.f32 %v3321, %v3538
        %3540 = vmatmul.bf16.gmra.mxu0 %v3285
        %v3541 = vpop.f32.mrf.mxu0
        %v3542 = vadd.f32 %v3321, %v3541
        %v3543 = vpop.f32.mrf.mxu0
        %v3544 = vadd.f32 %v3321, %v3543
        %3545 = vdwg.mxu0
        %3546 = vmatpush.bf16.msra.mxu0 %v3454
        %3547 = vmatpush.bf16.msra.mxu0 %v3450
        %3548 = vmatpush.bf16.msra.mxu0 %v3446
        %3549 = vmatpush.bf16.msra.mxu0 %v3442
        %3550 = vmatpush.bf16.msra.mxu0 %v3438
        %3551 = vmatpush.bf16.msra.mxu0 %v3434
        %3552 = vmatpush.bf16.msra.mxu0 %v3430
        %3553 = vmatpush.bf16.msra.mxu0 %v3426
        %3554 = vmatmul.bf16.gmra.mxu0 %v3282
        %v3555 = vpop.f32.mrf.mxu0
        %v3556 = vadd.f32 %v3322, %v3555
        %v3557 = vpop.f32.mrf.mxu0
        %v3558 = vadd.f32 %v3322, %v3557
        %3559 = vmatmul.bf16.gmra.mxu0 %v3283
        %v3560 = vpop.f32.mrf.mxu0
        %v3561 = vadd.f32 %v3322, %v3560
        %v3562 = vpop.f32.mrf.mxu0
        %v3563 = vadd.f32 %v3322, %v3562
        %3564 = vmatmul.bf16.gmra.mxu0 %v3284
        %v3565 = vpop.f32.mrf.mxu0
        %v3566 = vadd.f32 %v3322, %v3565
        %v3567 = vpop.f32.mrf.mxu0
        %v3568 = vadd.f32 %v3322, %v3567
        %3569 = vmatmul.bf16.gmra.mxu0 %v3285
        %v3570 = vpop.f32.mrf.mxu0
        %v3571 = vadd.f32 %v3322, %v3570
        %v3572 = vpop.f32.mrf.mxu0
        %v3573 = vadd.f32 %v3322, %v3572
        %3574 = vdwg.mxu0
        %3575 = vmatpush.bf16.msra.mxu0 %v3455
        %3576 = vmatpush.bf16.msra.mxu0 %v3451
        %3577 = vmatpush.bf16.msra.mxu0 %v3447
        %3578 = vmatpush.bf16.msra.mxu0 %v3443
        %3579 = vmatpush.bf16.msra.mxu0 %v3439
        %3580 = vmatpush.bf16.msra.mxu0 %v3435
        %3581 = vmatpush.bf16.msra.mxu0 %v3431
        %3582 = vmatpush.bf16.msra.mxu0 %v3427
        %3583 = vmatmul.bf16.gmra.mxu0 %v3282
        %v3584 = vpop.f32.mrf.mxu0
        %v3585 = vadd.f32 %v3323, %v3584
        %v3586 = vpop.f32.mrf.mxu0
        %v3587 = vadd.f32 %v3323, %v3586
        %3588 = vmatmul.bf16.gmra.mxu0 %v3283
        %v3589 = vpop.f32.mrf.mxu0
        %v3590 = vadd.f32 %v3323, %v3589
        %v3591 = vpop.f32.mrf.mxu0
        %v3592 = vadd.f32 %v3323, %v3591
        %3593 = vmatmul.bf16.gmra.mxu0 %v3284
        %v3594 = vpop.f32.mrf.mxu0
        %v3595 = vadd.f32 %v3323, %v3594
        %v3596 = vpop.f32.mrf.mxu0
        %v3597 = vadd.f32 %v3323, %v3596
        %3598 = vmatmul.bf16.gmra.mxu0 %v3285
        %v3599 = vpop.f32.mrf.mxu0
        %v3600 = vadd.f32 %v3323, %v3599
        %v3601 = vpop.f32.mrf.mxu0
        %v3602 = vadd.f32 %v3323, %v3601
        %3603 = vdwg.mxu0
        %v3604 = vmul.f32 %v3498, 0.5
        %v3605 = vmul.f32 %v3527, 0.5
        %v3606 = vmul.f32 %v3556, 0.5
        %v3607 = vmul.f32 %v3585, 0.5
        %v3608 = vmul.f32 %v3500, 0.5
        %v3609 = vmul.f32 %v3529, 0.5
        %v3610 = vmul.f32 %v3558, 0.5
        %v3611 = vmul.f32 %v3587, 0.5
        %v3612 = vmul.f32 %v3503, 0.5
        %v3613 = vmul.f32 %v3532, 0.5
        %v3614 = vmul.f32 %v3561, 0.5
        %v3615 = vmul.f32 %v3590, 0.5
        %v3616 = vmul.f32 %v3505, 0.5
        %v3617 = vmul.f32 %v3534, 0.5
        %v3618 = vmul.f32 %v3563, 0.5
        %v3619 = vmul.f32 %v3592, 0.5
        %v3620 = vmul.f32 %v3508, 0.5
        %v3621 = vmul.f32 %v3537, 0.5
        %v3622 = vmul.f32 %v3566, 0.5
        %v3623 = vmul.f32 %v3595, 0.5
        %v3624 = vmul.f32 %v3510, 0.5
        %v3625 = vmul.f32 %v3539, 0.5
        %v3626 = vmul.f32 %v3568, 0.5
        %v3627 = vmul.f32 %v3597, 0.5
        %v3628 = vmul.f32 %v3513, 0.5
        %v3629 = vmul.f32 %v3542, 0.5
        %v3630 = vmul.f32 %v3571, 0.5
        %v3631 = vmul.f32 %v3600, 0.5
        %v3632 = vmul.f32 %v3515, 0.5
        %v3633 = vmul.f32 %v3544, 0.5
        %v3634 = vmul.f32 %v3573, 0.5
        %v3635 = vmul.f32 %v3602, 0.5
        %v3636 = vmul.f32 %v3498, 0.044715
        %v3637 = vmul.f32 %v3527, 0.044715
        %v3638 = vmul.f32 %v3556, 0.044715
        %v3639 = vmul.f32 %v3585, 0.044715
        %v3640 = vmul.f32 %v3500, 0.044715
        %v3641 = vmul.f32 %v3529, 0.044715
        %v3642 = vmul.f32 %v3558, 0.044715
        %v3643 = vmul.f32 %v3587, 0.044715
        %v3644 = vmul.f32 %v3503, 0.044715
        %v3645 = vmul.f32 %v3532, 0.044715
        %v3646 = vmul.f32 %v3561, 0.044715
        %v3647 = vmul.f32 %v3590, 0.044715
        %v3648 = vmul.f32 %v3505, 0.044715
        %v3649 = vmul.f32 %v3534, 0.044715
        %v3650 = vmul.f32 %v3563, 0.044715
        %v3651 = vmul.f32 %v3592, 0.044715
        %v3652 = vmul.f32 %v3508, 0.044715
        %v3653 = vmul.f32 %v3537, 0.044715
        %v3654 = vmul.f32 %v3566, 0.044715
        %v3655 = vmul.f32 %v3595, 0.044715
        %v3656 = vmul.f32 %v3510, 0.044715
        %v3657 = vmul.f32 %v3539, 0.044715
        %v3658 = vmul.f32 %v3568, 0.044715
        %v3659 = vmul.f32 %v3597, 0.044715
        %v3660 = vmul.f32 %v3513, 0.044715
        %v3661 = vmul.f32 %v3542, 0.044715
        %v3662 = vmul.f32 %v3571, 0.044715
        %v3663 = vmul.f32 %v3600, 0.044715
        %v3664 = vmul.f32 %v3515, 0.044715
        %v3665 = vmul.f32 %v3544, 0.044715
        %v3666 = vmul.f32 %v3573, 0.044715
        %v3667 = vmul.f32 %v3602, 0.044715
        %v3668 = vmul.f32 %v3636, %v3498
        %v3669 = vmul.f32 %v3637, %v3527
        %v3670 = vmul.f32 %v3638, %v3556
        %v3671 = vmul.f32 %v3639, %v3585
        %v3672 = vmul.f32 %v3640, %v3500
        %v3673 = vmul.f32 %v3641, %v3529
        %v3674 = vmul.f32 %v3642, %v3558
        %v3675 = vmul.f32 %v3643, %v3587
        %v3676 = vmul.f32 %v3644, %v3503
        %v3677 = vmul.f32 %v3645, %v3532
        %v3678 = vmul.f32 %v3646, %v3561
        %v3679 = vmul.f32 %v3647, %v3590
        %v3680 = vmul.f32 %v3648, %v3505
        %v3681 = vmul.f32 %v3649, %v3534
        %v3682 = vmul.f32 %v3650, %v3563
        %v3683 = vmul.f32 %v3651, %v3592
        %v3684 = vmul.f32 %v3652, %v3508
        %v3685 = vmul.f32 %v3653, %v3537
        %v3686 = vmul.f32 %v3654, %v3566
        %v3687 = vmul.f32 %v3655, %v3595
        %v3688 = vmul.f32 %v3656, %v3510
        %v3689 = vmul.f32 %v3657, %v3539
        %v3690 = vmul.f32 %v3658, %v3568
        %v3691 = vmul.f32 %v3659, %v3597
        %v3692 = vmul.f32 %v3660, %v3513
        %v3693 = vmul.f32 %v3661, %v3542
        %v3694 = vmul.f32 %v3662, %v3571
        %v3695 = vmul.f32 %v3663, %v3600
        %v3696 = vmul.f32 %v3664, %v3515
        %v3697 = vmul.f32 %v3665, %v3544
        %v3698 = vmul.f32 %v3666, %v3573
        %v3699 = vmul.f32 %v3667, %v3602
        %v3700 = vmul.f32 %v3668, %v3498
        %v3701 = vmul.f32 %v3669, %v3527
        %v3702 = vmul.f32 %v3670, %v3556
        %v3703 = vmul.f32 %v3671, %v3585
        %v3704 = vmul.f32 %v3672, %v3500
        %v3705 = vmul.f32 %v3673, %v3529
        %v3706 = vmul.f32 %v3674, %v3558
        %v3707 = vmul.f32 %v3675, %v3587
        %v3708 = vmul.f32 %v3676, %v3503
        %v3709 = vmul.f32 %v3677, %v3532
        %v3710 = vmul.f32 %v3678, %v3561
        %v3711 = vmul.f32 %v3679, %v3590
        %v3712 = vmul.f32 %v3680, %v3505
        %v3713 = vmul.f32 %v3681, %v3534
        %v3714 = vmul.f32 %v3682, %v3563
        %v3715 = vmul.f32 %v3683, %v3592
        %v3716 = vmul.f32 %v3684, %v3508
        %v3717 = vmul.f32 %v3685, %v3537
        %v3718 = vmul.f32 %v3686, %v3566
        %v3719 = vmul.f32 %v3687, %v3595
        %v3720 = vmul.f32 %v3688, %v3510
        %v3721 = vmul.f32 %v3689, %v3539
        %v3722 = vmul.f32 %v3690, %v3568
        %v3723 = vmul.f32 %v3691, %v3597
        %v3724 = vmul.f32 %v3692, %v3513
        %v3725 = vmul.f32 %v3693, %v3542
        %v3726 = vmul.f32 %v3694, %v3571
        %v3727 = vmul.f32 %v3695, %v3600
        %v3728 = vmul.f32 %v3696, %v3515
        %v3729 = vmul.f32 %v3697, %v3544
        %v3730 = vmul.f32 %v3698, %v3573
        %v3731 = vmul.f32 %v3699, %v3602
        %v3732 = vadd.f32 %v3498, %v3700
        %v3733 = vadd.f32 %v3527, %v3701
        %v3734 = vadd.f32 %v3556, %v3702
        %v3735 = vadd.f32 %v3585, %v3703
        %v3736 = vadd.f32 %v3500, %v3704
        %v3737 = vadd.f32 %v3529, %v3705
        %v3738 = vadd.f32 %v3558, %v3706
        %v3739 = vadd.f32 %v3587, %v3707
        %v3740 = vadd.f32 %v3503, %v3708
        %v3741 = vadd.f32 %v3532, %v3709
        %v3742 = vadd.f32 %v3561, %v3710
        %v3743 = vadd.f32 %v3590, %v3711
        %v3744 = vadd.f32 %v3505, %v3712
        %v3745 = vadd.f32 %v3534, %v3713
        %v3746 = vadd.f32 %v3563, %v3714
        %v3747 = vadd.f32 %v3592, %v3715
        %v3748 = vadd.f32 %v3508, %v3716
        %v3749 = vadd.f32 %v3537, %v3717
        %v3750 = vadd.f32 %v3566, %v3718
        %v3751 = vadd.f32 %v3595, %v3719
        %v3752 = vadd.f32 %v3510, %v3720
        %v3753 = vadd.f32 %v3539, %v3721
        %v3754 = vadd.f32 %v3568, %v3722
        %v3755 = vadd.f32 %v3597, %v3723
        %v3756 = vadd.f32 %v3513, %v3724
        %v3757 = vadd.f32 %v3542, %v3725
        %v3758 = vadd.f32 %v3571, %v3726
        %v3759 = vadd.f32 %v3600, %v3727
        %v3760 = vadd.f32 %v3515, %v3728
        %v3761 = vadd.f32 %v3544, %v3729
        %v3762 = vadd.f32 %v3573, %v3730
        %v3763 = vadd.f32 %v3602, %v3731
        %v3764 = vmul.f32 %v3732, 0.7978846
        %v3765 = vmul.f32 %v3733, 0.7978846
        %v3766 = vmul.f32 %v3734, 0.7978846
        %v3767 = vmul.f32 %v3735, 0.7978846
        %v3768 = vmul.f32 %v3736, 0.7978846
        %v3769 = vmul.f32 %v3737, 0.7978846
        %v3770 = vmul.f32 %v3738, 0.7978846
        %v3771 = vmul.f32 %v3739, 0.7978846
        %v3772 = vmul.f32 %v3740, 0.7978846
        %v3773 = vmul.f32 %v3741, 0.7978846
        %v3774 = vmul.f32 %v3742, 0.7978846
        %v3775 = vmul.f32 %v3743, 0.7978846
        %v3776 = vmul.f32 %v3744, 0.7978846
        %v3777 = vmul.f32 %v3745, 0.7978846
        %v3778 = vmul.f32 %v3746, 0.7978846
        %v3779 = vmul.f32 %v3747, 0.7978846
        %v3780 = vmul.f32 %v3748, 0.7978846
        %v3781 = vmul.f32 %v3749, 0.7978846
        %v3782 = vmul.f32 %v3750, 0.7978846
        %v3783 = vmul.f32 %v3751, 0.7978846
        %v3784 = vmul.f32 %v3752, 0.7978846
        %v3785 = vmul.f32 %v3753, 0.7978846
        %v3786 = vmul.f32 %v3754, 0.7978846
        %v3787 = vmul.f32 %v3755, 0.7978846
        %v3788 = vmul.f32 %v3756, 0.7978846
        %v3789 = vmul.f32 %v3757, 0.7978846
        %v3790 = vmul.f32 %v3758, 0.7978846
        %v3791 = vmul.f32 %v3759, 0.7978846
        %v3792 = vmul.f32 %v3760, 0.7978846
        %v3793 = vmul.f32 %v3761, 0.7978846
        %v3794 = vmul.f32 %v3762, 0.7978846
        %v3795 = vmul.f32 %v3763, 0.7978846
        %v3796 = vtanh.pop %v3764
        %v3797 = vtanh.pop %v3765
        %v3798 = vtanh.pop %v3766
        %v3799 = vtanh.pop %v3767
        %v3800 = vtanh.pop %v3768
        %v3801 = vtanh.pop %v3769
        %v3802 = vtanh.pop %v3770
        %v3803 = vtanh.pop %v3771
        %v3804 = vtanh.pop %v3772
        %v3805 = vtanh.pop %v3773
        %v3806 = vtanh.pop %v3774
        %v3807 = vtanh.pop %v3775
        %v3808 = vtanh.pop %v3776
        %v3809 = vtanh.pop %v3777
        %v3810 = vtanh.pop %v3778
        %v3811 = vtanh.pop %v3779
        %v3812 = vtanh.pop %v3780
        %v3813 = vtanh.pop %v3781
        %v3814 = vtanh.pop %v3782
        %v3815 = vtanh.pop %v3783
        %v3816 = vtanh.pop %v3784
        %v3817 = vtanh.pop %v3785
        %v3818 = vtanh.pop %v3786
        %v3819 = vtanh.pop %v3787
        %v3820 = vtanh.pop %v3788
        %v3821 = vtanh.pop %v3789
        %v3822 = vtanh.pop %v3790
        %v3823 = vtanh.pop %v3791
        %v3824 = vtanh.pop %v3792
        %v3825 = vtanh.pop %v3793
        %v3826 = vtanh.pop %v3794
        %v3827 = vtanh.pop %v3795
        %v3828 = vadd.f32 %v3796, 1.0
        %v3829 = vadd.f32 %v3797, 1.0
        %v3830 = vadd.f32 %v3798, 1.0
        %v3831 = vadd.f32 %v3799, 1.0
        %v3832 = vadd.f32 %v3800, 1.0
        %v3833 = vadd.f32 %v3801, 1.0
        %v3834 = vadd.f32 %v3802, 1.0
        %v3835 = vadd.f32 %v3803, 1.0
        %v3836 = vadd.f32 %v3804, 1.0
        %v3837 = vadd.f32 %v3805, 1.0
        %v3838 = vadd.f32 %v3806, 1.0
        %v3839 = vadd.f32 %v3807, 1.0
        %v3840 = vadd.f32 %v3808, 1.0
        %v3841 = vadd.f32 %v3809, 1.0
        %v3842 = vadd.f32 %v3810, 1.0
        %v3843 = vadd.f32 %v3811, 1.0
        %v3844 = vadd.f32 %v3812, 1.0
        %v3845 = vadd.f32 %v3813, 1.0
        %v3846 = vadd.f32 %v3814, 1.0
        %v3847 = vadd.f32 %v3815, 1.0
        %v3848 = vadd.f32 %v3816, 1.0
        %v3849 = vadd.f32 %v3817, 1.0
        %v3850 = vadd.f32 %v3818, 1.0
        %v3851 = vadd.f32 %v3819, 1.0
        %v3852 = vadd.f32 %v3820, 1.0
        %v3853 = vadd.f32 %v3821, 1.0
        %v3854 = vadd.f32 %v3822, 1.0
        %v3855 = vadd.f32 %v3823, 1.0
        %v3856 = vadd.f32 %v3824, 1.0
        %v3857 = vadd.f32 %v3825, 1.0
        %v3858 = vadd.f32 %v3826, 1.0
        %v3859 = vadd.f32 %v3827, 1.0
        %v3860 = vmul.f32 %v3604, %v3828
        %v3861 = vmul.f32 %v3605, %v3829
        %v3862 = vmul.f32 %v3606, %v3830
        %v3863 = vmul.f32 %v3607, %v3831
        %v3864 = vmul.f32 %v3608, %v3832
        %v3865 = vmul.f32 %v3609, %v3833
        %v3866 = vmul.f32 %v3610, %v3834
        %v3867 = vmul.f32 %v3611, %v3835
        %v3868 = vmul.f32 %v3612, %v3836
        %v3869 = vmul.f32 %v3613, %v3837
        %v3870 = vmul.f32 %v3614, %v3838
        %v3871 = vmul.f32 %v3615, %v3839
        %v3872 = vmul.f32 %v3616, %v3840
        %v3873 = vmul.f32 %v3617, %v3841
        %v3874 = vmul.f32 %v3618, %v3842
        %v3875 = vmul.f32 %v3619, %v3843
        %v3876 = vmul.f32 %v3620, %v3844
        %v3877 = vmul.f32 %v3621, %v3845
        %v3878 = vmul.f32 %v3622, %v3846
        %v3879 = vmul.f32 %v3623, %v3847
        %v3880 = vmul.f32 %v3624, %v3848
        %v3881 = vmul.f32 %v3625, %v3849
        %v3882 = vmul.f32 %v3626, %v3850
        %v3883 = vmul.f32 %v3627, %v3851
        %v3884 = vmul.f32 %v3628, %v3852
        %v3885 = vmul.f32 %v3629, %v3853
        %v3886 = vmul.f32 %v3630, %v3854
        %v3887 = vmul.f32 %v3631, %v3855
        %v3888 = vmul.f32 %v3632, %v3856
        %v3889 = vmul.f32 %v3633, %v3857
        %v3890 = vmul.f32 %v3634, %v3858
        %v3891 = vmul.f32 %v3635, %v3859
        %v3892 = vpack.c.bf16 %v3864, %v3860
        %v3893 = vpack.c.bf16 %v3865, %v3861
        %v3894 = vpack.c.bf16 %v3866, %v3862
        %v3895 = vpack.c.bf16 %v3867, %v3863
        %v3896 = vpack.c.bf16 %v3872, %v3868
        %v3897 = vpack.c.bf16 %v3873, %v3869
        %v3898 = vpack.c.bf16 %v3874, %v3870
        %v3899 = vpack.c.bf16 %v3875, %v3871
        %v3900 = vpack.c.bf16 %v3880, %v3876
        %v3901 = vpack.c.bf16 %v3881, %v3877
        %v3902 = vpack.c.bf16 %v3882, %v3878
        %v3903 = vpack.c.bf16 %v3883, %v3879
        %v3904 = vpack.c.bf16 %v3888, %v3884
        %v3905 = vpack.c.bf16 %v3889, %v3885
        %v3906 = vpack.c.bf16 %v3890, %v3886
        %v3907 = vpack.c.bf16 %v3891, %v3887
        %v3908 = vld [vmem:[%s10] sm:$0xf]
        %v3909 = vld [vmem:[%s10 + $0x4] sm:$0xf]
        %v3910 = vld [vmem:[%s10 + $0x8] sm:$0xf]
        %v3911 = vld [vmem:[%s10 + $0xc] sm:$0xf]
        %v3912 = vld [vmem:[%s10 + $0x10] sm:$0xf]
        %v3913 = vld [vmem:[%s10 + $0x14] sm:$0xf]
        %v3914 = vld [vmem:[%s10 + $0x18] sm:$0xf]
        %v3915 = vld [vmem:[%s10 + $0x1c] sm:$0xf]
        %v3916 = vld [vmem:[%s10 + $0x20] sm:$0xf]
        %v3917 = vld [vmem:[%s10 + $0x24] sm:$0xf]
        %v3918 = vld [vmem:[%s10 + $0x28] sm:$0xf]
        %v3919 = vld [vmem:[%s10 + $0x2c] sm:$0xf]
        %v3920 = vld [vmem:[%s10 + $0x30] sm:$0xf]
        %v3921 = vld [vmem:[%s10 + $0x34] sm:$0xf]
        %v3922 = vld [vmem:[%s10 + $0x38] sm:$0xf]
        %v3923 = vld [vmem:[%s10 + $0x3c] sm:$0xf]
        %v3924 = vld [vmem:[%s10 + $0x40] sm:$0xf]
        %v3925 = vld [vmem:[%s10 + $0x44] sm:$0xf]
        %v3926 = vld [vmem:[%s10 + $0x48] sm:$0xf]
        %v3927 = vld [vmem:[%s10 + $0x4c] sm:$0xf]
        %v3928 = vld [vmem:[%s10 + $0x50] sm:$0xf]
        %v3929 = vld [vmem:[%s10 + $0x54] sm:$0xf]
        %v3930 = vld [vmem:[%s10 + $0x58] sm:$0xf]
        %v3931 = vld [vmem:[%s10 + $0x5c] sm:$0xf]
        %v3932 = vld [vmem:[%s10 + $0x60] sm:$0xf]
        %v3933 = vld [vmem:[%s10 + $0x64] sm:$0xf]
        %v3934 = vld [vmem:[%s10 + $0x68] sm:$0xf]
        %v3935 = vld [vmem:[%s10 + $0x6c] sm:$0xf]
        %v3936 = vld [vmem:[%s10 + $0x70] sm:$0xf]
        %v3937 = vld [vmem:[%s10 + $0x74] sm:$0xf]
        %v3938 = vld [vmem:[%s10 + $0x78] sm:$0xf]
        %v3939 = vld [vmem:[%s10 + $0x7c] sm:$0xf]
        %v3940 = vld [vmem:[%s10 + $0x80] sm:$0xf]
        %v3941 = vld [vmem:[%s10 + $0x84] sm:$0xf]
        %v3942 = vld [vmem:[%s10 + $0x88] sm:$0xf]
        %v3943 = vld [vmem:[%s10 + $0x8c] sm:$0xf]
        %v3944 = vld [vmem:[%s10 + $0x90] sm:$0xf]
        %v3945 = vld [vmem:[%s10 + $0x94] sm:$0xf]
        %v3946 = vld [vmem:[%s10 + $0x98] sm:$0xf]
        %v3947 = vld [vmem:[%s10 + $0x9c] sm:$0xf]
        %v3948 = vld [vmem:[%s10 + $0xa0] sm:$0xf]
        %v3949 = vld [vmem:[%s10 + $0xa4] sm:$0xf]
        %v3950 = vld [vmem:[%s10 + $0xa8] sm:$0xf]
        %v3951 = vld [vmem:[%s10 + $0xac] sm:$0xf]
        %v3952 = vld [vmem:[%s10 + $0xb0] sm:$0xf]
        %v3953 = vld [vmem:[%s10 + $0xb4] sm:$0xf]
        %v3954 = vld [vmem:[%s10 + $0xb8] sm:$0xf]
        %v3955 = vld [vmem:[%s10 + $0xbc] sm:$0xf]
        %v3956 = vld [vmem:[%s10 + $0xc0] sm:$0xf]
        %v3957 = vld [vmem:[%s10 + $0xc4] sm:$0xf]
        %v3958 = vld [vmem:[%s10 + $0xc8] sm:$0xf]
        %v3959 = vld [vmem:[%s10 + $0xcc] sm:$0xf]
        %v3960 = vld [vmem:[%s10 + $0xd0] sm:$0xf]
        %v3961 = vld [vmem:[%s10 + $0xd4] sm:$0xf]
        %v3962 = vld [vmem:[%s10 + $0xd8] sm:$0xf]
        %v3963 = vld [vmem:[%s10 + $0xdc] sm:$0xf]
        %v3964 = vld [vmem:[%s10 + $0xe0] sm:$0xf]
        %v3965 = vld [vmem:[%s10 + $0xe4] sm:$0xf]
        %v3966 = vld [vmem:[%s10 + $0xe8] sm:$0xf]
        %v3967 = vld [vmem:[%s10 + $0xec] sm:$0xf]
        %v3968 = vld [vmem:[%s10 + $0xf0] sm:$0xf]
        %v3969 = vld [vmem:[%s10 + $0xf4] sm:$0xf]
        %v3970 = vld [vmem:[%s10 + $0xf8] sm:$0xf]
        %v3971 = vld [vmem:[%s10 + $0xfc] sm:$0xf]
        %v3972 = vld [vmem:[%s11] sm:$0x1]
        %v3974 = vperm.slane %v3972, 0
        %v4040 = vunpack.c.l.b16 %v3908
        %v4041 = vunpack.c.l.b16 %v3909
        %v4042 = vunpack.c.l.b16 %v3910
        %v4043 = vunpack.c.l.b16 %v3911
        %v4044 = vunpack.c.l.b16 %v3912
        %v4045 = vunpack.c.l.b16 %v3913
        %v4046 = vunpack.c.l.b16 %v3914
        %v4047 = vunpack.c.l.b16 %v3915
        %v4048 = vunpack.c.l.b16 %v3916
        %v4049 = vunpack.c.l.b16 %v3917
        %v4050 = vunpack.c.l.b16 %v3918
        %v4051 = vunpack.c.l.b16 %v3919
        %v4052 = vunpack.c.l.b16 %v3920
        %v4053 = vunpack.c.l.b16 %v3921
        %v4054 = vunpack.c.l.b16 %v3922
        %v4055 = vunpack.c.l.b16 %v3923
        %v4056 = vunpack.c.l.b16 %v3924
        %v4057 = vunpack.c.l.b16 %v3925
        %v4058 = vunpack.c.l.b16 %v3926
        %v4059 = vunpack.c.l.b16 %v3927
        %v4060 = vunpack.c.l.b16 %v3928
        %v4061 = vunpack.c.l.b16 %v3929
        %v4062 = vunpack.c.l.b16 %v3930
        %v4063 = vunpack.c.l.b16 %v3931
        %v4064 = vunpack.c.l.b16 %v3932
        %v4065 = vunpack.c.l.b16 %v3933
        %v4066 = vunpack.c.l.b16 %v3934
        %v4067 = vunpack.c.l.b16 %v3935
        %v4068 = vunpack.c.l.b16 %v3936
        %v4069 = vunpack.c.l.b16 %v3937
        %v4070 = vunpack.c.l.b16 %v3938
        %v4071 = vunpack.c.l.b16 %v3939
        %v4072 = vunpack.c.l.b16 %v3940
        %v4073 = vunpack.c.l.b16 %v3941
        %v4074 = vunpack.c.l.b16 %v3942
        %v4075 = vunpack.c.l.b16 %v3943
        %v4076 = vunpack.c.l.b16 %v3944
        %v4077 = vunpack.c.l.b16 %v3945
        %v4078 = vunpack.c.l.b16 %v3946
        %v4079 = vunpack.c.l.b16 %v3947
        %v4080 = vunpack.c.l.b16 %v3948
        %v4081 = vunpack.c.l.b16 %v3949
        %v4082 = vunpack.c.l.b16 %v3950
        %v4083 = vunpack.c.l.b16 %v3951
        %v4084 = vunpack.c.l.b16 %v3952
        %v4085 = vunpack.c.l.b16 %v3953
        %v4086 = vunpack.c.l.b16 %v3954
        %v4087 = vunpack.c.l.b16 %v3955
        %v4088 = vunpack.c.l.b16 %v3956
        %v4089 = vunpack.c.l.b16 %v3957
        %v4090 = vunpack.c.l.b16 %v3958
        %v4091 = vunpack.c.l.b16 %v3959
        %v4092 = vunpack.c.l.b16 %v3960
        %v4093 = vunpack.c.l.b16 %v3961
        %v4094 = vunpack.c.l.b16 %v3962
        %v4095 = vunpack.c.l.b16 %v3963
        %v4096 = vunpack.c.l.b16 %v3964
        %v4097 = vunpack.c.l.b16 %v3965
        %v4098 = vunpack.c.l.b16 %v3966
        %v4099 = vunpack.c.l.b16 %v3967
        %v4100 = vunpack.c.l.b16 %v3968
        %v4101 = vunpack.c.l.b16 %v3969
        %v4102 = vunpack.c.l.b16 %v3970
        %v4103 = vunpack.c.l.b16 %v3971
        %v4104 = vpack.c.b16 %v4041, %v4040
        %v4105 = vpack.c.b16 %v4043, %v4042
        %v4106 = vpack.c.b16 %v4045, %v4044
        %v4107 = vpack.c.b16 %v4047, %v4046
        %v4108 = vpack.c.b16 %v4049, %v4048
        %v4109 = vpack.c.b16 %v4051, %v4050
        %v4110 = vpack.c.b16 %v4053, %v4052
        %v4111 = vpack.c.b16 %v4055, %v4054
        %v4112 = vpack.c.b16 %v4057, %v4056
        %v4113 = vpack.c.b16 %v4059, %v4058
        %v4114 = vpack.c.b16 %v4061, %v4060
        %v4115 = vpack.c.b16 %v4063, %v4062
        %v4116 = vpack.c.b16 %v4065, %v4064
        %v4117 = vpack.c.b16 %v4067, %v4066
        %v4118 = vpack.c.b16 %v4069, %v4068
        %v4119 = vpack.c.b16 %v4071, %v4070
        %v4120 = vpack.c.b16 %v4073, %v4072
        %v4121 = vpack.c.b16 %v4075, %v4074
        %v4122 = vpack.c.b16 %v4077, %v4076
        %v4123 = vpack.c.b16 %v4079, %v4078
        %v4124 = vpack.c.b16 %v4081, %v4080
        %v4125 = vpack.c.b16 %v4083, %v4082
        %v4126 = vpack.c.b16 %v4085, %v4084
        %v4127 = vpack.c.b16 %v4087, %v4086
        %v4128 = vpack.c.b16 %v4089, %v4088
        %v4129 = vpack.c.b16 %v4091, %v4090
        %v4130 = vpack.c.b16 %v4093, %v4092
        %v4131 = vpack.c.b16 %v4095, %v4094
        %v4132 = vpack.c.b16 %v4097, %v4096
        %v4133 = vpack.c.b16 %v4099, %v4098
        %v4134 = vpack.c.b16 %v4101, %v4100
        %v4135 = vpack.c.b16 %v4103, %v4102
        %4168 = vmatpush.bf16.msra.mxu0 %v4111
        %4169 = vmatpush.bf16.msra.mxu0 %v4110
        %4170 = vmatpush.bf16.msra.mxu0 %v4109
        %4171 = vmatpush.bf16.msra.mxu0 %v4108
        %4172 = vmatpush.bf16.msra.mxu0 %v4107
        %4173 = vmatpush.bf16.msra.mxu0 %v4106
        %4174 = vmatpush.bf16.msra.mxu0 %v4105
        %4175 = vmatpush.bf16.msra.mxu0 %v4104
        %4176 = vmatmul.bf16.gmra.mxu0 %v3892
        %v4177 = vpop.f32.mrf.mxu0
        %v4178 = vadd.f32 %v3974, %v4177
        %v4179 = vpop.f32.mrf.mxu0
        %v4180 = vadd.f32 %v3974, %v4179
        %4181 = vmatmul.bf16.gmra.mxu0 %v3896
        %v4182 = vpop.f32.mrf.mxu0
        %v4183 = vadd.f32 %v3974, %v4182
        %v4184 = vpop.f32.mrf.mxu0
        %v4185 = vadd.f32 %v3974, %v4184
        %4186 = vmatmul.bf16.gmra.mxu0 %v3900
        %v4187 = vpop.f32.mrf.mxu0
        %v4188 = vadd.f32 %v3974, %v4187
        %v4189 = vpop.f32.mrf.mxu0
        %v4190 = vadd.f32 %v3974, %v4189
        %4191 = vmatmul.bf16.gmra.mxu0 %v3904
        %v4192 = vpop.f32.mrf.mxu0
        %v4193 = vadd.f32 %v3974, %v4192
        %v4194 = vpop.f32.mrf.mxu0
        %v4195 = vadd.f32 %v3974, %v4194
        %4196 = vdwg.mxu0
        %4197 = vmatpush.bf16.msra.mxu0 %v4119
        %4198 = vmatpush.bf16.msra.mxu0 %v4118
        %4199 = vmatpush.bf16.msra.mxu0 %v4117
        %4200 = vmatpush.bf16.msra.mxu0 %v4116
        %4201 = vmatpush.bf16.msra.mxu0 %v4115
        %4202 = vmatpush.bf16.msra.mxu0 %v4114
        %4203 = vmatpush.bf16.msra.mxu0 %v4113
        %4204 = vmatpush.bf16.msra.mxu0 %v4112
        %4205 = vmatmul.bf16.gmra.mxu0 %v3893
        %v4206 = vpop.f32.mrf.mxu0
        %v4207 = vadd.f32 %v4178, %v4206
        %v4208 = vpop.f32.mrf.mxu0
        %v4209 = vadd.f32 %v4180, %v4208
        %4210 = vmatmul.bf16.gmra.mxu0 %v3897
        %v4211 = vpop.f32.mrf.mxu0
        %v4212 = vadd.f32 %v4183, %v4211
        %v4213 = vpop.f32.mrf.mxu0
        %v4214 = vadd.f32 %v4185, %v4213
        %4215 = vmatmul.bf16.gmra.mxu0 %v3901
        %v4216 = vpop.f32.mrf.mxu0
        %v4217 = vadd.f32 %v4188, %v4216
        %v4218 = vpop.f32.mrf.mxu0
        %v4219 = vadd.f32 %v4190, %v4218
        %4220 = vmatmul.bf16.gmra.mxu0 %v3905
        %v4221 = vpop.f32.mrf.mxu0
        %v4222 = vadd.f32 %v4193, %v4221
        %v4223 = vpop.f32.mrf.mxu0
        %v4224 = vadd.f32 %v4195, %v4223
        %4225 = vdwg.mxu0
        %4226 = vmatpush.bf16.msra.mxu0 %v4127
        %4227 = vmatpush.bf16.msra.mxu0 %v4126
        %4228 = vmatpush.bf16.msra.mxu0 %v4125
        %4229 = vmatpush.bf16.msra.mxu0 %v4124
        %4230 = vmatpush.bf16.msra.mxu0 %v4123
        %4231 = vmatpush.bf16.msra.mxu0 %v4122
        %4232 = vmatpush.bf16.msra.mxu0 %v4121
        %4233 = vmatpush.bf16.msra.mxu0 %v4120
        %4234 = vmatmul.bf16.gmra.mxu0 %v3894
        %v4235 = vpop.f32.mrf.mxu0
        %v4236 = vadd.f32 %v4207, %v4235
        %v4237 = vpop.f32.mrf.mxu0
        %v4238 = vadd.f32 %v4209, %v4237
        %4239 = vmatmul.bf16.gmra.mxu0 %v3898
        %v4240 = vpop.f32.mrf.mxu0
        %v4241 = vadd.f32 %v4212, %v4240
        %v4242 = vpop.f32.mrf.mxu0
        %v4243 = vadd.f32 %v4214, %v4242
        %4244 = vmatmul.bf16.gmra.mxu0 %v3902
        %v4245 = vpop.f32.mrf.mxu0
        %v4246 = vadd.f32 %v4217, %v4245
        %v4247 = vpop.f32.mrf.mxu0
        %v4248 = vadd.f32 %v4219, %v4247
        %4249 = vmatmul.bf16.gmra.mxu0 %v3906
        %v4250 = vpop.f32.mrf.mxu0
        %v4251 = vadd.f32 %v4222, %v4250
        %v4252 = vpop.f32.mrf.mxu0
        %v4253 = vadd.f32 %v4224, %v4252
        %4254 = vdwg.mxu0
        %4255 = vmatpush.bf16.msra.mxu0 %v4135
        %4256 = vmatpush.bf16.msra.mxu0 %v4134
        %4257 = vmatpush.bf16.msra.mxu0 %v4133
        %4258 = vmatpush.bf16.msra.mxu0 %v4132
        %4259 = vmatpush.bf16.msra.mxu0 %v4131
        %4260 = vmatpush.bf16.msra.mxu0 %v4130
        %4261 = vmatpush.bf16.msra.mxu0 %v4129
        %4262 = vmatpush.bf16.msra.mxu0 %v4128
        %4263 = vmatmul.bf16.gmra.mxu0 %v3895
        %v4264 = vpop.f32.mrf.mxu0
        %v4265 = vadd.f32 %v4236, %v4264
        %v4266 = vpop.f32.mrf.mxu0
        %v4267 = vadd.f32 %v4238, %v4266
        %4268 = vmatmul.bf16.gmra.mxu0 %v3899
        %v4269 = vpop.f32.mrf.mxu0
        %v4270 = vadd.f32 %v4241, %v4269
        %v4271 = vpop.f32.mrf.mxu0
        %v4272 = vadd.f32 %v4243, %v4271
        %4273 = vmatmul.bf16.gmra.mxu0 %v3903
        %v4274 = vpop.f32.mrf.mxu0
        %v4275 = vadd.f32 %v4246, %v4274
        %v4276 = vpop.f32.mrf.mxu0
        %v4277 = vadd.f32 %v4248, %v4276
        %4278 = vmatmul.bf16.gmra.mxu0 %v3907
        %v4279 = vpop.f32.mrf.mxu0
        %v4280 = vadd.f32 %v4251, %v4279
        %v4281 = vpop.f32.mrf.mxu0
        %v4282 = vadd.f32 %v4253, %v4281
        %4283 = vdwg.mxu0
        %v4284 = vadd.f32 %v3090, %v4265
        %v4285 = vadd.f32 %v3091, %v4267
        %v4286 = vadd.f32 %v3092, %v4270
        %v4287 = vadd.f32 %v3093, %v4272
        %v4288 = vadd.f32 %v3094, %v4275
        %v4289 = vadd.f32 %v3095, %v4277
        %v4290 = vadd.f32 %v3096, %v4280
        %v4291 = vadd.f32 %v3097, %v4282
        %4292 = vst [vmem:[%s433] sm:$0xff] %v4284
        %4293 = vst [vmem:[%s433 + $0x8] sm:$0xff] %v4285
        %4294 = vst [vmem:[%s433 + $0x10] sm:$0xff] %v4286
        %4295 = vst [vmem:[%s433 + $0x18] sm:$0xff] %v4287
        %4296 = vst [vmem:[%s433 + $0x20] sm:$0xff] %v4288
        %4297 = vst [vmem:[%s433 + $0x28] sm:$0xff] %v4289
        %4298 = vst [vmem:[%s433 + $0x30] sm:$0xff] %v4290
        %4299 = vst [vmem:[%s433 + $0x38] sm:$0xff] %v4291
        %s4300 = sand.u32 %s294, 1
        %s4301 = scalar_lea.sflag [#allocation4], %s4300
        %s4302 = sand.u32 %s294, 1
        %s4303 = smul.addr %s4302, 64
        %s4304 = scalar_lea.vmem [#allocation5], %s4303
        // Predicated region
        $region73: #{dencoder_block_forward.1} parent=67 // pred_check
          %p4305 = pneg %p304
        $region74: #{dencoder_block_forward.1} parent=67 // pred_check_branch
          %4307 = sbr.rel (%p4305) target = $region76
        $region75: #{dencoder_block_forward.1} parent=67 // pred_region
          %4309 = vsyncadd %s4301, 0
          %s4310 = smul.addr %s29, 8
          %s4311 = smul.addr %s4310, 8
          %s4312 = scalar_lea.hbm %s12, %s4311
          %s4313 = sshll.u32 %s4304, 4
          %s4314 = int_to_ptr.vmem [resolvable:$true] %s4313
          %s4315 = sshll.u32 %s4312, 4
          %s4316 = int_to_ptr.hbm [resolvable:$true] %s4315
          %4321 = dma.vmem_to_hbm [thread:$0]  %s4314, 1024, %s4316, %s4301, 128, 128, 8
        $region76: #{dencoder_block_forward.1} parent=67 // pred_fallthru
          _
      $region68: #{dencoder_block_forward.1} parent=5 // pred_fallthru
        _
      %p4322 = scmp.le.s32.totalorder 2, %s24
      // Predicated region
      $region77: #{dencoder_block_forward.1} parent=5 // pred_check
        %p4323 = pneg %p4322
      $region78: #{dencoder_block_forward.1} parent=5 // pred_check_branch
        %4325 = sbr.rel (%p4323) target = $region80
      $region79: #{dencoder_block_forward.1} parent=5 // pred_region
        %s4326 = ssub.s32 %s24, 2
        // Predicated region
        $region81: #{dencoder_block_forward.1} parent=79 // pred_check
          %p4327 = pneg %p310
        $region82: #{dencoder_block_forward.1} parent=79 // pred_check_branch
          %4329 = sbr.rel (%p4327) target = $region84
        $region83: #{dencoder_block_forward.1} parent=79 // pred_region
          %s4330 = sand.u32 %s295, 1
          %s4331 = scalar_lea.sflag [#allocation4], %s4330
          %s4332 = sand.u32 %s295, 1
          %s4333 = smul.addr %s4332, 64
          %s4334 = scalar_lea.vmem [#allocation5], %s4333
          %4336 = dma.done %s4331, 1024
        $region84: #{dencoder_block_forward.1} parent=79 // pred_fallthru
          _
      $region80: #{dencoder_block_forward.1} parent=5 // pred_fallthru
        _
    $region6: #{dencoder_block_forward.1} parent=1 // loop_footer
      %s28 = sadd.s32 1, %s24
    $region7: #{dencoder_block_forward.1} parent=1 // loop_footer_branch
      %23 = sbr.rel target = $region3
    $region8: #{dencoder_block_forward.1} parent=1 // loop_exit
      _
    %4337 = vsyncpa [#allocation3], 1
    %s4338 = scalar_lea.sflag [#allocation3], 1
    %4339 = vsyncpa %s4338, 1
    %4340 = vsyncpa [#allocation4], 1
    %s4341 = scalar_lea.sflag [#allocation4], 1
    %4342 = vsyncpa %s4341, 1

</llo_original>
